<compile_context>
chip_gen: v7x
topology: tpu7x:2x2x1
jax: 0.10.0
libtpu: 0.0.40
codegen_flags: <defaults>
</compile_context>

<pallas_src>
import math

import jax
import jax.numpy as jnp
from jax.experimental import pallas as pl
from jax.experimental.pallas import tpu as pltpu

# ---------------- configuration (consistent with the module) ----------------
DIM = 32                     # C (embedding dim)
HEADS = 4
DIM_HEAD = DIM // HEADS
H = 8
W = 8                        # input_resolution = (8, 8)
WS = 4                       # window_size
SHIFT = 2                    # shift_size (SW-MSA branch -> exercises the mask)
MLP_RATIO = 4.0
HIDDEN = int(DIM * MLP_RATIO)
B = 2
L = H * W                    # 64 tokens per image
N = WS * WS                  # tokens per window (16)
NW = (H // WS) * (W // WS)   # windows per image (4)
EPS = 1e-5
SCALE = DIM_HEAD ** -0.5
NEG = -1e9                   # cross-window mask value (exp underflows to 0)


# ---------------- plain-JAX glue (static, setup-time only) ------------------
def windows_partition(x, window_size):
    Bb, Hh, Ww, Cc = x.shape
    x = x.reshape(Bb, Hh // window_size, window_size, Ww // window_size, window_size, Cc)
    x = jnp.swapaxes(x, 2, 3)
    return x.reshape(-1, window_size, window_size, Cc)


def windows_reverse(windows, window_size, Hh, Ww):
    Bb = windows.shape[0] // (Hh * Ww // window_size // window_size)
    x = windows.reshape(Bb, Hh // window_size, Ww // window_size, window_size, window_size, -1)
    x = jnp.swapaxes(x, 2, 3)
    return x.reshape(Bb, Hh, Ww, -1)


def relative_position_bias(table):
    coords = jnp.stack(jnp.meshgrid(jnp.arange(WS), jnp.arange(WS), indexing="ij"))
    cf = coords.reshape(2, -1)                          # [2, N]
    rel = cf[:, :, None] - cf[:, None, :]               # [2, N, N]
    rel = rel.transpose(1, 2, 0)                        # [N, N, 2]
    rel = rel.at[:, :, 0].add(WS - 1)
    rel = rel.at[:, :, 1].add(WS - 1)
    rel = rel.at[:, :, 0].multiply(2 * WS - 1)
    idx = rel.sum(-1)                                   # [N, N]
    bias = table[idx.reshape(-1)]                       # [N*N, heads]
    return bias.reshape(N, N, HEADS).transpose(2, 0, 1)  # [heads, N, N]


def build_attn_mask():
    img_mask = jnp.zeros((1, H, W, 1), jnp.float32)
    slices = (slice(0, -WS), slice(-WS, -SHIFT), slice(-SHIFT, None))
    cnt = 0
    for hs in slices:
        for ws_ in slices:
            img_mask = img_mask.at[:, hs, ws_, :].set(float(cnt))
            cnt += 1
    mw = windows_partition(img_mask, WS).reshape(-1, N)          # [nW, N]
    am = mw[:, None, :] - mw[:, :, None]                         # [nW, N, N]
    return jnp.where(am != 0, -100.0, 0.0).astype(jnp.float32)


def build_perm():
    """perm such that x_windowed[p] = x[perm[p]] (roll + window partition)."""
    idx = jnp.arange(L, dtype=jnp.int32).reshape(1, H, W, 1)
    if SHIFT > 0:
        idx = jnp.roll(idx, shift=(-SHIFT, -SHIFT), axis=(1, 2))
    return windows_partition(idx, WS).reshape(-1)


def precompute_bias_mask(rel_table):
    """Dense (HEADS, L, L) bias in ORIGINAL token order:
    rel-pos bias + shift mask on the (shifted) window-diagonal, -1e9 elsewhere.
    The roll + window-partition permutation is folded in here once, so the
    kernel never permutes tokens."""
    rb = relative_position_bias(rel_table)                         # (HEADS, N, N)
    sm = build_attn_mask() if SHIFT > 0 else jnp.zeros((NW, N, N), jnp.float32)
    bw = jnp.full((HEADS, L, L), NEG, jnp.float32)                 # windowed order
    for w in range(NW):
        blk = rb + sm[w][None]                                     # (HEADS, N, N)
        bw = bw.at[:, w * N:(w + 1) * N, w * N:(w + 1) * N].set(blk)
    inv = jnp.argsort(build_perm())                                # token l -> windowed pos
    return bw[:, inv, :][:, :, inv]                                # original token order


def _gelu_exact(x):
    return 0.5 * x * (1.0 + jax.lax.erf(x * (1.0 / math.sqrt(2.0))))


# ---------------- fused Pallas kernel ----------------------------------------
def swin_block_kernel(x_ref, bm_ref, wqkv_ref, bqkv_ref, wproj_ref, bproj_ref,
                      g1_ref, be1_ref, w1_ref, b1_ref, w2_ref, b2_ref,
                      g2_ref, be2_ref, o_ref, z_sc):
    xt = x_ref[0]                                    # (L, C) = (64, 32), original order

    # ---- qkv projection ----
    qkv = jnp.dot(xt, wqkv_ref[...], preferred_element_type=jnp.float32) + bqkv_ref[...]
    q = qkv[:, :DIM] * SCALE
    k = qkv[:, DIM:2 * DIM]
    v = qkv[:, 2 * DIM:]

    # ---- dense per-image attention, heads statically unrolled --------------
    # bm_ref carries rel-pos bias + shift mask + cross-window -1e9, already in
    # original token order, so no window partition / reverse is needed.
    for h in range(HEADS):
        sl = slice(h * DIM_HEAD, (h + 1) * DIM_HEAD)
        s = jax.lax.dot_general(q[:, sl], k[:, sl], (((1,), (1,)), ((), ())),
                                preferred_element_type=jnp.float32)   # (L, L)
        s = s + bm_ref[h]
        s = s - jnp.max(s, axis=-1, keepdims=True)
        p = jnp.exp(s)                                                 # masked -> 0
        denom = jnp.sum(p, axis=-1, keepdims=True)
        zh = jnp.dot(p, v[:, sl], preferred_element_type=jnp.float32)  # (L, DH)
        z_sc[:, sl] = zh * pl.reciprocal(denom, approx=True)           # normalize post-matmul

    a = jnp.dot(z_sc[...], wproj_ref[...], preferred_element_type=jnp.float32) + bproj_ref[...]

    # ---- post-norm residual 1:  x1 = x + LN1(attn(x))  (matches the module) ----
    mu = jnp.mean(a, axis=-1, keepdims=True)
    var = jnp.mean((a - mu) ** 2, axis=-1, keepdims=True)
    x1 = xt + ((a - mu) * jax.lax.rsqrt(var + EPS) * g1_ref[...] + be1_ref[...])

    # ---- MLP + post-norm residual 2:  out = x1 + LN2(mlp(x1)) ----
    t = jnp.dot(x1, w1_ref[...], preferred_element_type=jnp.float32) + b1_ref[...]
    t = _gelu_exact(t)
    t = jnp.dot(t, w2_ref[...], preferred_element_type=jnp.float32) + b2_ref[...]
    mu2 = jnp.mean(t, axis=-1, keepdims=True)
    var2 = jnp.mean((t - mu2) ** 2, axis=-1, keepdims=True)
    t = (t - mu2) * jax.lax.rsqrt(var2 + EPS) * g2_ref[...] + be2_ref[...]

    o_ref[0] = x1 + t                                # (L, C), already original order


def swin_block_forward(x, params, bias_mask):
    """Entire SwinTransformerBlock forward == ONE pallas_call."""
    Bb = x.shape[0]
    rep = lambda b: (0, 0)          # replicated (weights / biases), DMA'd once
    return pl.pallas_call(
        swin_block_kernel,
        out_shape=jax.ShapeDtypeStruct((Bb, L, DIM), jnp.float32),
        grid=(Bb,),
        in_specs=[
            pl.BlockSpec((1, L, DIM), lambda b: (b, 0, 0)),       # x (one image)
            pl.BlockSpec((HEADS, L, L), lambda b: (0, 0, 0)),     # bias + mask (dense)
            pl.BlockSpec((DIM, 3 * DIM), rep),                    # W_qkv
            pl.BlockSpec((1, 3 * DIM), rep),                      # b_qkv
            pl.BlockSpec((DIM, DIM), rep),                        # W_proj
            pl.BlockSpec((1, DIM), rep),                          # b_proj
            pl.BlockSpec((1, DIM), rep),                          # norm1 gamma
            pl.BlockSpec((1, DIM), rep),                          # norm1 beta
            pl.BlockSpec((DIM, HIDDEN), rep),                     # fc1 W
            pl.BlockSpec((1, HIDDEN), rep),                       # fc1 b
            pl.BlockSpec((HIDDEN, DIM), rep),                     # fc2 W
            pl.BlockSpec((1, DIM), rep),                          # fc2 b
            pl.BlockSpec((1, DIM), rep),                          # norm2 gamma
            pl.BlockSpec((1, DIM), rep),                          # norm2 beta
        ],
        out_specs=pl.BlockSpec((1, L, DIM), lambda b: (b, 0, 0)),
        scratch_shapes=[pltpu.VMEM((L, DIM), jnp.float32)],       # per-head output slab
        compiler_params=pltpu.CompilerParams(dimension_semantics=("parallel",)),
    )(x, bias_mask,
      params["wqkv"], params["bqkv"].reshape(1, -1),
      params["wproj"], params["bproj"].reshape(1, -1),
      params["g1"].reshape(1, -1), params["be1"].reshape(1, -1),
      params["w1"], params["b1"].reshape(1, -1),
      params["w2"], params["b2"].reshape(1, -1),
      params["g2"].reshape(1, -1), params["be2"].reshape(1, -1))


# ---------------- pure-JAX reference (correctness check) ---------------------
def reference_forward(x, params):
    Bb, Ll, Cc = x.shape
    h_res = x
    xi = x.reshape(Bb, H, W, Cc)
    if SHIFT > 0:
        xi = jnp.roll(xi, shift=(-SHIFT, -SHIFT), axis=(1, 2))
    xw = windows_partition(xi, WS).reshape(-1, N, Cc)

    qkv = xw @ params["wqkv"] + params["bqkv"]
    q, k, v = jnp.split(qkv, 3, axis=-1)

    def heads(t):
        return t.reshape(-1, N, HEADS, DIM_HEAD).transpose(0, 2, 1, 3)

    q, k, v = heads(q) * SCALE, heads(k), heads(v)
    attn = jnp.einsum("bhqd,bhkd->bhqk", q, k)
    attn = attn + relative_position_bias(params["rel_table"])[None]
    if SHIFT > 0:
        mask = build_attn_mask()
        attn = attn.reshape(Bb, NW, HEADS, N, N) + mask[None, :, None]
        attn = attn.reshape(-1, HEADS, N, N)
    attn = jax.nn.softmax(attn, axis=-1)
    z = jnp.einsum("bhqk,bhkd->bhqd", attn, v).transpose(0, 2, 1, 3).reshape(-1, N, Cc)
    z = z @ params["wproj"] + params["bproj"]

    z = z.reshape(-1, WS, WS, Cc)
    shifted = windows_reverse(z, WS, H, W)
    if SHIFT > 0:
        shifted = jnp.roll(shifted, shift=(SHIFT, SHIFT), axis=(1, 2))
    a = shifted.reshape(Bb, Ll, Cc)

    def ln(t, g, b):
        mu = t.mean(-1, keepdims=True)
        var = ((t - mu) ** 2).mean(-1, keepdims=True)
        return (t - mu) / jnp.sqrt(var + EPS) * g + b

    x1 = h_res + ln(a, params["g1"], params["be1"])
    t = x1 @ params["w1"] + params["b1"]
    t = _gelu_exact(t)
    t = t @ params["w2"] + params["b2"]
    t = ln(t, params["g2"], params["be2"])
    return x1 + t


# ---------------- deterministic parameter init --------------------------------
def init_params(key):
    ks = jax.random.split(key, 5)
    return dict(
        wqkv=jax.random.normal(ks[0], (DIM, 3 * DIM), jnp.float32) * 0.02,
        bqkv=jnp.zeros((3 * DIM,), jnp.float32),
        wproj=jax.random.normal(ks[1], (DIM, DIM), jnp.float32) * 0.02,
        bproj=jnp.zeros((DIM,), jnp.float32),
        rel_table=jax.random.truncated_normal(
            ks[2], -2.0, 2.0, ((2 * WS - 1) * (2 * WS - 1), HEADS), jnp.float32) * 0.02,
        g1=jnp.ones((DIM,), jnp.float32), be1=jnp.zeros((DIM,), jnp.float32),
        g2=jnp.ones((DIM,), jnp.float32), be2=jnp.zeros((DIM,), jnp.float32),
        w1=jax.random.normal(ks[3], (DIM, HIDDEN), jnp.float32) * 0.02,
        b1=jnp.zeros((HIDDEN,), jnp.float32),
        w2=jax.random.normal(ks[4], (HIDDEN, DIM), jnp.float32) * 0.02,
        b2=jnp.zeros((DIM,), jnp.float32),
    )


if __name__ == "__main__":
    key = jax.random.PRNGKey(0)
    kx, kp = jax.random.split(key)
    x = jax.random.normal(kx, (B, L, DIM), jnp.float32)   # [B, L=H*W, C]
    params = init_params(kp)

    # Static precomputation (once, outside the per-forward path): rel-pos bias,
    # shift mask, cross-window mask AND the roll/window permutation, all folded
    # into one dense (HEADS, L, L) tensor in original token order.
    bias_mask = precompute_bias_mask(params["rel_table"])

    fwd = jax.jit(lambda xx: swin_block_forward(xx, params, bias_mask))
    out = jax.block_until_ready(fwd(x))

    ref = reference_forward(x, params)
    err = float(jnp.max(jnp.abs(out - ref)))
    # tolerance accounts for the EUP approximate-reciprocal softmax normalization
    assert err < 2e-2, f"mismatch vs reference: {err}"

    print("KERNEL_OK")
</pallas_src>

<mosaic_0001>
module attributes {stable_mosaic.version = 11 : i64} {
  func.func @swin_block_kernel(%arg0: i32, %arg1: memref<1x64x32xf32, #tpu.memory_space<vmem>>, %arg2: memref<4x64x64xf32, #tpu.memory_space<vmem>>, %arg3: memref<32x96xf32, #tpu.memory_space<vmem>>, %arg4: memref<1x96xf32, #tpu.memory_space<vmem>>, %arg5: memref<32x32xf32, #tpu.memory_space<vmem>>, %arg6: memref<1x32xf32, #tpu.memory_space<vmem>>, %arg7: memref<1x32xf32, #tpu.memory_space<vmem>>, %arg8: memref<1x32xf32, #tpu.memory_space<vmem>>, %arg9: memref<32x128xf32, #tpu.memory_space<vmem>>, %arg10: memref<1x128xf32, #tpu.memory_space<vmem>>, %arg11: memref<128x32xf32, #tpu.memory_space<vmem>>, %arg12: memref<1x32xf32, #tpu.memory_space<vmem>>, %arg13: memref<1x32xf32, #tpu.memory_space<vmem>>, %arg14: memref<1x32xf32, #tpu.memory_space<vmem>>, %arg15: memref<1x64x32xf32, #tpu.memory_space<vmem>>, %arg16: memref<64x32xf32, #tpu.memory_space<vmem>>) attributes {dimension_semantics = [#tpu.dimension_semantics<parallel>], iteration_bounds = array<i64: 2>, scalar_prefetch = 0 : i64, scratch_operands = 1 : i64, tpu.core_type = #tpu.core_type<tc>, window_params = [{transform_indices = @transform_0, window_bounds = array<i64: 1, 64, 32>}, {pipeline_mode = #tpu.pipeline_mode<synchronous>, transform_indices = @transform_1, window_bounds = array<i64: 4, 64, 64>}, {pipeline_mode = #tpu.pipeline_mode<synchronous>, transform_indices = @transform_2, window_bounds = array<i64: 32, 96>}, {pipeline_mode = #tpu.pipeline_mode<synchronous>, transform_indices = @transform_3, window_bounds = array<i64: 1, 96>}, {pipeline_mode = #tpu.pipeline_mode<synchronous>, transform_indices = @transform_4, window_bounds = array<i64: 32, 32>}, {pipeline_mode = #tpu.pipeline_mode<synchronous>, transform_indices = @transform_5, window_bounds = array<i64: 1, 32>}, {pipeline_mode = #tpu.pipeline_mode<synchronous>, transform_indices = @transform_6, window_bounds = array<i64: 1, 32>}, {pipeline_mode = #tpu.pipeline_mode<synchronous>, transform_indices = @transform_7, window_bounds = array<i64: 1, 32>}, {pipeline_mode = #tpu.pipeline_mode<synchronous>, transform_indices = @transform_8, window_bounds = array<i64: 32, 128>}, {pipeline_mode = #tpu.pipeline_mode<synchronous>, transform_indices = @transform_9, window_bounds = array<i64: 1, 128>}, {pipeline_mode = #tpu.pipeline_mode<synchronous>, transform_indices = @transform_10, window_bounds = array<i64: 128, 32>}, {pipeline_mode = #tpu.pipeline_mode<synchronous>, transform_indices = @transform_11, window_bounds = array<i64: 1, 32>}, {pipeline_mode = #tpu.pipeline_mode<synchronous>, transform_indices = @transform_12, window_bounds = array<i64: 1, 32>}, {pipeline_mode = #tpu.pipeline_mode<synchronous>, transform_indices = @transform_13, window_bounds = array<i64: 1, 32>}, {transform_indices = @transform_14, window_bounds = array<i64: 1, 64, 32>}]} {
    %c0 = arith.constant 0 : index
    %c0_0 = arith.constant 0 : index
    %c0_1 = arith.constant 0 : index
    %0 = vector.load %arg1[%c0, %c0_0, %c0_1] : memref<1x64x32xf32, #tpu.memory_space<vmem>>, vector<1x64x32xf32>
    %1 = vector.shape_cast %0 : vector<1x64x32xf32> to vector<64x32xf32>
    %c0_2 = arith.constant 0 : index
    %c0_3 = arith.constant 0 : index
    %2 = vector.load %arg3[%c0_2, %c0_3] : memref<32x96xf32, #tpu.memory_space<vmem>>, vector<32x96xf32>
    %cst = arith.constant dense<0.000000e+00> : vector<64x96xf32>
    %3 = tpu.matmul %1, %2, %cst {dimension_numbers = #tpu.dot_dimension_numbers<[1], [0], [0], [1], [0, 0, 1, 1], [], []>} : vector<64x32xf32>, vector<32x96xf32>, vector<64x96xf32> -> vector<64x96xf32>
    %c0_4 = arith.constant 0 : index
    %c0_5 = arith.constant 0 : index
    %4 = vector.load %arg4[%c0_4, %c0_5] : memref<1x96xf32, #tpu.memory_space<vmem>>, vector<1x96xf32>
    %5 = vector.broadcast %4 : vector<1x96xf32> to vector<64x96xf32>
    %6 = arith.addf %3, %5 : vector<64x96xf32>
    %7 = vector.extract_strided_slice %6 {offsets = [0, 0], sizes = [64, 32], strides = [1, 1]} : vector<64x96xf32> to vector<64x32xf32>
    %cst_6 = arith.constant 0.353553385 : f32
    %8 = vector.broadcast %cst_6 : f32 to vector<64x32xf32>
    %9 = arith.mulf %7, %8 : vector<64x32xf32>
    %10 = vector.extract_strided_slice %6 {offsets = [0, 32], sizes = [64, 32], strides = [1, 1]} : vector<64x96xf32> to vector<64x32xf32>
    %11 = vector.extract_strided_slice %6 {offsets = [0, 64], sizes = [64, 32], strides = [1, 1]} : vector<64x96xf32> to vector<64x32xf32>
    %12 = vector.extract_strided_slice %9 {offsets = [0, 0], sizes = [64, 8], strides = [1, 1]} : vector<64x32xf32> to vector<64x8xf32>
    %13 = vector.extract_strided_slice %10 {offsets = [0, 0], sizes = [64, 8], strides = [1, 1]} : vector<64x32xf32> to vector<64x8xf32>
    %cst_7 = arith.constant dense<0.000000e+00> : vector<64x64xf32>
    %14 = tpu.matmul %12, %13, %cst_7 {dimension_numbers = #tpu.dot_dimension_numbers<[1], [1], [0], [0], [0, 0, 1, 0], [], []>} : vector<64x8xf32>, vector<64x8xf32>, vector<64x64xf32> -> vector<64x64xf32>
    %c0_8 = arith.constant 0 : index
    %c0_9 = arith.constant 0 : index
    %c0_10 = arith.constant 0 : index
    %15 = vector.load %arg2[%c0_8, %c0_9, %c0_10] : memref<4x64x64xf32, #tpu.memory_space<vmem>>, vector<1x64x64xf32>
    %16 = vector.shape_cast %15 : vector<1x64x64xf32> to vector<64x64xf32>
    %17 = arith.addf %14, %16 : vector<64x64xf32>
    %cst_11 = arith.constant dense<0xFF800000> : vector<64xf32>
    %18 = vector.multi_reduction <maximumf>, %17, %cst_11 [1] : vector<64x64xf32> to vector<64xf32>
    %19 = vector.shape_cast %18 : vector<64xf32> to vector<64x1xf32>
    %20 = vector.broadcast %19 : vector<64x1xf32> to vector<64x64xf32>
    %21 = arith.subf %17, %20 : vector<64x64xf32>
    %22 = math.exp %21 : vector<64x64xf32>
    %cst_12 = arith.constant dense<0.000000e+00> : vector<64xf32>
    %23 = vector.multi_reduction <add>, %22, %cst_12 [1] : vector<64x64xf32> to vector<64xf32>
    %24 = vector.shape_cast %23 : vector<64xf32> to vector<64x1xf32>
    %25 = vector.extract_strided_slice %11 {offsets = [0, 0], sizes = [64, 8], strides = [1, 1]} : vector<64x32xf32> to vector<64x8xf32>
    %cst_13 = arith.constant dense<0.000000e+00> : vector<64x8xf32>
    %26 = tpu.matmul %22, %25, %cst_13 {dimension_numbers = #tpu.dot_dimension_numbers<[1], [0], [0], [1], [0, 0, 1, 1], [], []>} : vector<64x64xf32>, vector<64x8xf32>, vector<64x8xf32> -> vector<64x8xf32>
    %27 = tpu.reciprocal %24 {approx = true} : vector<64x1xf32> -> vector<64x1xf32>
    %28 = vector.broadcast %27 : vector<64x1xf32> to vector<64x8xf32>
    %29 = arith.mulf %26, %28 : vector<64x8xf32>
    %c0_14 = arith.constant 0 : index
    %c0_15 = arith.constant 0 : index
    %30 = vector.load %arg16[%c0_14, %c0_15] : memref<64x32xf32, #tpu.memory_space<vmem>>, vector<64x8xf32>
    tpu.vector_store %arg16[%c0_14, %c0_15], %29 {strides = array<i32>} : memref<64x32xf32, #tpu.memory_space<vmem>>, vector<64x8xf32>,
    %31 = vector.extract_strided_slice %9 {offsets = [0, 8], sizes = [64, 8], strides = [1, 1]} : vector<64x32xf32> to vector<64x8xf32>
    %32 = vector.extract_strided_slice %10 {offsets = [0, 8], sizes = [64, 8], strides = [1, 1]} : vector<64x32xf32> to vector<64x8xf32>
    %cst_16 = arith.constant dense<0.000000e+00> : vector<64x64xf32>
    %33 = tpu.matmul %31, %32, %cst_16 {dimension_numbers = #tpu.dot_dimension_numbers<[1], [1], [0], [0], [0, 0, 1, 0], [], []>} : vector<64x8xf32>, vector<64x8xf32>, vector<64x64xf32> -> vector<64x64xf32>
    %c1 = arith.constant 1 : index
    %c0_17 = arith.constant 0 : index
    %c0_18 = arith.constant 0 : index
    %34 = vector.load %arg2[%c1, %c0_17, %c0_18] : memref<4x64x64xf32, #tpu.memory_space<vmem>>, vector<1x64x64xf32>
    %35 = vector.shape_cast %34 : vector<1x64x64xf32> to vector<64x64xf32>
    %36 = arith.addf %33, %35 : vector<64x64xf32>
    %cst_19 = arith.constant dense<0xFF800000> : vector<64xf32>
    %37 = vector.multi_reduction <maximumf>, %36, %cst_19 [1] : vector<64x64xf32> to vector<64xf32>
    %38 = vector.shape_cast %37 : vector<64xf32> to vector<64x1xf32>
    %39 = vector.broadcast %38 : vector<64x1xf32> to vector<64x64xf32>
    %40 = arith.subf %36, %39 : vector<64x64xf32>
    %41 = math.exp %40 : vector<64x64xf32>
    %cst_20 = arith.constant dense<0.000000e+00> : vector<64xf32>
    %42 = vector.multi_reduction <add>, %41, %cst_20 [1] : vector<64x64xf32> to vector<64xf32>
    %43 = vector.shape_cast %42 : vector<64xf32> to vector<64x1xf32>
    %44 = vector.extract_strided_slice %11 {offsets = [0, 8], sizes = [64, 8], strides = [1, 1]} : vector<64x32xf32> to vector<64x8xf32>
    %cst_21 = arith.constant dense<0.000000e+00> : vector<64x8xf32>
    %45 = tpu.matmul %41, %44, %cst_21 {dimension_numbers = #tpu.dot_dimension_numbers<[1], [0], [0], [1], [0, 0, 1, 1], [], []>} : vector<64x64xf32>, vector<64x8xf32>, vector<64x8xf32> -> vector<64x8xf32>
    %46 = tpu.reciprocal %43 {approx = true} : vector<64x1xf32> -> vector<64x1xf32>
    %47 = vector.broadcast %46 : vector<64x1xf32> to vector<64x8xf32>
    %48 = arith.mulf %45, %47 : vector<64x8xf32>
    %c0_22 = arith.constant 0 : index
    %c8 = arith.constant 8 : index
    %49 = vector.load %arg16[%c0_22, %c8] : memref<64x32xf32, #tpu.memory_space<vmem>>, vector<64x8xf32>
    tpu.vector_store %arg16[%c0_22, %c8], %48 {strides = array<i32>} : memref<64x32xf32, #tpu.memory_space<vmem>>, vector<64x8xf32>,
    %50 = vector.extract_strided_slice %9 {offsets = [0, 16], sizes = [64, 8], strides = [1, 1]} : vector<64x32xf32> to vector<64x8xf32>
    %51 = vector.extract_strided_slice %10 {offsets = [0, 16], sizes = [64, 8], strides = [1, 1]} : vector<64x32xf32> to vector<64x8xf32>
    %cst_23 = arith.constant dense<0.000000e+00> : vector<64x64xf32>
    %52 = tpu.matmul %50, %51, %cst_23 {dimension_numbers = #tpu.dot_dimension_numbers<[1], [1], [0], [0], [0, 0, 1, 0], [], []>} : vector<64x8xf32>, vector<64x8xf32>, vector<64x64xf32> -> vector<64x64xf32>
    %c2 = arith.constant 2 : index
    %c0_24 = arith.constant 0 : index
    %c0_25 = arith.constant 0 : index
    %53 = vector.load %arg2[%c2, %c0_24, %c0_25] : memref<4x64x64xf32, #tpu.memory_space<vmem>>, vector<1x64x64xf32>
    %54 = vector.shape_cast %53 : vector<1x64x64xf32> to vector<64x64xf32>
    %55 = arith.addf %52, %54 : vector<64x64xf32>
    %cst_26 = arith.constant dense<0xFF800000> : vector<64xf32>
    %56 = vector.multi_reduction <maximumf>, %55, %cst_26 [1] : vector<64x64xf32> to vector<64xf32>
    %57 = vector.shape_cast %56 : vector<64xf32> to vector<64x1xf32>
    %58 = vector.broadcast %57 : vector<64x1xf32> to vector<64x64xf32>
    %59 = arith.subf %55, %58 : vector<64x64xf32>
    %60 = math.exp %59 : vector<64x64xf32>
    %cst_27 = arith.constant dense<0.000000e+00> : vector<64xf32>
    %61 = vector.multi_reduction <add>, %60, %cst_27 [1] : vector<64x64xf32> to vector<64xf32>
    %62 = vector.shape_cast %61 : vector<64xf32> to vector<64x1xf32>
    %63 = vector.extract_strided_slice %11 {offsets = [0, 16], sizes = [64, 8], strides = [1, 1]} : vector<64x32xf32> to vector<64x8xf32>
    %cst_28 = arith.constant dense<0.000000e+00> : vector<64x8xf32>
    %64 = tpu.matmul %60, %63, %cst_28 {dimension_numbers = #tpu.dot_dimension_numbers<[1], [0], [0], [1], [0, 0, 1, 1], [], []>} : vector<64x64xf32>, vector<64x8xf32>, vector<64x8xf32> -> vector<64x8xf32>
    %65 = tpu.reciprocal %62 {approx = true} : vector<64x1xf32> -> vector<64x1xf32>
    %66 = vector.broadcast %65 : vector<64x1xf32> to vector<64x8xf32>
    %67 = arith.mulf %64, %66 : vector<64x8xf32>
    %c0_29 = arith.constant 0 : index
    %c16 = arith.constant 16 : index
    %68 = vector.load %arg16[%c0_29, %c16] : memref<64x32xf32, #tpu.memory_space<vmem>>, vector<64x8xf32>
    tpu.vector_store %arg16[%c0_29, %c16], %67 {strides = array<i32>} : memref<64x32xf32, #tpu.memory_space<vmem>>, vector<64x8xf32>,
    %69 = vector.extract_strided_slice %9 {offsets = [0, 24], sizes = [64, 8], strides = [1, 1]} : vector<64x32xf32> to vector<64x8xf32>
    %70 = vector.extract_strided_slice %10 {offsets = [0, 24], sizes = [64, 8], strides = [1, 1]} : vector<64x32xf32> to vector<64x8xf32>
    %cst_30 = arith.constant dense<0.000000e+00> : vector<64x64xf32>
    %71 = tpu.matmul %69, %70, %cst_30 {dimension_numbers = #tpu.dot_dimension_numbers<[1], [1], [0], [0], [0, 0, 1, 0], [], []>} : vector<64x8xf32>, vector<64x8xf32>, vector<64x64xf32> -> vector<64x64xf32>
    %c3 = arith.constant 3 : index
    %c0_31 = arith.constant 0 : index
    %c0_32 = arith.constant 0 : index
    %72 = vector.load %arg2[%c3, %c0_31, %c0_32] : memref<4x64x64xf32, #tpu.memory_space<vmem>>, vector<1x64x64xf32>
    %73 = vector.shape_cast %72 : vector<1x64x64xf32> to vector<64x64xf32>
    %74 = arith.addf %71, %73 : vector<64x64xf32>
    %cst_33 = arith.constant dense<0xFF800000> : vector<64xf32>
    %75 = vector.multi_reduction <maximumf>, %74, %cst_33 [1] : vector<64x64xf32> to vector<64xf32>
    %76 = vector.shape_cast %75 : vector<64xf32> to vector<64x1xf32>
    %77 = vector.broadcast %76 : vector<64x1xf32> to vector<64x64xf32>
    %78 = arith.subf %74, %77 : vector<64x64xf32>
    %79 = math.exp %78 : vector<64x64xf32>
    %cst_34 = arith.constant dense<0.000000e+00> : vector<64xf32>
    %80 = vector.multi_reduction <add>, %79, %cst_34 [1] : vector<64x64xf32> to vector<64xf32>
    %81 = vector.shape_cast %80 : vector<64xf32> to vector<64x1xf32>
    %82 = vector.extract_strided_slice %11 {offsets = [0, 24], sizes = [64, 8], strides = [1, 1]} : vector<64x32xf32> to vector<64x8xf32>
    %cst_35 = arith.constant dense<0.000000e+00> : vector<64x8xf32>
    %83 = tpu.matmul %79, %82, %cst_35 {dimension_numbers = #tpu.dot_dimension_numbers<[1], [0], [0], [1], [0, 0, 1, 1], [], []>} : vector<64x64xf32>, vector<64x8xf32>, vector<64x8xf32> -> vector<64x8xf32>
    %84 = tpu.reciprocal %81 {approx = true} : vector<64x1xf32> -> vector<64x1xf32>
    %85 = vector.broadcast %84 : vector<64x1xf32> to vector<64x8xf32>
    %86 = arith.mulf %83, %85 : vector<64x8xf32>
    %c0_36 = arith.constant 0 : index
    %c24 = arith.constant 24 : index
    %87 = vector.load %arg16[%c0_36, %c24] : memref<64x32xf32, #tpu.memory_space<vmem>>, vector<64x8xf32>
    tpu.vector_store %arg16[%c0_36, %c24], %86 {strides = array<i32>} : memref<64x32xf32, #tpu.memory_space<vmem>>, vector<64x8xf32>,
    %c0_37 = arith.constant 0 : index
    %c0_38 = arith.constant 0 : index
    %88 = vector.load %arg16[%c0_37, %c0_38] : memref<64x32xf32, #tpu.memory_space<vmem>>, vector<64x32xf32>
    %c0_39 = arith.constant 0 : index
    %c0_40 = arith.constant 0 : index
    %89 = vector.load %arg5[%c0_39, %c0_40] : memref<32x32xf32, #tpu.memory_space<vmem>>, vector<32x32xf32>
    %cst_41 = arith.constant dense<0.000000e+00> : vector<64x32xf32>
    %90 = tpu.matmul %88, %89, %cst_41 {dimension_numbers = #tpu.dot_dimension_numbers<[1], [0], [0], [1], [0, 0, 1, 1], [], []>} : vector<64x32xf32>, vector<32x32xf32>, vector<64x32xf32> -> vector<64x32xf32>
    %c0_42 = arith.constant 0 : index
    %c0_43 = arith.constant 0 : index
    %91 = vector.load %arg6[%c0_42, %c0_43] : memref<1x32xf32, #tpu.memory_space<vmem>>, vector<1x32xf32>
    %92 = vector.broadcast %91 : vector<1x32xf32> to vector<64x32xf32>
    %93 = arith.addf %90, %92 : vector<64x32xf32>
    %cst_44 = arith.constant dense<0.000000e+00> : vector<64xf32>
    %94 = vector.multi_reduction <add>, %93, %cst_44 [1] : vector<64x32xf32> to vector<64xf32>
    %95 = vector.shape_cast %94 : vector<64xf32> to vector<64x1xf32>
    %cst_45 = arith.constant 3.200000e+01 : f32
    %96 = vector.broadcast %cst_45 : f32 to vector<64x1xf32>
    %97 = arith.divf %95, %96 : vector<64x1xf32>
    %98 = vector.broadcast %97 : vector<64x1xf32> to vector<64x32xf32>
    %99 = arith.subf %93, %98 : vector<64x32xf32>
    %100 = arith.mulf %99, %99 : vector<64x32xf32>
    %cst_46 = arith.constant dense<0.000000e+00> : vector<64xf32>
    %101 = vector.multi_reduction <add>, %100, %cst_46 [1] : vector<64x32xf32> to vector<64xf32>
    %102 = vector.shape_cast %101 : vector<64xf32> to vector<64x1xf32>
    %cst_47 = arith.constant 3.200000e+01 : f32
    %103 = vector.broadcast %cst_47 : f32 to vector<64x1xf32>
    %104 = arith.divf %102, %103 : vector<64x1xf32>
    %105 = vector.broadcast %97 : vector<64x1xf32> to vector<64x32xf32>
    %106 = arith.subf %93, %105 : vector<64x32xf32>
    %cst_48 = arith.constant 9.99999974E-6 : f32
    %107 = vector.broadcast %cst_48 : f32 to vector<64x1xf32>
    %108 = arith.addf %104, %107 : vector<64x1xf32>
    %109 = math.rsqrt %108 : vector<64x1xf32>
    %110 = vector.broadcast %109 : vector<64x1xf32> to vector<64x32xf32>
    %111 = arith.mulf %106, %110 : vector<64x32xf32>
    %c0_49 = arith.constant 0 : index
    %c0_50 = arith.constant 0 : index
    %112 = vector.load %arg7[%c0_49, %c0_50] : memref<1x32xf32, #tpu.memory_space<vmem>>, vector<1x32xf32>
    %113 = vector.broadcast %112 : vector<1x32xf32> to vector<64x32xf32>
    %114 = arith.mulf %111, %113 : vector<64x32xf32>
    %c0_51 = arith.constant 0 : index
    %c0_52 = arith.constant 0 : index
    %115 = vector.load %arg8[%c0_51, %c0_52] : memref<1x32xf32, #tpu.memory_space<vmem>>, vector<1x32xf32>
    %116 = vector.broadcast %115 : vector<1x32xf32> to vector<64x32xf32>
    %117 = arith.addf %114, %116 : vector<64x32xf32>
    %118 = arith.addf %1, %117 : vector<64x32xf32>
    %c0_53 = arith.constant 0 : index
    %c0_54 = arith.constant 0 : index
    %119 = vector.load %arg9[%c0_53, %c0_54] : memref<32x128xf32, #tpu.memory_space<vmem>>, vector<32x128xf32>
    %cst_55 = arith.constant dense<0.000000e+00> : vector<64x128xf32>
    %120 = tpu.matmul %118, %119, %cst_55 {dimension_numbers = #tpu.dot_dimension_numbers<[1], [0], [0], [1], [0, 0, 1, 1], [], []>} : vector<64x32xf32>, vector<32x128xf32>, vector<64x128xf32> -> vector<64x128xf32>
    %c0_56 = arith.constant 0 : index
    %c0_57 = arith.constant 0 : index
    %121 = vector.load %arg10[%c0_56, %c0_57] : memref<1x128xf32, #tpu.memory_space<vmem>>, vector<1x128xf32>
    %122 = vector.broadcast %121 : vector<1x128xf32> to vector<64x128xf32>
    %123 = arith.addf %120, %122 : vector<64x128xf32>
    %cst_58 = arith.constant 5.000000e-01 : f32
    %124 = vector.broadcast %cst_58 : f32 to vector<64x128xf32>
    %125 = arith.mulf %124, %123 : vector<64x128xf32>
    %cst_59 = arith.constant 0.707106769 : f32
    %126 = vector.broadcast %cst_59 : f32 to vector<64x128xf32>
    %127 = arith.mulf %123, %126 : vector<64x128xf32>
    %128 = math.erf %127 : vector<64x128xf32>
    %cst_60 = arith.constant 1.000000e+00 : f32
    %129 = vector.broadcast %cst_60 : f32 to vector<64x128xf32>
    %130 = arith.addf %129, %128 : vector<64x128xf32>
    %131 = arith.mulf %125, %130 : vector<64x128xf32>
    %c0_61 = arith.constant 0 : index
    %c0_62 = arith.constant 0 : index
    %132 = vector.load %arg11[%c0_61, %c0_62] : memref<128x32xf32, #tpu.memory_space<vmem>>, vector<128x32xf32>
    %cst_63 = arith.constant dense<0.000000e+00> : vector<64x32xf32>
    %133 = tpu.matmul %131, %132, %cst_63 {dimension_numbers = #tpu.dot_dimension_numbers<[1], [0], [0], [1], [0, 0, 1, 1], [], []>} : vector<64x128xf32>, vector<128x32xf32>, vector<64x32xf32> -> vector<64x32xf32>
    %c0_64 = arith.constant 0 : index
    %c0_65 = arith.constant 0 : index
    %134 = vector.load %arg12[%c0_64, %c0_65] : memref<1x32xf32, #tpu.memory_space<vmem>>, vector<1x32xf32>
    %135 = vector.broadcast %134 : vector<1x32xf32> to vector<64x32xf32>
    %136 = arith.addf %133, %135 : vector<64x32xf32>
    %cst_66 = arith.constant dense<0.000000e+00> : vector<64xf32>
    %137 = vector.multi_reduction <add>, %136, %cst_66 [1] : vector<64x32xf32> to vector<64xf32>
    %138 = vector.shape_cast %137 : vector<64xf32> to vector<64x1xf32>
    %cst_67 = arith.constant 3.200000e+01 : f32
    %139 = vector.broadcast %cst_67 : f32 to vector<64x1xf32>
    %140 = arith.divf %138, %139 : vector<64x1xf32>
    %141 = vector.broadcast %140 : vector<64x1xf32> to vector<64x32xf32>
    %142 = arith.subf %136, %141 : vector<64x32xf32>
    %143 = arith.mulf %142, %142 : vector<64x32xf32>
    %cst_68 = arith.constant dense<0.000000e+00> : vector<64xf32>
    %144 = vector.multi_reduction <add>, %143, %cst_68 [1] : vector<64x32xf32> to vector<64xf32>
    %145 = vector.shape_cast %144 : vector<64xf32> to vector<64x1xf32>
    %cst_69 = arith.constant 3.200000e+01 : f32
    %146 = vector.broadcast %cst_69 : f32 to vector<64x1xf32>
    %147 = arith.divf %145, %146 : vector<64x1xf32>
    %148 = vector.broadcast %140 : vector<64x1xf32> to vector<64x32xf32>
    %149 = arith.subf %136, %148 : vector<64x32xf32>
    %cst_70 = arith.constant 9.99999974E-6 : f32
    %150 = vector.broadcast %cst_70 : f32 to vector<64x1xf32>
    %151 = arith.addf %147, %150 : vector<64x1xf32>
    %152 = math.rsqrt %151 : vector<64x1xf32>
    %153 = vector.broadcast %152 : vector<64x1xf32> to vector<64x32xf32>
    %154 = arith.mulf %149, %153 : vector<64x32xf32>
    %c0_71 = arith.constant 0 : index
    %c0_72 = arith.constant 0 : index
    %155 = vector.load %arg13[%c0_71, %c0_72] : memref<1x32xf32, #tpu.memory_space<vmem>>, vector<1x32xf32>
    %156 = vector.broadcast %155 : vector<1x32xf32> to vector<64x32xf32>
    %157 = arith.mulf %154, %156 : vector<64x32xf32>
    %c0_73 = arith.constant 0 : index
    %c0_74 = arith.constant 0 : index
    %158 = vector.load %arg14[%c0_73, %c0_74] : memref<1x32xf32, #tpu.memory_space<vmem>>, vector<1x32xf32>
    %159 = vector.broadcast %158 : vector<1x32xf32> to vector<64x32xf32>
    %160 = arith.addf %157, %159 : vector<64x32xf32>
    %161 = arith.addf %118, %160 : vector<64x32xf32>
    %c0_75 = arith.constant 0 : index
    %c0_76 = arith.constant 0 : index
    %c0_77 = arith.constant 0 : index
    %162 = vector.load %arg15[%c0_75, %c0_76, %c0_77] : memref<1x64x32xf32, #tpu.memory_space<vmem>>, vector<1x64x32xf32>
    %163 = vector.shape_cast %162 : vector<1x64x32xf32> to vector<64x32xf32>
    %164 = vector.shape_cast %161 : vector<64x32xf32> to vector<1x64x32xf32>
    tpu.vector_store %arg15[%c0_75, %c0_76, %c0_77], %164 {strides = array<i32>} : memref<1x64x32xf32, #tpu.memory_space<vmem>>, vector<1x64x32xf32>,
    return
  }
  func.func @transform_0(%arg0: i32) -> (i32, i32, i32) {
    %c0_i32 = arith.constant 0 : i32
    %c0_i32_0 = arith.constant 0 : i32
    %c0_i32_1 = arith.constant 0 : i32
    return %arg0, %c0_i32, %c0_i32_0 : i32, i32, i32
  }
  func.func @transform_1(%arg0: i32) -> (i32, i32, i32) {
    %c0_i32 = arith.constant 0 : i32
    %c0_i32_0 = arith.constant 0 : i32
    %c0_i32_1 = arith.constant 0 : i32
    %c0_i32_2 = arith.constant 0 : i32
    return %c0_i32, %c0_i32_0, %c0_i32_1 : i32, i32, i32
  }
  func.func @transform_2(%arg0: i32) -> (i32, i32) {
    %c0_i32 = arith.constant 0 : i32
    %c0_i32_0 = arith.constant 0 : i32
    %c0_i32_1 = arith.constant 0 : i32
    return %c0_i32, %c0_i32_0 : i32, i32
  }
  func.func @transform_3(%arg0: i32) -> (i32, i32) {
    %c0_i32 = arith.constant 0 : i32
    %c0_i32_0 = arith.constant 0 : i32
    %c0_i32_1 = arith.constant 0 : i32
    return %c0_i32, %c0_i32_0 : i32, i32
  }
  func.func @transform_4(%arg0: i32) -> (i32, i32) {
    %c0_i32 = arith.constant 0 : i32
    %c0_i32_0 = arith.constant 0 : i32
    %c0_i32_1 = arith.constant 0 : i32
    return %c0_i32, %c0_i32_0 : i32, i32
  }
  func.func @transform_5(%arg0: i32) -> (i32, i32) {
    %c0_i32 = arith.constant 0 : i32
    %c0_i32_0 = arith.constant 0 : i32
    %c0_i32_1 = arith.constant 0 : i32
    return %c0_i32, %c0_i32_0 : i32, i32
  }
  func.func @transform_6(%arg0: i32) -> (i32, i32) {
    %c0_i32 = arith.constant 0 : i32
    %c0_i32_0 = arith.constant 0 : i32
    %c0_i32_1 = arith.constant 0 : i32
    return %c0_i32, %c0_i32_0 : i32, i32
  }
  func.func @transform_7(%arg0: i32) -> (i32, i32) {
    %c0_i32 = arith.constant 0 : i32
    %c0_i32_0 = arith.constant 0 : i32
    %c0_i32_1 = arith.constant 0 : i32
    return %c0_i32, %c0_i32_0 : i32, i32
  }
  func.func @transform_8(%arg0: i32) -> (i32, i32) {
    %c0_i32 = arith.constant 0 : i32
    %c0_i32_0 = arith.constant 0 : i32
    %c0_i32_1 = arith.constant 0 : i32
    return %c0_i32, %c0_i32_0 : i32, i32
  }
  func.func @transform_9(%arg0: i32) -> (i32, i32) {
    %c0_i32 = arith.constant 0 : i32
    %c0_i32_0 = arith.constant 0 : i32
    %c0_i32_1 = arith.constant 0 : i32
    return %c0_i32, %c0_i32_0 : i32, i32
  }
  func.func @transform_10(%arg0: i32) -> (i32, i32) {
    %c0_i32 = arith.constant 0 : i32
    %c0_i32_0 = arith.constant 0 : i32
    %c0_i32_1 = arith.constant 0 : i32
    return %c0_i32, %c0_i32_0 : i32, i32
  }
  func.func @transform_11(%arg0: i32) -> (i32, i32) {
    %c0_i32 = arith.constant 0 : i32
    %c0_i32_0 = arith.constant 0 : i32
    %c0_i32_1 = arith.constant 0 : i32
    return %c0_i32, %c0_i32_0 : i32, i32
  }
  func.func @transform_12(%arg0: i32) -> (i32, i32) {
    %c0_i32 = arith.constant 0 : i32
    %c0_i32_0 = arith.constant 0 : i32
    %c0_i32_1 = arith.constant 0 : i32
    return %c0_i32, %c0_i32_0 : i32, i32
  }
  func.func @transform_13(%arg0: i32) -> (i32, i32) {
    %c0_i32 = arith.constant 0 : i32
    %c0_i32_0 = arith.constant 0 : i32
    %c0_i32_1 = arith.constant 0 : i32
    return %c0_i32, %c0_i32_0 : i32, i32
  }
  func.func @transform_14(%arg0: i32) -> (i32, i32, i32) {
    %c0_i32 = arith.constant 0 : i32
    %c0_i32_0 = arith.constant 0 : i32
    %c0_i32_1 = arith.constant 0 : i32
    return %arg0, %c0_i32, %c0_i32_0 : i32, i32, i32
  }
}

</mosaic_0001>

<llo_original>
// kernel: _lambda_.1
$region0: #{_lambda_.1}
  #allocation0 [shape = 'u32[]', space=smem, size = 0x4, offset = 0x4, fixed_abs, tag = 'smem constant byte address 0x4 - core index']
  #allocation1 [shape = 'u32[144,128]{1,0:T(1,128)}', space=vmem, size = 0x12000, scoped, tag = 'internal scratch']
  #allocation2 [shape = 'f32[64,32]{1,0:T(8,128)}', space=vmem, size = 0x8000, scoped, tag = 'scratch operand']
  %s0 = inlined_call_operand.vmem [shape: f32[2,64,32], index: 0, kind: input, shape index: {}]
  %s1 = inlined_call_operand.hbm [shape: f32[4,64,64], index: 1, kind: input, shape index: {}]
  %s2 = inlined_call_operand.vmem [shape: f32[32,96], index: 2, kind: input, shape index: {}]
  %s3 = inlined_call_operand.vmem [shape: f32[1,96], index: 3, kind: input, shape index: {}]
  %s4 = inlined_call_operand.vmem [shape: f32[32,32], index: 4, kind: input, shape index: {}]
  %s5 = inlined_call_operand.vmem [shape: f32[1,32], index: 5, kind: input, shape index: {}, may-alias: {5,7,11,13}]
  %s6 = inlined_call_operand.vmem [shape: f32[1,32], index: 6, kind: input, shape index: {}, may-alias: {6,12}]
  %s7 = inlined_call_operand.vmem [shape: f32[1,32], index: 7, kind: input, shape index: {}, may-alias: {5,7,11,13}]
  %s8 = inlined_call_operand.vmem [shape: f32[32,128], index: 8, kind: input, shape index: {}]
  %s9 = inlined_call_operand.vmem [shape: f32[1,128], index: 9, kind: input, shape index: {}]
  %s10 = inlined_call_operand.vmem [shape: f32[128,32], index: 10, kind: input, shape index: {}]
  %s11 = inlined_call_operand.vmem [shape: f32[1,32], index: 11, kind: input, shape index: {}, may-alias: {5,7,11,13}]
  %s12 = inlined_call_operand.vmem [shape: f32[1,32], index: 12, kind: input, shape index: {}, may-alias: {6,12}]
  %s13 = inlined_call_operand.vmem [shape: f32[1,32], index: 13, kind: input, shape index: {}, may-alias: {5,7,11,13}]
  %s14 = inlined_call_operand.vmem [shape: f32[2,64,32], index: 14, kind: output, shape index: {}]
  %s15 = sld [smem:[#allocation0]]
  $region93: #{_lambda_.1} parent=0
    _
  %s17 = ssub.s32 1, %s15
  %s18 = scalar_select 0, %s17, %s15
  $region1: #{_lambda_.1} parent=0
    #allocation3 [shape = 'u8[131072]{0}', space=vmem, size = 0x20000, scoped, tag = 'input window, operand 1, single buffered']
    #allocation4 [shape = 's32[2]{0}', space=sflag, size = 0x8, scoped, tag = 'scoped memory for _lambda_.1']
    %19 = vsyncpa [#allocation4], 0
    loop: start=0, step=1, limit=4
    $region2: #{_lambda_.1} parent=1 // loop_pre_header
      _
    $region3: #{_lambda_.1} parent=1 // loop_header
      %s21 = sphi 0, %s25
      %p22 = scmp.ge.s32.totalorder %s21, 4
      %s31 = sphi 0, %s33
      %s34 = sphi 0, %s31
      %s35 = sphi 0, %s34
      %s51 = sphi 0, %s35
      %s55 = sphi 0, %s55
      %s57 = sphi 0, %s55
      %s58 = sphi 0, %s57
      %s72 = sphi 0, %s58
      %s76 = sphi 0, %s76
      %s78 = sphi 0, %s76
      %s79 = sphi 0, %s78
      %s93 = sphi 0, %s79
      %s97 = sphi 0, %s97
      %s99 = sphi 0, %s97
      %s100 = sphi 0, %s99
      %s114 = sphi 0, %s100
      %s118 = sphi 0, %s118
      %s120 = sphi 0, %s118
      %s121 = sphi 0, %s120
      %s135 = sphi 0, %s121
      %s139 = sphi 0, %s139
      %s141 = sphi 0, %s139
      %s142 = sphi 0, %s141
      %s156 = sphi 0, %s142
      %s160 = sphi 0, %s160
      %s162 = sphi 0, %s160
      %s163 = sphi 0, %s162
      %s177 = sphi 0, %s163
      %s181 = sphi 0, %s181
      %s183 = sphi 0, %s181
      %s184 = sphi 0, %s183
      %s198 = sphi 0, %s184
      %s202 = sphi 0, %s202
      %s204 = sphi 0, %s202
      %s205 = sphi 0, %s204
      %s219 = sphi 0, %s205
      %s223 = sphi 0, %s223
      %s225 = sphi 0, %s223
      %s226 = sphi 0, %s225
      %s240 = sphi 0, %s226
      %s244 = sphi 0, %s244
      %s246 = sphi 0, %s244
      %s247 = sphi 0, %s246
      %s261 = sphi 0, %s247
      %s265 = sphi 0, %s265
      %s267 = sphi 0, %s265
      %s268 = sphi 0, %s267
      %s282 = sphi 0, %s268
      %s286 = sphi 0, %s286
      %s288 = sphi 0, %s286
      %s289 = sphi 0, %s288
      %s303 = sphi 0, %s289
      %s307 = sphi 0, %s307
      %s309 = sphi 0, %s307
      %s310 = sphi 0, %s309
      %s324 = sphi 0, %s310
      %s330 = sphi 0, %s332
      %s333 = sphi 0, %s330
      %s334 = sphi 0, %s333
      %s350 = sphi 0, %s334
    $region4: #{_lambda_.1} parent=1 // loop_header_branch
      %24 = sbr.rel (%p22) target = $region8
    $region5: #{_lambda_.1} parent=1 // loop_body
      %s26 = ssub.s32 %s21, 1
      %s27 = ssub.s32 %s21, 2
      %s28 = sadd.s32 %s21, 1
      %s29 = ssub.s32 %s21, %s28
      %p30 = scmp.eq.s32.totalorder %s29, 0
      %s32 = sadd.s32 %s31, 1
      %s33 = scalar_select %p30, %s31, %s32
      %p36 = pneg %p30
      %p37 = scmp.eq.s32.totalorder %s21, 1
      %p38 = por %p36, %p37
      %p39 = scmp.ne.s32.totalorder %s31, %s34
      %p40 = scmp.eq.s32.totalorder %s21, 0
      %p41 = por %p39, %p40
      %p42 = scmp.ne.s32.totalorder %s31, %s34
      %p43 = scmp.eq.s32.totalorder %s26, 1
      %p44 = por %p42, %p43
      %p45 = scmp.ne.s32.totalorder %s34, %s35
      %p46 = scmp.eq.s32.totalorder %s26, 0
      %p47 = por %p45, %p46
      %p48 = scmp.ne.s32.totalorder %s34, %s35
      %p49 = scmp.eq.s32.totalorder %s27, 1
      %p50 = por %p48, %p49
      %p52 = scmp.ne.s32.totalorder %s35, %s51
      %p53 = scmp.eq.s32.totalorder %s27, 0
      %p54 = por %p52, %p53
      %s56 = sadd.s32 %s55, 1
      %p59 = scmp.eq.s32.totalorder %s21, 1
      %p60 = scmp.ne.s32.totalorder %s55, %s57
      %p61 = scmp.eq.s32.totalorder %s21, 0
      %p62 = por %p60, %p61
      %p63 = scmp.ne.s32.totalorder %s55, %s57
      %p64 = scmp.eq.s32.totalorder %s26, 1
      %p65 = por %p63, %p64
      %p66 = scmp.ne.s32.totalorder %s57, %s58
      %p67 = scmp.eq.s32.totalorder %s26, 0
      %p68 = por %p66, %p67
      %p69 = scmp.ne.s32.totalorder %s57, %s58
      %p70 = scmp.eq.s32.totalorder %s27, 1
      %p71 = por %p69, %p70
      %p73 = scmp.ne.s32.totalorder %s58, %s72
      %p74 = scmp.eq.s32.totalorder %s27, 0
      %p75 = por %p73, %p74
      %s77 = sadd.s32 %s76, 1
      %p80 = scmp.eq.s32.totalorder %s21, 1
      %p81 = scmp.ne.s32.totalorder %s76, %s78
      %p82 = scmp.eq.s32.totalorder %s21, 0
      %p83 = por %p81, %p82
      %p84 = scmp.ne.s32.totalorder %s76, %s78
      %p85 = scmp.eq.s32.totalorder %s26, 1
      %p86 = por %p84, %p85
      %p87 = scmp.ne.s32.totalorder %s78, %s79
      %p88 = scmp.eq.s32.totalorder %s26, 0
      %p89 = por %p87, %p88
      %p90 = scmp.ne.s32.totalorder %s78, %s79
      %p91 = scmp.eq.s32.totalorder %s27, 1
      %p92 = por %p90, %p91
      %p94 = scmp.ne.s32.totalorder %s79, %s93
      %p95 = scmp.eq.s32.totalorder %s27, 0
      %p96 = por %p94, %p95
      %s98 = sadd.s32 %s97, 1
      %p101 = scmp.eq.s32.totalorder %s21, 1
      %p102 = scmp.ne.s32.totalorder %s97, %s99
      %p103 = scmp.eq.s32.totalorder %s21, 0
      %p104 = por %p102, %p103
      %p105 = scmp.ne.s32.totalorder %s97, %s99
      %p106 = scmp.eq.s32.totalorder %s26, 1
      %p107 = por %p105, %p106
      %p108 = scmp.ne.s32.totalorder %s99, %s100
      %p109 = scmp.eq.s32.totalorder %s26, 0
      %p110 = por %p108, %p109
      %p111 = scmp.ne.s32.totalorder %s99, %s100
      %p112 = scmp.eq.s32.totalorder %s27, 1
      %p113 = por %p111, %p112
      %p115 = scmp.ne.s32.totalorder %s100, %s114
      %p116 = scmp.eq.s32.totalorder %s27, 0
      %p117 = por %p115, %p116
      %s119 = sadd.s32 %s118, 1
      %p122 = scmp.eq.s32.totalorder %s21, 1
      %p123 = scmp.ne.s32.totalorder %s118, %s120
      %p124 = scmp.eq.s32.totalorder %s21, 0
      %p125 = por %p123, %p124
      %p126 = scmp.ne.s32.totalorder %s118, %s120
      %p127 = scmp.eq.s32.totalorder %s26, 1
      %p128 = por %p126, %p127
      %p129 = scmp.ne.s32.totalorder %s120, %s121
      %p130 = scmp.eq.s32.totalorder %s26, 0
      %p131 = por %p129, %p130
      %p132 = scmp.ne.s32.totalorder %s120, %s121
      %p133 = scmp.eq.s32.totalorder %s27, 1
      %p134 = por %p132, %p133
      %p136 = scmp.ne.s32.totalorder %s121, %s135
      %p137 = scmp.eq.s32.totalorder %s27, 0
      %p138 = por %p136, %p137
      %s140 = sadd.s32 %s139, 1
      %p143 = scmp.eq.s32.totalorder %s21, 1
      %p144 = scmp.ne.s32.totalorder %s139, %s141
      %p145 = scmp.eq.s32.totalorder %s21, 0
      %p146 = por %p144, %p145
      %p147 = scmp.ne.s32.totalorder %s139, %s141
      %p148 = scmp.eq.s32.totalorder %s26, 1
      %p149 = por %p147, %p148
      %p150 = scmp.ne.s32.totalorder %s141, %s142
      %p151 = scmp.eq.s32.totalorder %s26, 0
      %p152 = por %p150, %p151
      %p153 = scmp.ne.s32.totalorder %s141, %s142
      %p154 = scmp.eq.s32.totalorder %s27, 1
      %p155 = por %p153, %p154
      %p157 = scmp.ne.s32.totalorder %s142, %s156
      %p158 = scmp.eq.s32.totalorder %s27, 0
      %p159 = por %p157, %p158
      %s161 = sadd.s32 %s160, 1
      %p164 = scmp.eq.s32.totalorder %s21, 1
      %p165 = scmp.ne.s32.totalorder %s160, %s162
      %p166 = scmp.eq.s32.totalorder %s21, 0
      %p167 = por %p165, %p166
      %p168 = scmp.ne.s32.totalorder %s160, %s162
      %p169 = scmp.eq.s32.totalorder %s26, 1
      %p170 = por %p168, %p169
      %p171 = scmp.ne.s32.totalorder %s162, %s163
      %p172 = scmp.eq.s32.totalorder %s26, 0
      %p173 = por %p171, %p172
      %p174 = scmp.ne.s32.totalorder %s162, %s163
      %p175 = scmp.eq.s32.totalorder %s27, 1
      %p176 = por %p174, %p175
      %p178 = scmp.ne.s32.totalorder %s163, %s177
      %p179 = scmp.eq.s32.totalorder %s27, 0
      %p180 = por %p178, %p179
      %s182 = sadd.s32 %s181, 1
      %p185 = scmp.eq.s32.totalorder %s21, 1
      %p186 = scmp.ne.s32.totalorder %s181, %s183
      %p187 = scmp.eq.s32.totalorder %s21, 0
      %p188 = por %p186, %p187
      %p189 = scmp.ne.s32.totalorder %s181, %s183
      %p190 = scmp.eq.s32.totalorder %s26, 1
      %p191 = por %p189, %p190
      %p192 = scmp.ne.s32.totalorder %s183, %s184
      %p193 = scmp.eq.s32.totalorder %s26, 0
      %p194 = por %p192, %p193
      %p195 = scmp.ne.s32.totalorder %s183, %s184
      %p196 = scmp.eq.s32.totalorder %s27, 1
      %p197 = por %p195, %p196
      %p199 = scmp.ne.s32.totalorder %s184, %s198
      %p200 = scmp.eq.s32.totalorder %s27, 0
      %p201 = por %p199, %p200
      %s203 = sadd.s32 %s202, 1
      %p206 = scmp.eq.s32.totalorder %s21, 1
      %p207 = scmp.ne.s32.totalorder %s202, %s204
      %p208 = scmp.eq.s32.totalorder %s21, 0
      %p209 = por %p207, %p208
      %p210 = scmp.ne.s32.totalorder %s202, %s204
      %p211 = scmp.eq.s32.totalorder %s26, 1
      %p212 = por %p210, %p211
      %p213 = scmp.ne.s32.totalorder %s204, %s205
      %p214 = scmp.eq.s32.totalorder %s26, 0
      %p215 = por %p213, %p214
      %p216 = scmp.ne.s32.totalorder %s204, %s205
      %p217 = scmp.eq.s32.totalorder %s27, 1
      %p218 = por %p216, %p217
      %p220 = scmp.ne.s32.totalorder %s205, %s219
      %p221 = scmp.eq.s32.totalorder %s27, 0
      %p222 = por %p220, %p221
      %s224 = sadd.s32 %s223, 1
      %p227 = scmp.eq.s32.totalorder %s21, 1
      %p228 = scmp.ne.s32.totalorder %s223, %s225
      %p229 = scmp.eq.s32.totalorder %s21, 0
      %p230 = por %p228, %p229
      %p231 = scmp.ne.s32.totalorder %s223, %s225
      %p232 = scmp.eq.s32.totalorder %s26, 1
      %p233 = por %p231, %p232
      %p234 = scmp.ne.s32.totalorder %s225, %s226
      %p235 = scmp.eq.s32.totalorder %s26, 0
      %p236 = por %p234, %p235
      %p237 = scmp.ne.s32.totalorder %s225, %s226
      %p238 = scmp.eq.s32.totalorder %s27, 1
      %p239 = por %p237, %p238
      %p241 = scmp.ne.s32.totalorder %s226, %s240
      %p242 = scmp.eq.s32.totalorder %s27, 0
      %p243 = por %p241, %p242
      %s245 = sadd.s32 %s244, 1
      %p248 = scmp.eq.s32.totalorder %s21, 1
      %p249 = scmp.ne.s32.totalorder %s244, %s246
      %p250 = scmp.eq.s32.totalorder %s21, 0
      %p251 = por %p249, %p250
      %p252 = scmp.ne.s32.totalorder %s244, %s246
      %p253 = scmp.eq.s32.totalorder %s26, 1
      %p254 = por %p252, %p253
      %p255 = scmp.ne.s32.totalorder %s246, %s247
      %p256 = scmp.eq.s32.totalorder %s26, 0
      %p257 = por %p255, %p256
      %p258 = scmp.ne.s32.totalorder %s246, %s247
      %p259 = scmp.eq.s32.totalorder %s27, 1
      %p260 = por %p258, %p259
      %p262 = scmp.ne.s32.totalorder %s247, %s261
      %p263 = scmp.eq.s32.totalorder %s27, 0
      %p264 = por %p262, %p263
      %s266 = sadd.s32 %s265, 1
      %p269 = scmp.eq.s32.totalorder %s21, 1
      %p270 = scmp.ne.s32.totalorder %s265, %s267
      %p271 = scmp.eq.s32.totalorder %s21, 0
      %p272 = por %p270, %p271
      %p273 = scmp.ne.s32.totalorder %s265, %s267
      %p274 = scmp.eq.s32.totalorder %s26, 1
      %p275 = por %p273, %p274
      %p276 = scmp.ne.s32.totalorder %s267, %s268
      %p277 = scmp.eq.s32.totalorder %s26, 0
      %p278 = por %p276, %p277
      %p279 = scmp.ne.s32.totalorder %s267, %s268
      %p280 = scmp.eq.s32.totalorder %s27, 1
      %p281 = por %p279, %p280
      %p283 = scmp.ne.s32.totalorder %s268, %s282
      %p284 = scmp.eq.s32.totalorder %s27, 0
      %p285 = por %p283, %p284
      %s287 = sadd.s32 %s286, 1
      %p290 = scmp.eq.s32.totalorder %s21, 1
      %p291 = scmp.ne.s32.totalorder %s286, %s288
      %p292 = scmp.eq.s32.totalorder %s21, 0
      %p293 = por %p291, %p292
      %p294 = scmp.ne.s32.totalorder %s286, %s288
      %p295 = scmp.eq.s32.totalorder %s26, 1
      %p296 = por %p294, %p295
      %p297 = scmp.ne.s32.totalorder %s288, %s289
      %p298 = scmp.eq.s32.totalorder %s26, 0
      %p299 = por %p297, %p298
      %p300 = scmp.ne.s32.totalorder %s288, %s289
      %p301 = scmp.eq.s32.totalorder %s27, 1
      %p302 = por %p300, %p301
      %p304 = scmp.ne.s32.totalorder %s289, %s303
      %p305 = scmp.eq.s32.totalorder %s27, 0
      %p306 = por %p304, %p305
      %s308 = sadd.s32 %s307, 1
      %p311 = scmp.eq.s32.totalorder %s21, 1
      %p312 = scmp.ne.s32.totalorder %s307, %s309
      %p313 = scmp.eq.s32.totalorder %s21, 0
      %p314 = por %p312, %p313
      %p315 = scmp.ne.s32.totalorder %s307, %s309
      %p316 = scmp.eq.s32.totalorder %s26, 1
      %p317 = por %p315, %p316
      %p318 = scmp.ne.s32.totalorder %s309, %s310
      %p319 = scmp.eq.s32.totalorder %s26, 0
      %p320 = por %p318, %p319
      %p321 = scmp.ne.s32.totalorder %s309, %s310
      %p322 = scmp.eq.s32.totalorder %s27, 1
      %p323 = por %p321, %p322
      %p325 = scmp.ne.s32.totalorder %s310, %s324
      %p326 = scmp.eq.s32.totalorder %s27, 0
      %p327 = por %p325, %p326
      %s328 = ssub.s32 %s21, %s28
      %p329 = scmp.eq.s32.totalorder %s328, 0
      %s331 = sadd.s32 %s330, 1
      %s332 = scalar_select %p329, %s330, %s331
      %p335 = pneg %p329
      %p336 = scmp.eq.s32.totalorder %s21, 1
      %p337 = por %p335, %p336
      %p338 = scmp.ne.s32.totalorder %s330, %s333
      %p339 = scmp.eq.s32.totalorder %s21, 0
      %p340 = por %p338, %p339
      %p341 = scmp.ne.s32.totalorder %s330, %s333
      %p342 = scmp.eq.s32.totalorder %s26, 1
      %p343 = por %p341, %p342
      %p344 = scmp.ne.s32.totalorder %s333, %s334
      %p345 = scmp.eq.s32.totalorder %s26, 0
      %p346 = por %p344, %p345
      %p347 = scmp.ne.s32.totalorder %s333, %s334
      %p348 = scmp.eq.s32.totalorder %s27, 1
      %p349 = por %p347, %p348
      %p351 = scmp.ne.s32.totalorder %s334, %s350
      %p352 = scmp.eq.s32.totalorder %s27, 0
      %p353 = por %p351, %p352
      %p354 = scmp.le.s32.totalorder 1, %s21
      %p355 = scmp.lt.s32.totalorder %s21, 3
      %p356 = pnand %p354, %p355
      %p357 = pneg %p356
      // Predicated region
      $region9: #{_lambda_.1} parent=5 // pred_check
        _
      $region10: #{_lambda_.1} parent=5 // pred_check_branch
        %359 = sbr.rel (%p356) target = $region12
      $region11: #{_lambda_.1} parent=5 // pred_region
        %s360 = ssub.s32 %s21, 1
        // Predicated region
        $region13: #{_lambda_.1} parent=11 // pred_check
          %p361 = pneg %p68
        $region14: #{_lambda_.1} parent=11 // pred_check_branch
          %363 = sbr.rel (%p361) target = $region16
        $region15: #{_lambda_.1} parent=11 // pred_region
          %s365 = ssub.s32 4096, 4096
          %366 = vsyncadd [#allocation4], %s365
          %s367 = sshll.u32 [#allocation3], 4
          %s368 = int_to_ptr.vmem [resolvable:$true] %s367
          %373 = dma.hbm_to_vmem [thread:$0]  %s1, 4096, %s368, [#allocation4], 128, 128, 8
        $region16: #{_lambda_.1} parent=11 // pred_fallthru
          _
        // Predicated region
        $region17: #{_lambda_.1} parent=11 // pred_check
          %p374 = pneg %p89
        $region18: #{_lambda_.1} parent=11 // pred_check_branch
          %376 = sbr.rel (%p374) target = $region20
        $region19: #{_lambda_.1} parent=11 // pred_region
          _
        $region20: #{_lambda_.1} parent=11 // pred_fallthru
          _
        // Predicated region
        $region21: #{_lambda_.1} parent=11 // pred_check
          %p377 = pneg %p110
        $region22: #{_lambda_.1} parent=11 // pred_check_branch
          %379 = sbr.rel (%p377) target = $region24
        $region23: #{_lambda_.1} parent=11 // pred_region
          _
        $region24: #{_lambda_.1} parent=11 // pred_fallthru
          _
        // Predicated region
        $region25: #{_lambda_.1} parent=11 // pred_check
          %p380 = pneg %p131
        $region26: #{_lambda_.1} parent=11 // pred_check_branch
          %382 = sbr.rel (%p380) target = $region28
        $region27: #{_lambda_.1} parent=11 // pred_region
          _
        $region28: #{_lambda_.1} parent=11 // pred_fallthru
          _
        // Predicated region
        $region29: #{_lambda_.1} parent=11 // pred_check
          %p383 = pneg %p152
        $region30: #{_lambda_.1} parent=11 // pred_check_branch
          %385 = sbr.rel (%p383) target = $region32
        $region31: #{_lambda_.1} parent=11 // pred_region
          _
        $region32: #{_lambda_.1} parent=11 // pred_fallthru
          _
        // Predicated region
        $region33: #{_lambda_.1} parent=11 // pred_check
          %p386 = pneg %p173
        $region34: #{_lambda_.1} parent=11 // pred_check_branch
          %388 = sbr.rel (%p386) target = $region36
        $region35: #{_lambda_.1} parent=11 // pred_region
          _
        $region36: #{_lambda_.1} parent=11 // pred_fallthru
          _
        // Predicated region
        $region37: #{_lambda_.1} parent=11 // pred_check
          %p389 = pneg %p194
        $region38: #{_lambda_.1} parent=11 // pred_check_branch
          %391 = sbr.rel (%p389) target = $region40
        $region39: #{_lambda_.1} parent=11 // pred_region
          _
        $region40: #{_lambda_.1} parent=11 // pred_fallthru
          _
        // Predicated region
        $region41: #{_lambda_.1} parent=11 // pred_check
          %p392 = pneg %p215
        $region42: #{_lambda_.1} parent=11 // pred_check_branch
          %394 = sbr.rel (%p392) target = $region44
        $region43: #{_lambda_.1} parent=11 // pred_region
          _
        $region44: #{_lambda_.1} parent=11 // pred_fallthru
          _
        // Predicated region
        $region45: #{_lambda_.1} parent=11 // pred_check
          %p395 = pneg %p236
        $region46: #{_lambda_.1} parent=11 // pred_check_branch
          %397 = sbr.rel (%p395) target = $region48
        $region47: #{_lambda_.1} parent=11 // pred_region
          _
        $region48: #{_lambda_.1} parent=11 // pred_fallthru
          _
        // Predicated region
        $region49: #{_lambda_.1} parent=11 // pred_check
          %p398 = pneg %p257
        $region50: #{_lambda_.1} parent=11 // pred_check_branch
          %400 = sbr.rel (%p398) target = $region52
        $region51: #{_lambda_.1} parent=11 // pred_region
          _
        $region52: #{_lambda_.1} parent=11 // pred_fallthru
          _
        // Predicated region
        $region53: #{_lambda_.1} parent=11 // pred_check
          %p401 = pneg %p278
        $region54: #{_lambda_.1} parent=11 // pred_check_branch
          %403 = sbr.rel (%p401) target = $region56
        $region55: #{_lambda_.1} parent=11 // pred_region
          _
        $region56: #{_lambda_.1} parent=11 // pred_fallthru
          _
        // Predicated region
        $region57: #{_lambda_.1} parent=11 // pred_check
          %p404 = pneg %p299
        $region58: #{_lambda_.1} parent=11 // pred_check_branch
          %406 = sbr.rel (%p404) target = $region60
        $region59: #{_lambda_.1} parent=11 // pred_region
          _
        $region60: #{_lambda_.1} parent=11 // pred_fallthru
          _
        // Predicated region
        $region61: #{_lambda_.1} parent=11 // pred_check
          %p407 = pneg %p320
        $region62: #{_lambda_.1} parent=11 // pred_check_branch
          %409 = sbr.rel (%p407) target = $region64
        $region63: #{_lambda_.1} parent=11 // pred_region
          _
        $region64: #{_lambda_.1} parent=11 // pred_fallthru
          _
      $region12: #{_lambda_.1} parent=5 // pred_fallthru
        _
      %p410 = scmp.lt.s32.totalorder %s21, 2
      // Predicated region
      $region65: #{_lambda_.1} parent=5 // pred_check
        %p411 = pneg %p410
      $region66: #{_lambda_.1} parent=5 // pred_check_branch
        %413 = sbr.rel (%p411) target = $region68
      $region67: #{_lambda_.1} parent=5 // pred_region
        // Predicated region
        $region69: #{_lambda_.1} parent=67 // pred_check
          %p414 = pneg %p41
        $region70: #{_lambda_.1} parent=67 // pred_check_branch
          %416 = sbr.rel (%p414) target = $region72
        $region71: #{_lambda_.1} parent=67 // pred_region
          %p417 = scmp.lt.s32.totalorder %s21, 1
          %s418 = scalar_select %p417, %s21, 1
          %s419 = smul.addr %s418, 8
          %s420 = smul.addr %s419, 8
          %s421 = scalar_lea.vmem %s0, %s420
        $region72: #{_lambda_.1} parent=67 // pred_fallthru
          _
      $region68: #{_lambda_.1} parent=5 // pred_fallthru
        _
      %p422 = scmp.le.s32.totalorder 1, %s21
      %p423 = scmp.lt.s32.totalorder %s21, 3
      %p424 = pnand %p422, %p423
      %p425 = pneg %p424
      // Predicated region
      $region73: #{_lambda_.1} parent=5 // pred_check
        _
      $region74: #{_lambda_.1} parent=5 // pred_check_branch
        %427 = sbr.rel (%p424) target = $region76
      $region75: #{_lambda_.1} parent=5 // pred_region
        %s428 = ssub.s32 %s21, 1
        // Predicated region
        $region77: #{_lambda_.1} parent=75 // pred_check
          %p429 = pneg %p68
        $region78: #{_lambda_.1} parent=75 // pred_check_branch
          %431 = sbr.rel (%p429) target = $region80
        $region79: #{_lambda_.1} parent=75 // pred_region
          %432 = dma.done [#allocation4], 4096
        $region80: #{_lambda_.1} parent=75 // pred_fallthru
          _
        %p433 = scmp.lt.s32.totalorder %s26, 1
        %s434 = scalar_select %p433, %s26, 1
        %s435 = smul.addr %s434, 8
        %s436 = smul.addr %s435, 8
        %s437 = scalar_lea.vmem %s0, %s436
        %p438 = pneg %p47
        %p439 = pneg %p44
        %p440 = pneg %p68
        %p441 = pneg %p65
        %p442 = pneg %p89
        %p443 = pneg %p86
        %p444 = pneg %p110
        %p445 = pneg %p107
        %p446 = pneg %p131
        %p447 = pneg %p128
        %p448 = pneg %p152
        %p449 = pneg %p149
        %p450 = pneg %p173
        %p451 = pneg %p170
        %p452 = pneg %p194
        %p453 = pneg %p191
        %p454 = pneg %p215
        %p455 = pneg %p212
        %p456 = pneg %p236
        %p457 = pneg %p233
        %p458 = pneg %p257
        %p459 = pneg %p254
        %p460 = pneg %p278
        %p461 = pneg %p275
        %p462 = pneg %p299
        %p463 = pneg %p296
        %p464 = pneg %p320
        %p465 = pneg %p317
        %p466 = pneg %p346
        %p467 = pneg %p343
        %p468 = scmp.lt.s32.totalorder %s26, 1
        %s469 = scalar_select %p468, %s26, 1
        %s470 = smul.addr %s469, 8
        %s471 = smul.addr %s470, 8
        %s472 = scalar_lea.vmem %s14, %s471
        %p473 = scmp.lt.s32.totalorder %s26, 1
        %s474 = scalar_select %p473, %s26, 1
        %s475 = smul.addr %s474, 8
        %s476 = smul.addr %s475, 8
        %s477 = scalar_lea.vmem %s0, %s476
        %p478 = scmp.lt.s32.totalorder %s26, 1
        %s479 = scalar_select %p478, %s26, 1
        %s480 = smul.addr %s479, 8
        %s481 = smul.addr %s480, 8
        %s482 = scalar_lea.vmem %s14, %s481
        %v483 = vld [vmem:[%s477] sm:$0xff]
        %v484 = vld [vmem:[%s477 + $0x8] sm:$0xff]
        %v485 = vld [vmem:[%s477 + $0x10] sm:$0xff]
        %v486 = vld [vmem:[%s477 + $0x18] sm:$0xff]
        %v487 = vld [vmem:[%s477 + $0x20] sm:$0xff]
        %v488 = vld [vmem:[%s477 + $0x28] sm:$0xff]
        %v489 = vld [vmem:[%s477 + $0x30] sm:$0xff]
        %v490 = vld [vmem:[%s477 + $0x38] sm:$0xff]
        %v491 = vld [vmem:[%s2] sm:$0xff]
        %v492 = vld [vmem:[%s2 + $0x8] sm:$0xff]
        %v493 = vld [vmem:[%s2 + $0x10] sm:$0xff]
        %v494 = vld [vmem:[%s2 + $0x18] sm:$0xff]
        %v495 = vld [vmem:[%s3] sm:$0x1]
        %v497 = vlaneseq
        %v498 = vshrl.u32 %v497, 7
        %v499 = vsub.s32 0, %v498
        %v500 = vrot.slane %v495, %v499
        %vm502 = vcmask 261120
        %v504 = vsel %vm502, %v483, 0
        %v507 = vsel %vm502, %v484, 0
        %v510 = vsel %vm502, %v485, 0
        %v513 = vsel %vm502, %v486, 0
        %v516 = vsel %vm502, %v487, 0
        %v519 = vsel %vm502, %v488, 0
        %v522 = vsel %vm502, %v489, 0
        %v525 = vsel %vm502, %v490, 0
        %527 = vmatprep.subr.mxu0 0.0
        %528 = vmatpush1.msra.mxu0 %v491
        %529 = vmatprep.subr.mxu0 0.0
        %530 = vmatpush1.msra.mxu0 %v492
        %531 = vmatprep.subr.mxu0 0.0
        %532 = vmatpush1.msra.mxu0 %v493
        %533 = vmatprep.subr.mxu0 0.0
        %534 = vmatpush1.msra.mxu0 %v494
        %535 = vmatprep.subr.mxu0 0.0
        %536 = vmatpush1.msra.mxu0 0.0
        %537 = vmatprep.subr.mxu0 0.0
        %538 = vmatpush1.msra.mxu0 0.0
        %539 = vmatprep.subr.mxu0 0.0
        %540 = vmatpush1.msra.mxu0 0.0
        %541 = vmatprep.subr.mxu0 0.0
        %542 = vmatpush1.msra.mxu0 0.0
        %543 = vmatprep.subr.mxu0 0.0
        %544 = vmatpush1.msra.mxu0 0.0
        %545 = vmatprep.subr.mxu0 0.0
        %546 = vmatpush1.msra.mxu0 0.0
        %547 = vmatprep.subr.mxu0 0.0
        %548 = vmatpush1.msra.mxu0 0.0
        %549 = vmatprep.subr.mxu0 0.0
        %550 = vmatpush1.msra.mxu0 0.0
        %551 = vmatprep.subr.mxu0 0.0
        %552 = vmatpush1.msra.mxu0 0.0
        %553 = vmatprep.subr.mxu0 0.0
        %554 = vmatpush1.msra.mxu0 0.0
        %555 = vmatprep.subr.mxu0 0.0
        %556 = vmatpush1.msra.mxu0 0.0
        %557 = vmatprep.subr.mxu0 0.0
        %558 = vmatpush1.msra.mxu0 0.0
        %559 = vmatprep.subr.mxu0 0.0
        %560 = vmatpush1.msra.mxu0 0.0
        %561 = vmatprep.subr.mxu0 0.0
        %562 = vmatpush1.msra.mxu0 0.0
        %563 = vmatprep.subr.mxu0 0.0
        %564 = vmatpush1.msra.mxu0 0.0
        %565 = vmatprep.subr.mxu0 0.0
        %566 = vmatpush1.msra.mxu0 0.0
        %567 = vmatprep.subr.mxu0 0.0
        %568 = vmatpush1.msra.mxu0 0.0
        %569 = vmatprep.subr.mxu0 0.0
        %570 = vmatpush1.msra.mxu0 0.0
        %571 = vmatprep.subr.mxu0 0.0
        %572 = vmatpush1.msra.mxu0 0.0
        %573 = vmatprep.subr.mxu0 0.0
        %574 = vmatpush1.msra.mxu0 0.0
        %575 = vmatprep.subr.mxu0 0.0
        %576 = vmatpush1.msra.mxu0 0.0
        %577 = vmatprep.subr.mxu0 0.0
        %578 = vmatpush1.msra.mxu0 0.0
        %579 = vmatprep.subr.mxu0 0.0
        %580 = vmatpush1.msra.mxu0 0.0
        %581 = vmatprep.subr.mxu0 0.0
        %582 = vmatpush1.msra.mxu0 0.0
        %583 = vmatprep.subr.mxu0 0.0
        %584 = vmatpush1.msra.mxu0 0.0
        %585 = vmatprep.subr.mxu0 0.0
        %586 = vmatpush1.msra.mxu0 0.0
        %587 = vmatprep.subr.mxu0 0.0
        %588 = vmatpush1.msra.mxu0 0.0
        %589 = vmatprep.subr.mxu0 0.0
        %590 = vmatpush1.msra.mxu0 0.0
        %591 = vmatprep.mubr.f32.mxu0 0.0
        %592 = vmatmul.mubr.f32.gmra.mrb[0].mxu0 %v504
        %v593 = vpop.f32.mrb[0].mxu0
        %v594 = vadd.f32 %v500, %v593
        %v595 = vpop.f32.mrb[0].mxu0
        %596 = vmatprep.mubr.f32.mxu0 0.0
        %597 = vmatmul.mubr.f32.gmra.mrb[0].mxu0 %v507
        %v598 = vpop.f32.mrb[0].mxu0
        %v599 = vadd.f32 %v500, %v598
        %v600 = vpop.f32.mrb[0].mxu0
        %601 = vmatprep.mubr.f32.mxu0 0.0
        %602 = vmatmul.mubr.f32.gmra.mrb[0].mxu0 %v510
        %v603 = vpop.f32.mrb[0].mxu0
        %v604 = vadd.f32 %v500, %v603
        %v605 = vpop.f32.mrb[0].mxu0
        %606 = vmatprep.mubr.f32.mxu0 0.0
        %607 = vmatmul.mubr.f32.gmra.mrb[0].mxu0 %v513
        %v608 = vpop.f32.mrb[0].mxu0
        %v609 = vadd.f32 %v500, %v608
        %v610 = vpop.f32.mrb[0].mxu0
        %611 = vmatprep.mubr.f32.mxu0 0.0
        %612 = vmatmul.mubr.f32.gmra.mrb[0].mxu0 %v516
        %v613 = vpop.f32.mrb[0].mxu0
        %v614 = vadd.f32 %v500, %v613
        %v615 = vpop.f32.mrb[0].mxu0
        %616 = vmatprep.mubr.f32.mxu0 0.0
        %617 = vmatmul.mubr.f32.gmra.mrb[0].mxu0 %v519
        %v618 = vpop.f32.mrb[0].mxu0
        %v619 = vadd.f32 %v500, %v618
        %v620 = vpop.f32.mrb[0].mxu0
        %621 = vmatprep.mubr.f32.mxu0 0.0
        %622 = vmatmul.mubr.f32.gmra.mrb[0].mxu0 %v522
        %v623 = vpop.f32.mrb[0].mxu0
        %v624 = vadd.f32 %v500, %v623
        %v625 = vpop.f32.mrb[0].mxu0
        %626 = vmatprep.mubr.f32.mxu0 0.0
        %627 = vmatmul.mubr.f32.gmra.mrb[0].mxu0 %v525
        %v628 = vpop.f32.mrb[0].mxu0
        %v629 = vadd.f32 %v500, %v628
        %v630 = vpop.f32.mrb[0].mxu0
        %631 = vdwg.mxu0
        %v632 = vmul.f32 %v594, 0.35355338
        %v633 = vmul.f32 %v599, 0.35355338
        %v634 = vmul.f32 %v604, 0.35355338
        %v635 = vmul.f32 %v609, 0.35355338
        %v636 = vmul.f32 %v614, 0.35355338
        %v637 = vmul.f32 %v619, 0.35355338
        %v638 = vmul.f32 %v624, 0.35355338
        %v639 = vmul.f32 %v629, 0.35355338
        %v640 = vld [vmem:[#allocation3] sm:$0xff]
        %v641 = vld [vmem:[#allocation3 + $0x8] sm:$0xff]
        %v642 = vld [vmem:[#allocation3 + $0x10] sm:$0xff]
        %v643 = vld [vmem:[#allocation3 + $0x18] sm:$0xff]
        %v644 = vld [vmem:[#allocation3 + $0x20] sm:$0xff]
        %v645 = vld [vmem:[#allocation3 + $0x28] sm:$0xff]
        %v646 = vld [vmem:[#allocation3 + $0x30] sm:$0xff]
        %v647 = vld [vmem:[#allocation3 + $0x38] sm:$0xff]
        %656 = vrot.lane.b32.xlu0 %v594, 96
        %v657 = vpop.permute.xlu0 %656
        %658 = vrot.lane.b32.xlu0 %v599, 96
        %v659 = vpop.permute.xlu0 %658
        %660 = vrot.lane.b32.xlu0 %v604, 96
        %v661 = vpop.permute.xlu0 %660
        %662 = vrot.lane.b32.xlu0 %v609, 96
        %v663 = vpop.permute.xlu0 %662
        %664 = vrot.lane.b32.xlu0 %v614, 96
        %v665 = vpop.permute.xlu0 %664
        %666 = vrot.lane.b32.xlu0 %v619, 96
        %v667 = vpop.permute.xlu0 %666
        %668 = vrot.lane.b32.xlu0 %v624, 96
        %v669 = vpop.permute.xlu0 %668
        %670 = vrot.lane.b32.xlu0 %v629, 96
        %v671 = vpop.permute.xlu0 %670
        %vm672 = vcmask 64512
        %v674 = vsel %vm672, %v632, 0
        %v677 = vsel %vm672, %v633, 0
        %v680 = vsel %vm672, %v634, 0
        %v683 = vsel %vm672, %v635, 0
        %v686 = vsel %vm672, %v636, 0
        %v689 = vsel %vm672, %v637, 0
        %v692 = vsel %vm672, %v638, 0
        %v695 = vsel %vm672, %v639, 0
        %v697 = vsel %vm672, %v657, 0
        %v699 = vsel %vm672, %v659, 0
        %v701 = vsel %vm672, %v661, 0
        %v703 = vsel %vm672, %v663, 0
        %v705 = vsel %vm672, %v665, 0
        %v707 = vsel %vm672, %v667, 0
        %v709 = vsel %vm672, %v669, 0
        %v711 = vsel %vm672, %v671, 0
        %713 = vmatprep.subr.mxu0 0.0
        %714 = vmatpush1.xpose.msra.mxu0 %v697
        %715 = vmatprep.subr.mxu0 0.0
        %716 = vmatpush1.xpose.msra.mxu0 %v699
        %717 = vmatprep.subr.mxu0 0.0
        %718 = vmatpush1.xpose.msra.mxu0 %v701
        %719 = vmatprep.subr.mxu0 0.0
        %720 = vmatpush1.xpose.msra.mxu0 %v703
        %721 = vmatprep.subr.mxu0 0.0
        %722 = vmatpush1.xpose.msra.mxu0 %v705
        %723 = vmatprep.subr.mxu0 0.0
        %724 = vmatpush1.xpose.msra.mxu0 %v707
        %725 = vmatprep.subr.mxu0 0.0
        %726 = vmatpush1.xpose.msra.mxu0 %v709
        %727 = vmatprep.subr.mxu0 0.0
        %728 = vmatpush1.xpose.msra.mxu0 %v711
        %729 = vmatprep.subr.mxu0 0.0
        %730 = vmatpush1.xpose.msra.mxu0 0.0
        %731 = vmatprep.subr.mxu0 0.0
        %732 = vmatpush1.xpose.msra.mxu0 0.0
        %733 = vmatprep.subr.mxu0 0.0
        %734 = vmatpush1.xpose.msra.mxu0 0.0
        %735 = vmatprep.subr.mxu0 0.0
        %736 = vmatpush1.xpose.msra.mxu0 0.0
        %737 = vmatprep.subr.mxu0 0.0
        %738 = vmatpush1.xpose.msra.mxu0 0.0
        %739 = vmatprep.subr.mxu0 0.0
        %740 = vmatpush1.xpose.msra.mxu0 0.0
        %741 = vmatprep.subr.mxu0 0.0
        %742 = vmatpush1.xpose.msra.mxu0 0.0
        %743 = vmatprep.subr.mxu0 0.0
        %744 = vmatpush1.xpose.msra.mxu0 0.0
        %745 = vmatprep.subr.mxu0 0.0
        %746 = vmatpush1.xpose.msra.mxu0 0.0
        %747 = vmatprep.subr.mxu0 0.0
        %748 = vmatpush1.xpose.msra.mxu0 0.0
        %749 = vmatprep.subr.mxu0 0.0
        %750 = vmatpush1.xpose.msra.mxu0 0.0
        %751 = vmatprep.subr.mxu0 0.0
        %752 = vmatpush1.xpose.msra.mxu0 0.0
        %753 = vmatprep.subr.mxu0 0.0
        %754 = vmatpush1.xpose.msra.mxu0 0.0
        %755 = vmatprep.subr.mxu0 0.0
        %756 = vmatpush1.xpose.msra.mxu0 0.0
        %757 = vmatprep.subr.mxu0 0.0
        %758 = vmatpush1.xpose.msra.mxu0 0.0
        %759 = vmatprep.subr.mxu0 0.0
        %760 = vmatpush1.xpose.msra.mxu0 0.0
        %761 = vmatprep.subr.mxu0 0.0
        %762 = vmatpush1.xpose.msra.mxu0 0.0
        %763 = vmatprep.subr.mxu0 0.0
        %764 = vmatpush1.xpose.msra.mxu0 0.0
        %765 = vmatprep.subr.mxu0 0.0
        %766 = vmatpush1.xpose.msra.mxu0 0.0
        %767 = vmatprep.subr.mxu0 0.0
        %768 = vmatpush1.xpose.msra.mxu0 0.0
        %769 = vmatprep.subr.mxu0 0.0
        %770 = vmatpush1.xpose.msra.mxu0 0.0
        %771 = vmatprep.subr.mxu0 0.0
        %772 = vmatpush1.xpose.msra.mxu0 0.0
        %773 = vmatprep.subr.mxu0 0.0
        %774 = vmatpush1.xpose.msra.mxu0 0.0
        %775 = vmatprep.subr.mxu0 0.0
        %776 = vmatpush1.xpose.msra.mxu0 0.0
        %777 = vmatprep.mubr.f32.mxu0 0.0
        %778 = vmatmul.mubr.f32.gmra.mrb[0].mxu0 %v674
        %v779 = vpop.f32.mrb[0].mxu0
        %v780 = vadd.f32 %v640, %v779
        %v781 = vpop.f32.mrb[0].mxu0
        %782 = vmatprep.mubr.f32.mxu0 0.0
        %783 = vmatmul.mubr.f32.gmra.mrb[0].mxu0 %v677
        %v784 = vpop.f32.mrb[0].mxu0
        %v785 = vadd.f32 %v641, %v784
        %v786 = vpop.f32.mrb[0].mxu0
        %787 = vmatprep.mubr.f32.mxu0 0.0
        %788 = vmatmul.mubr.f32.gmra.mrb[0].mxu0 %v680
        %v789 = vpop.f32.mrb[0].mxu0
        %v790 = vadd.f32 %v642, %v789
        %v791 = vpop.f32.mrb[0].mxu0
        %792 = vmatprep.mubr.f32.mxu0 0.0
        %793 = vmatmul.mubr.f32.gmra.mrb[0].mxu0 %v683
        %v794 = vpop.f32.mrb[0].mxu0
        %v795 = vadd.f32 %v643, %v794
        %v796 = vpop.f32.mrb[0].mxu0
        %797 = vmatprep.mubr.f32.mxu0 0.0
        %798 = vmatmul.mubr.f32.gmra.mrb[0].mxu0 %v686
        %v799 = vpop.f32.mrb[0].mxu0
        %v800 = vadd.f32 %v644, %v799
        %v801 = vpop.f32.mrb[0].mxu0
        %802 = vmatprep.mubr.f32.mxu0 0.0
        %803 = vmatmul.mubr.f32.gmra.mrb[0].mxu0 %v689
        %v804 = vpop.f32.mrb[0].mxu0
        %v805 = vadd.f32 %v645, %v804
        %v806 = vpop.f32.mrb[0].mxu0
        %807 = vmatprep.mubr.f32.mxu0 0.0
        %808 = vmatmul.mubr.f32.gmra.mrb[0].mxu0 %v692
        %v809 = vpop.f32.mrb[0].mxu0
        %v810 = vadd.f32 %v646, %v809
        %v811 = vpop.f32.mrb[0].mxu0
        %812 = vmatprep.mubr.f32.mxu0 0.0
        %813 = vmatmul.mubr.f32.gmra.mrb[0].mxu0 %v695
        %v814 = vpop.f32.mrb[0].mxu0
        %v815 = vadd.f32 %v647, %v814
        %v816 = vpop.f32.mrb[0].mxu0
        %817 = vdwg.mxu0
        %vm818 = vcmask 523264
        %v819 = vsel %vm818, %v780, -inf
        %820 = vmax.xlane.f32.xlu0 %v819
        %v821 = vpop.xlane.xlu0 %820
        %v822 = vsel %vm818, %v785, -inf
        %823 = vmax.xlane.f32.xlu0 %v822
        %v824 = vpop.xlane.xlu0 %823
        %v825 = vsel %vm818, %v790, -inf
        %826 = vmax.xlane.f32.xlu0 %v825
        %v827 = vpop.xlane.xlu0 %826
        %v828 = vsel %vm818, %v795, -inf
        %829 = vmax.xlane.f32.xlu0 %v828
        %v830 = vpop.xlane.xlu0 %829
        %v831 = vsel %vm818, %v800, -inf
        %832 = vmax.xlane.f32.xlu0 %v831
        %v833 = vpop.xlane.xlu0 %832
        %v834 = vsel %vm818, %v805, -inf
        %835 = vmax.xlane.f32.xlu0 %v834
        %v836 = vpop.xlane.xlu0 %835
        %v837 = vsel %vm818, %v810, -inf
        %838 = vmax.xlane.f32.xlu0 %v837
        %v839 = vpop.xlane.xlu0 %838
        %v840 = vsel %vm818, %v815, -inf
        %841 = vmax.xlane.f32.xlu0 %v840
        %v842 = vpop.xlane.xlu0 %841
        %v843 = vsub.f32 %v780, %v821
        %v844 = vsub.f32 %v785, %v824
        %v845 = vsub.f32 %v790, %v827
        %v846 = vsub.f32 %v795, %v830
        %v847 = vsub.f32 %v800, %v833
        %v848 = vsub.f32 %v805, %v836
        %v849 = vsub.f32 %v810, %v839
        %v850 = vsub.f32 %v815, %v842
        %v851 = vmul.f32 %v843, 1.442695
        %v852 = vpow.pop %v851
        %v853 = vmul.f32 %v844, 1.442695
        %v854 = vpow.pop %v853
        %v855 = vmul.f32 %v845, 1.442695
        %v856 = vpow.pop %v855
        %v857 = vmul.f32 %v846, 1.442695
        %v858 = vpow.pop %v857
        %v859 = vmul.f32 %v847, 1.442695
        %v860 = vpow.pop %v859
        %v861 = vmul.f32 %v848, 1.442695
        %v862 = vpow.pop %v861
        %v863 = vmul.f32 %v849, 1.442695
        %v864 = vpow.pop %v863
        %v865 = vmul.f32 %v850, 1.442695
        %v866 = vpow.pop %v865
        %v867 = vsel %vm818, %v852, 0.0
        %868 = vadd.xlane.f32.xlu0 %v867
        %v869 = vpop.xlane.xlu0 %868
        %v870 = vsel %vm818, %v854, 0.0
        %871 = vadd.xlane.f32.xlu0 %v870
        %v872 = vpop.xlane.xlu0 %871
        %v873 = vsel %vm818, %v856, 0.0
        %874 = vadd.xlane.f32.xlu0 %v873
        %v875 = vpop.xlane.xlu0 %874
        %v876 = vsel %vm818, %v858, 0.0
        %877 = vadd.xlane.f32.xlu0 %v876
        %v878 = vpop.xlane.xlu0 %877
        %v879 = vsel %vm818, %v860, 0.0
        %880 = vadd.xlane.f32.xlu0 %v879
        %v881 = vpop.xlane.xlu0 %880
        %v882 = vsel %vm818, %v862, 0.0
        %883 = vadd.xlane.f32.xlu0 %v882
        %v884 = vpop.xlane.xlu0 %883
        %v885 = vsel %vm818, %v864, 0.0
        %886 = vadd.xlane.f32.xlu0 %v885
        %v887 = vpop.xlane.xlu0 %886
        %v888 = vsel %vm818, %v866, 0.0
        %889 = vadd.xlane.f32.xlu0 %v888
        %v890 = vpop.xlane.xlu0 %889
        %891 = vrot.lane.b32.xlu0 %v594, 64
        %v892 = vpop.permute.xlu0 %891
        %893 = vrot.lane.b32.xlu0 %v599, 64
        %v894 = vpop.permute.xlu0 %893
        %895 = vrot.lane.b32.xlu0 %v604, 64
        %v896 = vpop.permute.xlu0 %895
        %897 = vrot.lane.b32.xlu0 %v609, 64
        %v898 = vpop.permute.xlu0 %897
        %899 = vrot.lane.b32.xlu0 %v614, 64
        %v900 = vpop.permute.xlu0 %899
        %901 = vrot.lane.b32.xlu0 %v619, 64
        %v902 = vpop.permute.xlu0 %901
        %903 = vrot.lane.b32.xlu0 %v624, 64
        %v904 = vpop.permute.xlu0 %903
        %905 = vrot.lane.b32.xlu0 %v629, 64
        %v906 = vpop.permute.xlu0 %905
        %v916 = vsel %vm818, %v852, 0
        %v919 = vsel %vm818, %v854, 0
        %v922 = vsel %vm818, %v856, 0
        %v925 = vsel %vm818, %v858, 0
        %v928 = vsel %vm818, %v860, 0
        %v931 = vsel %vm818, %v862, 0
        %v934 = vsel %vm818, %v864, 0
        %v937 = vsel %vm818, %v866, 0
        %939 = vmatprep.subr.mxu0 0.0
        %940 = vmatpush1.msra.mxu0 %v892
        %941 = vmatprep.subr.mxu0 0.0
        %942 = vmatpush1.msra.mxu0 %v894
        %943 = vmatprep.subr.mxu0 0.0
        %944 = vmatpush1.msra.mxu0 %v896
        %945 = vmatprep.subr.mxu0 0.0
        %946 = vmatpush1.msra.mxu0 %v898
        %947 = vmatprep.subr.mxu0 0.0
        %948 = vmatpush1.msra.mxu0 %v900
        %949 = vmatprep.subr.mxu0 0.0
        %950 = vmatpush1.msra.mxu0 %v902
        %951 = vmatprep.subr.mxu0 0.0
        %952 = vmatpush1.msra.mxu0 %v904
        %953 = vmatprep.subr.mxu0 0.0
        %954 = vmatpush1.msra.mxu0 %v906
        %955 = vmatprep.subr.mxu0 0.0
        %956 = vmatpush1.msra.mxu0 0.0
        %957 = vmatprep.subr.mxu0 0.0
        %958 = vmatpush1.msra.mxu0 0.0
        %959 = vmatprep.subr.mxu0 0.0
        %960 = vmatpush1.msra.mxu0 0.0
        %961 = vmatprep.subr.mxu0 0.0
        %962 = vmatpush1.msra.mxu0 0.0
        %963 = vmatprep.subr.mxu0 0.0
        %964 = vmatpush1.msra.mxu0 0.0
        %965 = vmatprep.subr.mxu0 0.0
        %966 = vmatpush1.msra.mxu0 0.0
        %967 = vmatprep.subr.mxu0 0.0
        %968 = vmatpush1.msra.mxu0 0.0
        %969 = vmatprep.subr.mxu0 0.0
        %970 = vmatpush1.msra.mxu0 0.0
        %971 = vmatprep.subr.mxu0 0.0
        %972 = vmatpush1.msra.mxu0 0.0
        %973 = vmatprep.subr.mxu0 0.0
        %974 = vmatpush1.msra.mxu0 0.0
        %975 = vmatprep.subr.mxu0 0.0
        %976 = vmatpush1.msra.mxu0 0.0
        %977 = vmatprep.subr.mxu0 0.0
        %978 = vmatpush1.msra.mxu0 0.0
        %979 = vmatprep.subr.mxu0 0.0
        %980 = vmatpush1.msra.mxu0 0.0
        %981 = vmatprep.subr.mxu0 0.0
        %982 = vmatpush1.msra.mxu0 0.0
        %983 = vmatprep.subr.mxu0 0.0
        %984 = vmatpush1.msra.mxu0 0.0
        %985 = vmatprep.subr.mxu0 0.0
        %986 = vmatpush1.msra.mxu0 0.0
        %987 = vmatprep.subr.mxu0 0.0
        %988 = vmatpush1.msra.mxu0 0.0
        %989 = vmatprep.subr.mxu0 0.0
        %990 = vmatpush1.msra.mxu0 0.0
        %991 = vmatprep.subr.mxu0 0.0
        %992 = vmatpush1.msra.mxu0 0.0
        %993 = vmatprep.subr.mxu0 0.0
        %994 = vmatpush1.msra.mxu0 0.0
        %995 = vmatprep.subr.mxu0 0.0
        %996 = vmatpush1.msra.mxu0 0.0
        %997 = vmatprep.subr.mxu0 0.0
        %998 = vmatpush1.msra.mxu0 0.0
        %999 = vmatprep.subr.mxu0 0.0
        %1000 = vmatpush1.msra.mxu0 0.0
        %1001 = vmatprep.subr.mxu0 0.0
        %1002 = vmatpush1.msra.mxu0 0.0
        %1003 = vmatprep.mubr.f32.mxu0 0.0
        %1004 = vmatmul.mubr.f32.gmra.mrb[0].mxu0 %v916
        %v1005 = vpop.f32.mrb[0].mxu0
        %v1006 = vadd.f32 0.0, %v1005
        %v1007 = vpop.f32.mrb[0].mxu0
        %1008 = vmatprep.mubr.f32.mxu0 0.0
        %1009 = vmatmul.mubr.f32.gmra.mrb[0].mxu0 %v919
        %v1010 = vpop.f32.mrb[0].mxu0
        %v1011 = vadd.f32 0.0, %v1010
        %v1012 = vpop.f32.mrb[0].mxu0
        %1013 = vmatprep.mubr.f32.mxu0 0.0
        %1014 = vmatmul.mubr.f32.gmra.mrb[0].mxu0 %v922
        %v1015 = vpop.f32.mrb[0].mxu0
        %v1016 = vadd.f32 0.0, %v1015
        %v1017 = vpop.f32.mrb[0].mxu0
        %1018 = vmatprep.mubr.f32.mxu0 0.0
        %1019 = vmatmul.mubr.f32.gmra.mrb[0].mxu0 %v925
        %v1020 = vpop.f32.mrb[0].mxu0
        %v1021 = vadd.f32 0.0, %v1020
        %v1022 = vpop.f32.mrb[0].mxu0
        %1023 = vmatprep.mubr.f32.mxu0 0.0
        %1024 = vmatmul.mubr.f32.gmra.mrb[0].mxu0 %v928
        %v1025 = vpop.f32.mrb[0].mxu0
        %v1026 = vadd.f32 0.0, %v1025
        %v1027 = vpop.f32.mrb[0].mxu0
        %1028 = vmatprep.mubr.f32.mxu0 0.0
        %1029 = vmatmul.mubr.f32.gmra.mrb[0].mxu0 %v931
        %v1030 = vpop.f32.mrb[0].mxu0
        %v1031 = vadd.f32 0.0, %v1030
        %v1032 = vpop.f32.mrb[0].mxu0
        %1033 = vmatprep.mubr.f32.mxu0 0.0
        %1034 = vmatmul.mubr.f32.gmra.mrb[0].mxu0 %v934
        %v1035 = vpop.f32.mrb[0].mxu0
        %v1036 = vadd.f32 0.0, %v1035
        %v1037 = vpop.f32.mrb[0].mxu0
        %1038 = vmatprep.mubr.f32.mxu0 0.0
        %1039 = vmatmul.mubr.f32.gmra.mrb[0].mxu0 %v937
        %v1040 = vpop.f32.mrb[0].mxu0
        %v1041 = vadd.f32 0.0, %v1040
        %v1042 = vpop.f32.mrb[0].mxu0
        %1043 = vdwg.mxu0
        %v1044 = vrcp.pop %v869
        %v1045 = vrcp.pop %v872
        %v1046 = vrcp.pop %v875
        %v1047 = vrcp.pop %v878
        %v1048 = vrcp.pop %v881
        %v1049 = vrcp.pop %v884
        %v1050 = vrcp.pop %v887
        %v1051 = vrcp.pop %v890
        %v1052 = vmul.f32 %v1006, %v1044
        %v1053 = vmul.f32 %v1011, %v1045
        %v1054 = vmul.f32 %v1016, %v1046
        %v1055 = vmul.f32 %v1021, %v1047
        %v1056 = vmul.f32 %v1026, %v1048
        %v1057 = vmul.f32 %v1031, %v1049
        %v1058 = vmul.f32 %v1036, %v1050
        %v1059 = vmul.f32 %v1041, %v1051
        %1060 = vst.msk [vmem:[#allocation2] sm:$0xff] %vm672, %v1052
        %1061 = vst.msk [vmem:[#allocation2 + $0x8] sm:$0xff] %vm672, %v1053
        %1062 = vst.msk [vmem:[#allocation2 + $0x10] sm:$0xff] %vm672, %v1054
        %1063 = vst.msk [vmem:[#allocation2 + $0x18] sm:$0xff] %vm672, %v1055
        %1064 = vst.msk [vmem:[#allocation2 + $0x20] sm:$0xff] %vm672, %v1056
        %1065 = vst.msk [vmem:[#allocation2 + $0x28] sm:$0xff] %vm672, %v1057
        %1066 = vst.msk [vmem:[#allocation2 + $0x30] sm:$0xff] %vm672, %v1058
        %1067 = vst.msk [vmem:[#allocation2 + $0x38] sm:$0xff] %vm672, %v1059
        %s1068 = scalar_lea.vmem [#allocation3], 64
        %v1069 = vld [vmem:[%s1068] sm:$0xff]
        %v1070 = vld [vmem:[%s1068 + $0x8] sm:$0xff]
        %v1071 = vld [vmem:[%s1068 + $0x10] sm:$0xff]
        %v1072 = vld [vmem:[%s1068 + $0x18] sm:$0xff]
        %v1073 = vld [vmem:[%s1068 + $0x20] sm:$0xff]
        %v1074 = vld [vmem:[%s1068 + $0x28] sm:$0xff]
        %v1075 = vld [vmem:[%s1068 + $0x30] sm:$0xff]
        %v1076 = vld [vmem:[%s1068 + $0x38] sm:$0xff]
        %1077 = vrot.lane.b32.xlu0 %v632, 120
        %v1078 = vpop.permute.xlu0 %1077
        %1079 = vrot.lane.b32.xlu0 %v633, 120
        %v1080 = vpop.permute.xlu0 %1079
        %1081 = vrot.lane.b32.xlu0 %v634, 120
        %v1082 = vpop.permute.xlu0 %1081
        %1083 = vrot.lane.b32.xlu0 %v635, 120
        %v1084 = vpop.permute.xlu0 %1083
        %1085 = vrot.lane.b32.xlu0 %v636, 120
        %v1086 = vpop.permute.xlu0 %1085
        %1087 = vrot.lane.b32.xlu0 %v637, 120
        %v1088 = vpop.permute.xlu0 %1087
        %1089 = vrot.lane.b32.xlu0 %v638, 120
        %v1090 = vpop.permute.xlu0 %1089
        %1091 = vrot.lane.b32.xlu0 %v639, 120
        %v1092 = vpop.permute.xlu0 %1091
        %1093 = vrot.lane.b32.xlu0 %v594, 88
        %v1094 = vpop.permute.xlu0 %1093
        %1095 = vrot.lane.b32.xlu0 %v599, 88
        %v1096 = vpop.permute.xlu0 %1095
        %1097 = vrot.lane.b32.xlu0 %v604, 88
        %v1098 = vpop.permute.xlu0 %1097
        %1099 = vrot.lane.b32.xlu0 %v609, 88
        %v1100 = vpop.permute.xlu0 %1099
        %1101 = vrot.lane.b32.xlu0 %v614, 88
        %v1102 = vpop.permute.xlu0 %1101
        %1103 = vrot.lane.b32.xlu0 %v619, 88
        %v1104 = vpop.permute.xlu0 %1103
        %1105 = vrot.lane.b32.xlu0 %v624, 88
        %v1106 = vpop.permute.xlu0 %1105
        %1107 = vrot.lane.b32.xlu0 %v629, 88
        %v1108 = vpop.permute.xlu0 %1107
        %v1109 = vsel %vm672, %v1078, 0
        %v1111 = vsel %vm672, %v1080, 0
        %v1113 = vsel %vm672, %v1082, 0
        %v1115 = vsel %vm672, %v1084, 0
        %v1117 = vsel %vm672, %v1086, 0
        %v1119 = vsel %vm672, %v1088, 0
        %v1121 = vsel %vm672, %v1090, 0
        %v1123 = vsel %vm672, %v1092, 0
        %v1125 = vsel %vm672, %v1094, 0
        %v1127 = vsel %vm672, %v1096, 0
        %v1129 = vsel %vm672, %v1098, 0
        %v1131 = vsel %vm672, %v1100, 0
        %v1133 = vsel %vm672, %v1102, 0
        %v1135 = vsel %vm672, %v1104, 0
        %v1137 = vsel %vm672, %v1106, 0
        %v1139 = vsel %vm672, %v1108, 0
        %1141 = vmatprep.subr.mxu0 0.0
        %1142 = vmatpush1.xpose.msra.mxu0 %v1125
        %1143 = vmatprep.subr.mxu0 0.0
        %1144 = vmatpush1.xpose.msra.mxu0 %v1127
        %1145 = vmatprep.subr.mxu0 0.0
        %1146 = vmatpush1.xpose.msra.mxu0 %v1129
        %1147 = vmatprep.subr.mxu0 0.0
        %1148 = vmatpush1.xpose.msra.mxu0 %v1131
        %1149 = vmatprep.subr.mxu0 0.0
        %1150 = vmatpush1.xpose.msra.mxu0 %v1133
        %1151 = vmatprep.subr.mxu0 0.0
        %1152 = vmatpush1.xpose.msra.mxu0 %v1135
        %1153 = vmatprep.subr.mxu0 0.0
        %1154 = vmatpush1.xpose.msra.mxu0 %v1137
        %1155 = vmatprep.subr.mxu0 0.0
        %1156 = vmatpush1.xpose.msra.mxu0 %v1139
        %1157 = vmatprep.subr.mxu0 0.0
        %1158 = vmatpush1.xpose.msra.mxu0 0.0
        %1159 = vmatprep.subr.mxu0 0.0
        %1160 = vmatpush1.xpose.msra.mxu0 0.0
        %1161 = vmatprep.subr.mxu0 0.0
        %1162 = vmatpush1.xpose.msra.mxu0 0.0
        %1163 = vmatprep.subr.mxu0 0.0
        %1164 = vmatpush1.xpose.msra.mxu0 0.0
        %1165 = vmatprep.subr.mxu0 0.0
        %1166 = vmatpush1.xpose.msra.mxu0 0.0
        %1167 = vmatprep.subr.mxu0 0.0
        %1168 = vmatpush1.xpose.msra.mxu0 0.0
        %1169 = vmatprep.subr.mxu0 0.0
        %1170 = vmatpush1.xpose.msra.mxu0 0.0
        %1171 = vmatprep.subr.mxu0 0.0
        %1172 = vmatpush1.xpose.msra.mxu0 0.0
        %1173 = vmatprep.subr.mxu0 0.0
        %1174 = vmatpush1.xpose.msra.mxu0 0.0
        %1175 = vmatprep.subr.mxu0 0.0
        %1176 = vmatpush1.xpose.msra.mxu0 0.0
        %1177 = vmatprep.subr.mxu0 0.0
        %1178 = vmatpush1.xpose.msra.mxu0 0.0
        %1179 = vmatprep.subr.mxu0 0.0
        %1180 = vmatpush1.xpose.msra.mxu0 0.0
        %1181 = vmatprep.subr.mxu0 0.0
        %1182 = vmatpush1.xpose.msra.mxu0 0.0
        %1183 = vmatprep.subr.mxu0 0.0
        %1184 = vmatpush1.xpose.msra.mxu0 0.0
        %1185 = vmatprep.subr.mxu0 0.0
        %1186 = vmatpush1.xpose.msra.mxu0 0.0
        %1187 = vmatprep.subr.mxu0 0.0
        %1188 = vmatpush1.xpose.msra.mxu0 0.0
        %1189 = vmatprep.subr.mxu0 0.0
        %1190 = vmatpush1.xpose.msra.mxu0 0.0
        %1191 = vmatprep.subr.mxu0 0.0
        %1192 = vmatpush1.xpose.msra.mxu0 0.0
        %1193 = vmatprep.subr.mxu0 0.0
        %1194 = vmatpush1.xpose.msra.mxu0 0.0
        %1195 = vmatprep.subr.mxu0 0.0
        %1196 = vmatpush1.xpose.msra.mxu0 0.0
        %1197 = vmatprep.subr.mxu0 0.0
        %1198 = vmatpush1.xpose.msra.mxu0 0.0
        %1199 = vmatprep.subr.mxu0 0.0
        %1200 = vmatpush1.xpose.msra.mxu0 0.0
        %1201 = vmatprep.subr.mxu0 0.0
        %1202 = vmatpush1.xpose.msra.mxu0 0.0
        %1203 = vmatprep.subr.mxu0 0.0
        %1204 = vmatpush1.xpose.msra.mxu0 0.0
        %1205 = vmatprep.mubr.f32.mxu0 0.0
        %1206 = vmatmul.mubr.f32.gmra.mrb[0].mxu0 %v1109
        %v1207 = vpop.f32.mrb[0].mxu0
        %v1208 = vadd.f32 %v1069, %v1207
        %v1209 = vpop.f32.mrb[0].mxu0
        %1210 = vmatprep.mubr.f32.mxu0 0.0
        %1211 = vmatmul.mubr.f32.gmra.mrb[0].mxu0 %v1111
        %v1212 = vpop.f32.mrb[0].mxu0
        %v1213 = vadd.f32 %v1070, %v1212
        %v1214 = vpop.f32.mrb[0].mxu0
        %1215 = vmatprep.mubr.f32.mxu0 0.0
        %1216 = vmatmul.mubr.f32.gmra.mrb[0].mxu0 %v1113
        %v1217 = vpop.f32.mrb[0].mxu0
        %v1218 = vadd.f32 %v1071, %v1217
        %v1219 = vpop.f32.mrb[0].mxu0
        %1220 = vmatprep.mubr.f32.mxu0 0.0
        %1221 = vmatmul.mubr.f32.gmra.mrb[0].mxu0 %v1115
        %v1222 = vpop.f32.mrb[0].mxu0
        %v1223 = vadd.f32 %v1072, %v1222
        %v1224 = vpop.f32.mrb[0].mxu0
        %1225 = vmatprep.mubr.f32.mxu0 0.0
        %1226 = vmatmul.mubr.f32.gmra.mrb[0].mxu0 %v1117
        %v1227 = vpop.f32.mrb[0].mxu0
        %v1228 = vadd.f32 %v1073, %v1227
        %v1229 = vpop.f32.mrb[0].mxu0
        %1230 = vmatprep.mubr.f32.mxu0 0.0
        %1231 = vmatmul.mubr.f32.gmra.mrb[0].mxu0 %v1119
        %v1232 = vpop.f32.mrb[0].mxu0
        %v1233 = vadd.f32 %v1074, %v1232
        %v1234 = vpop.f32.mrb[0].mxu0
        %1235 = vmatprep.mubr.f32.mxu0 0.0
        %1236 = vmatmul.mubr.f32.gmra.mrb[0].mxu0 %v1121
        %v1237 = vpop.f32.mrb[0].mxu0
        %v1238 = vadd.f32 %v1075, %v1237
        %v1239 = vpop.f32.mrb[0].mxu0
        %1240 = vmatprep.mubr.f32.mxu0 0.0
        %1241 = vmatmul.mubr.f32.gmra.mrb[0].mxu0 %v1123
        %v1242 = vpop.f32.mrb[0].mxu0
        %v1243 = vadd.f32 %v1076, %v1242
        %v1244 = vpop.f32.mrb[0].mxu0
        %1245 = vdwg.mxu0
        %v1246 = vsel %vm818, %v1208, -inf
        %1247 = vmax.xlane.f32.xlu0 %v1246
        %v1248 = vpop.xlane.xlu0 %1247
        %v1249 = vsel %vm818, %v1213, -inf
        %1250 = vmax.xlane.f32.xlu0 %v1249
        %v1251 = vpop.xlane.xlu0 %1250
        %v1252 = vsel %vm818, %v1218, -inf
        %1253 = vmax.xlane.f32.xlu0 %v1252
        %v1254 = vpop.xlane.xlu0 %1253
        %v1255 = vsel %vm818, %v1223, -inf
        %1256 = vmax.xlane.f32.xlu0 %v1255
        %v1257 = vpop.xlane.xlu0 %1256
        %v1258 = vsel %vm818, %v1228, -inf
        %1259 = vmax.xlane.f32.xlu0 %v1258
        %v1260 = vpop.xlane.xlu0 %1259
        %v1261 = vsel %vm818, %v1233, -inf
        %1262 = vmax.xlane.f32.xlu0 %v1261
        %v1263 = vpop.xlane.xlu0 %1262
        %v1264 = vsel %vm818, %v1238, -inf
        %1265 = vmax.xlane.f32.xlu0 %v1264
        %v1266 = vpop.xlane.xlu0 %1265
        %v1267 = vsel %vm818, %v1243, -inf
        %1268 = vmax.xlane.f32.xlu0 %v1267
        %v1269 = vpop.xlane.xlu0 %1268
        %v1270 = vsub.f32 %v1208, %v1248
        %v1271 = vsub.f32 %v1213, %v1251
        %v1272 = vsub.f32 %v1218, %v1254
        %v1273 = vsub.f32 %v1223, %v1257
        %v1274 = vsub.f32 %v1228, %v1260
        %v1275 = vsub.f32 %v1233, %v1263
        %v1276 = vsub.f32 %v1238, %v1266
        %v1277 = vsub.f32 %v1243, %v1269
        %v1278 = vmul.f32 %v1270, 1.442695
        %v1279 = vpow.pop %v1278
        %v1280 = vmul.f32 %v1271, 1.442695
        %v1281 = vpow.pop %v1280
        %v1282 = vmul.f32 %v1272, 1.442695
        %v1283 = vpow.pop %v1282
        %v1284 = vmul.f32 %v1273, 1.442695
        %v1285 = vpow.pop %v1284
        %v1286 = vmul.f32 %v1274, 1.442695
        %v1287 = vpow.pop %v1286
        %v1288 = vmul.f32 %v1275, 1.442695
        %v1289 = vpow.pop %v1288
        %v1290 = vmul.f32 %v1276, 1.442695
        %v1291 = vpow.pop %v1290
        %v1292 = vmul.f32 %v1277, 1.442695
        %v1293 = vpow.pop %v1292
        %v1294 = vsel %vm818, %v1279, 0.0
        %1295 = vadd.xlane.f32.xlu0 %v1294
        %v1296 = vpop.xlane.xlu0 %1295
        %v1297 = vsel %vm818, %v1281, 0.0
        %1298 = vadd.xlane.f32.xlu0 %v1297
        %v1299 = vpop.xlane.xlu0 %1298
        %v1300 = vsel %vm818, %v1283, 0.0
        %1301 = vadd.xlane.f32.xlu0 %v1300
        %v1302 = vpop.xlane.xlu0 %1301
        %v1303 = vsel %vm818, %v1285, 0.0
        %1304 = vadd.xlane.f32.xlu0 %v1303
        %v1305 = vpop.xlane.xlu0 %1304
        %v1306 = vsel %vm818, %v1287, 0.0
        %1307 = vadd.xlane.f32.xlu0 %v1306
        %v1308 = vpop.xlane.xlu0 %1307
        %v1309 = vsel %vm818, %v1289, 0.0
        %1310 = vadd.xlane.f32.xlu0 %v1309
        %v1311 = vpop.xlane.xlu0 %1310
        %v1312 = vsel %vm818, %v1291, 0.0
        %1313 = vadd.xlane.f32.xlu0 %v1312
        %v1314 = vpop.xlane.xlu0 %1313
        %v1315 = vsel %vm818, %v1293, 0.0
        %1316 = vadd.xlane.f32.xlu0 %v1315
        %v1317 = vpop.xlane.xlu0 %1316
        %1318 = vrot.lane.b32.xlu0 %v594, 56
        %v1319 = vpop.permute.xlu0 %1318
        %1320 = vrot.lane.b32.xlu0 %v599, 56
        %v1321 = vpop.permute.xlu0 %1320
        %1322 = vrot.lane.b32.xlu0 %v604, 56
        %v1323 = vpop.permute.xlu0 %1322
        %1324 = vrot.lane.b32.xlu0 %v609, 56
        %v1325 = vpop.permute.xlu0 %1324
        %1326 = vrot.lane.b32.xlu0 %v614, 56
        %v1327 = vpop.permute.xlu0 %1326
        %1328 = vrot.lane.b32.xlu0 %v619, 56
        %v1329 = vpop.permute.xlu0 %1328
        %1330 = vrot.lane.b32.xlu0 %v624, 56
        %v1331 = vpop.permute.xlu0 %1330
        %1332 = vrot.lane.b32.xlu0 %v629, 56
        %v1333 = vpop.permute.xlu0 %1332
        %v1343 = vsel %vm818, %v1279, 0
        %v1346 = vsel %vm818, %v1281, 0
        %v1349 = vsel %vm818, %v1283, 0
        %v1352 = vsel %vm818, %v1285, 0
        %v1355 = vsel %vm818, %v1287, 0
        %v1358 = vsel %vm818, %v1289, 0
        %v1361 = vsel %vm818, %v1291, 0
        %v1364 = vsel %vm818, %v1293, 0
        %1366 = vmatprep.subr.mxu0 0.0
        %1367 = vmatpush1.msra.mxu0 %v1319
        %1368 = vmatprep.subr.mxu0 0.0
        %1369 = vmatpush1.msra.mxu0 %v1321
        %1370 = vmatprep.subr.mxu0 0.0
        %1371 = vmatpush1.msra.mxu0 %v1323
        %1372 = vmatprep.subr.mxu0 0.0
        %1373 = vmatpush1.msra.mxu0 %v1325
        %1374 = vmatprep.subr.mxu0 0.0
        %1375 = vmatpush1.msra.mxu0 %v1327
        %1376 = vmatprep.subr.mxu0 0.0
        %1377 = vmatpush1.msra.mxu0 %v1329
        %1378 = vmatprep.subr.mxu0 0.0
        %1379 = vmatpush1.msra.mxu0 %v1331
        %1380 = vmatprep.subr.mxu0 0.0
        %1381 = vmatpush1.msra.mxu0 %v1333
        %1382 = vmatprep.subr.mxu0 0.0
        %1383 = vmatpush1.msra.mxu0 0.0
        %1384 = vmatprep.subr.mxu0 0.0
        %1385 = vmatpush1.msra.mxu0 0.0
        %1386 = vmatprep.subr.mxu0 0.0
        %1387 = vmatpush1.msra.mxu0 0.0
        %1388 = vmatprep.subr.mxu0 0.0
        %1389 = vmatpush1.msra.mxu0 0.0
        %1390 = vmatprep.subr.mxu0 0.0
        %1391 = vmatpush1.msra.mxu0 0.0
        %1392 = vmatprep.subr.mxu0 0.0
        %1393 = vmatpush1.msra.mxu0 0.0
        %1394 = vmatprep.subr.mxu0 0.0
        %1395 = vmatpush1.msra.mxu0 0.0
        %1396 = vmatprep.subr.mxu0 0.0
        %1397 = vmatpush1.msra.mxu0 0.0
        %1398 = vmatprep.subr.mxu0 0.0
        %1399 = vmatpush1.msra.mxu0 0.0
        %1400 = vmatprep.subr.mxu0 0.0
        %1401 = vmatpush1.msra.mxu0 0.0
        %1402 = vmatprep.subr.mxu0 0.0
        %1403 = vmatpush1.msra.mxu0 0.0
        %1404 = vmatprep.subr.mxu0 0.0
        %1405 = vmatpush1.msra.mxu0 0.0
        %1406 = vmatprep.subr.mxu0 0.0
        %1407 = vmatpush1.msra.mxu0 0.0
        %1408 = vmatprep.subr.mxu0 0.0
        %1409 = vmatpush1.msra.mxu0 0.0
        %1410 = vmatprep.subr.mxu0 0.0
        %1411 = vmatpush1.msra.mxu0 0.0
        %1412 = vmatprep.subr.mxu0 0.0
        %1413 = vmatpush1.msra.mxu0 0.0
        %1414 = vmatprep.subr.mxu0 0.0
        %1415 = vmatpush1.msra.mxu0 0.0
        %1416 = vmatprep.subr.mxu0 0.0
        %1417 = vmatpush1.msra.mxu0 0.0
        %1418 = vmatprep.subr.mxu0 0.0
        %1419 = vmatpush1.msra.mxu0 0.0
        %1420 = vmatprep.subr.mxu0 0.0
        %1421 = vmatpush1.msra.mxu0 0.0
        %1422 = vmatprep.subr.mxu0 0.0
        %1423 = vmatpush1.msra.mxu0 0.0
        %1424 = vmatprep.subr.mxu0 0.0
        %1425 = vmatpush1.msra.mxu0 0.0
        %1426 = vmatprep.subr.mxu0 0.0
        %1427 = vmatpush1.msra.mxu0 0.0
        %1428 = vmatprep.subr.mxu0 0.0
        %1429 = vmatpush1.msra.mxu0 0.0
        %1430 = vmatprep.mubr.f32.mxu0 0.0
        %1431 = vmatmul.mubr.f32.gmra.mrb[0].mxu0 %v1343
        %v1432 = vpop.f32.mrb[0].mxu0
        %v1433 = vadd.f32 0.0, %v1432
        %v1434 = vpop.f32.mrb[0].mxu0
        %1435 = vmatprep.mubr.f32.mxu0 0.0
        %1436 = vmatmul.mubr.f32.gmra.mrb[0].mxu0 %v1346
        %v1437 = vpop.f32.mrb[0].mxu0
        %v1438 = vadd.f32 0.0, %v1437
        %v1439 = vpop.f32.mrb[0].mxu0
        %1440 = vmatprep.mubr.f32.mxu0 0.0
        %1441 = vmatmul.mubr.f32.gmra.mrb[0].mxu0 %v1349
        %v1442 = vpop.f32.mrb[0].mxu0
        %v1443 = vadd.f32 0.0, %v1442
        %v1444 = vpop.f32.mrb[0].mxu0
        %1445 = vmatprep.mubr.f32.mxu0 0.0
        %1446 = vmatmul.mubr.f32.gmra.mrb[0].mxu0 %v1352
        %v1447 = vpop.f32.mrb[0].mxu0
        %v1448 = vadd.f32 0.0, %v1447
        %v1449 = vpop.f32.mrb[0].mxu0
        %1450 = vmatprep.mubr.f32.mxu0 0.0
        %1451 = vmatmul.mubr.f32.gmra.mrb[0].mxu0 %v1355
        %v1452 = vpop.f32.mrb[0].mxu0
        %v1453 = vadd.f32 0.0, %v1452
        %v1454 = vpop.f32.mrb[0].mxu0
        %1455 = vmatprep.mubr.f32.mxu0 0.0
        %1456 = vmatmul.mubr.f32.gmra.mrb[0].mxu0 %v1358
        %v1457 = vpop.f32.mrb[0].mxu0
        %v1458 = vadd.f32 0.0, %v1457
        %v1459 = vpop.f32.mrb[0].mxu0
        %1460 = vmatprep.mubr.f32.mxu0 0.0
        %1461 = vmatmul.mubr.f32.gmra.mrb[0].mxu0 %v1361
        %v1462 = vpop.f32.mrb[0].mxu0
        %v1463 = vadd.f32 0.0, %v1462
        %v1464 = vpop.f32.mrb[0].mxu0
        %1465 = vmatprep.mubr.f32.mxu0 0.0
        %1466 = vmatmul.mubr.f32.gmra.mrb[0].mxu0 %v1364
        %v1467 = vpop.f32.mrb[0].mxu0
        %v1468 = vadd.f32 0.0, %v1467
        %v1469 = vpop.f32.mrb[0].mxu0
        %1470 = vdwg.mxu0
        %v1471 = vrcp.pop %v1296
        %v1472 = vrcp.pop %v1299
        %v1473 = vrcp.pop %v1302
        %v1474 = vrcp.pop %v1305
        %v1475 = vrcp.pop %v1308
        %v1476 = vrcp.pop %v1311
        %v1477 = vrcp.pop %v1314
        %v1478 = vrcp.pop %v1317
        %v1479 = vmul.f32 %v1433, %v1471
        %v1480 = vmul.f32 %v1438, %v1472
        %v1481 = vmul.f32 %v1443, %v1473
        %v1482 = vmul.f32 %v1448, %v1474
        %v1483 = vmul.f32 %v1453, %v1475
        %v1484 = vmul.f32 %v1458, %v1476
        %v1485 = vmul.f32 %v1463, %v1477
        %v1486 = vmul.f32 %v1468, %v1478
        %1495 = vrot.lane.b32.xlu0 %v1479, 8
        %v1496 = vpop.permute.xlu0 %1495
        %1497 = vrot.lane.b32.xlu0 %v1480, 8
        %v1498 = vpop.permute.xlu0 %1497
        %1499 = vrot.lane.b32.xlu0 %v1481, 8
        %v1500 = vpop.permute.xlu0 %1499
        %1501 = vrot.lane.b32.xlu0 %v1482, 8
        %v1502 = vpop.permute.xlu0 %1501
        %1503 = vrot.lane.b32.xlu0 %v1483, 8
        %v1504 = vpop.permute.xlu0 %1503
        %1505 = vrot.lane.b32.xlu0 %v1484, 8
        %v1506 = vpop.permute.xlu0 %1505
        %1507 = vrot.lane.b32.xlu0 %v1485, 8
        %v1508 = vpop.permute.xlu0 %1507
        %1509 = vrot.lane.b32.xlu0 %v1486, 8
        %v1510 = vpop.permute.xlu0 %1509
        %vm1519 = vcmask 130112
        %1520 = vst.msk [vmem:[#allocation2] sm:$0xff] %vm1519, %v1496
        %1521 = vst.msk [vmem:[#allocation2 + $0x8] sm:$0xff] %vm1519, %v1498
        %1522 = vst.msk [vmem:[#allocation2 + $0x10] sm:$0xff] %vm1519, %v1500
        %1523 = vst.msk [vmem:[#allocation2 + $0x18] sm:$0xff] %vm1519, %v1502
        %1524 = vst.msk [vmem:[#allocation2 + $0x20] sm:$0xff] %vm1519, %v1504
        %1525 = vst.msk [vmem:[#allocation2 + $0x28] sm:$0xff] %vm1519, %v1506
        %1526 = vst.msk [vmem:[#allocation2 + $0x30] sm:$0xff] %vm1519, %v1508
        %1527 = vst.msk [vmem:[#allocation2 + $0x38] sm:$0xff] %vm1519, %v1510
        %s1528 = scalar_lea.vmem [#allocation3], 128
        %v1529 = vld [vmem:[%s1528] sm:$0xff]
        %v1530 = vld [vmem:[%s1528 + $0x8] sm:$0xff]
        %v1531 = vld [vmem:[%s1528 + $0x10] sm:$0xff]
        %v1532 = vld [vmem:[%s1528 + $0x18] sm:$0xff]
        %v1533 = vld [vmem:[%s1528 + $0x20] sm:$0xff]
        %v1534 = vld [vmem:[%s1528 + $0x28] sm:$0xff]
        %v1535 = vld [vmem:[%s1528 + $0x30] sm:$0xff]
        %v1536 = vld [vmem:[%s1528 + $0x38] sm:$0xff]
        %1537 = vrot.lane.b32.xlu0 %v632, 112
        %v1538 = vpop.permute.xlu0 %1537
        %1539 = vrot.lane.b32.xlu0 %v633, 112
        %v1540 = vpop.permute.xlu0 %1539
        %1541 = vrot.lane.b32.xlu0 %v634, 112
        %v1542 = vpop.permute.xlu0 %1541
        %1543 = vrot.lane.b32.xlu0 %v635, 112
        %v1544 = vpop.permute.xlu0 %1543
        %1545 = vrot.lane.b32.xlu0 %v636, 112
        %v1546 = vpop.permute.xlu0 %1545
        %1547 = vrot.lane.b32.xlu0 %v637, 112
        %v1548 = vpop.permute.xlu0 %1547
        %1549 = vrot.lane.b32.xlu0 %v638, 112
        %v1550 = vpop.permute.xlu0 %1549
        %1551 = vrot.lane.b32.xlu0 %v639, 112
        %v1552 = vpop.permute.xlu0 %1551
        %1553 = vrot.lane.b32.xlu0 %v594, 80
        %v1554 = vpop.permute.xlu0 %1553
        %1555 = vrot.lane.b32.xlu0 %v599, 80
        %v1556 = vpop.permute.xlu0 %1555
        %1557 = vrot.lane.b32.xlu0 %v604, 80
        %v1558 = vpop.permute.xlu0 %1557
        %1559 = vrot.lane.b32.xlu0 %v609, 80
        %v1560 = vpop.permute.xlu0 %1559
        %1561 = vrot.lane.b32.xlu0 %v614, 80
        %v1562 = vpop.permute.xlu0 %1561
        %1563 = vrot.lane.b32.xlu0 %v619, 80
        %v1564 = vpop.permute.xlu0 %1563
        %1565 = vrot.lane.b32.xlu0 %v624, 80
        %v1566 = vpop.permute.xlu0 %1565
        %1567 = vrot.lane.b32.xlu0 %v629, 80
        %v1568 = vpop.permute.xlu0 %1567
        %v1569 = vsel %vm672, %v1538, 0
        %v1571 = vsel %vm672, %v1540, 0
        %v1573 = vsel %vm672, %v1542, 0
        %v1575 = vsel %vm672, %v1544, 0
        %v1577 = vsel %vm672, %v1546, 0
        %v1579 = vsel %vm672, %v1548, 0
        %v1581 = vsel %vm672, %v1550, 0
        %v1583 = vsel %vm672, %v1552, 0
        %v1585 = vsel %vm672, %v1554, 0
        %v1587 = vsel %vm672, %v1556, 0
        %v1589 = vsel %vm672, %v1558, 0
        %v1591 = vsel %vm672, %v1560, 0
        %v1593 = vsel %vm672, %v1562, 0
        %v1595 = vsel %vm672, %v1564, 0
        %v1597 = vsel %vm672, %v1566, 0
        %v1599 = vsel %vm672, %v1568, 0
        %1601 = vmatprep.subr.mxu0 0.0
        %1602 = vmatpush1.xpose.msra.mxu0 %v1585
        %1603 = vmatprep.subr.mxu0 0.0
        %1604 = vmatpush1.xpose.msra.mxu0 %v1587
        %1605 = vmatprep.subr.mxu0 0.0
        %1606 = vmatpush1.xpose.msra.mxu0 %v1589
        %1607 = vmatprep.subr.mxu0 0.0
        %1608 = vmatpush1.xpose.msra.mxu0 %v1591
        %1609 = vmatprep.subr.mxu0 0.0
        %1610 = vmatpush1.xpose.msra.mxu0 %v1593
        %1611 = vmatprep.subr.mxu0 0.0
        %1612 = vmatpush1.xpose.msra.mxu0 %v1595
        %1613 = vmatprep.subr.mxu0 0.0
        %1614 = vmatpush1.xpose.msra.mxu0 %v1597
        %1615 = vmatprep.subr.mxu0 0.0
        %1616 = vmatpush1.xpose.msra.mxu0 %v1599
        %1617 = vmatprep.subr.mxu0 0.0
        %1618 = vmatpush1.xpose.msra.mxu0 0.0
        %1619 = vmatprep.subr.mxu0 0.0
        %1620 = vmatpush1.xpose.msra.mxu0 0.0
        %1621 = vmatprep.subr.mxu0 0.0
        %1622 = vmatpush1.xpose.msra.mxu0 0.0
        %1623 = vmatprep.subr.mxu0 0.0
        %1624 = vmatpush1.xpose.msra.mxu0 0.0
        %1625 = vmatprep.subr.mxu0 0.0
        %1626 = vmatpush1.xpose.msra.mxu0 0.0
        %1627 = vmatprep.subr.mxu0 0.0
        %1628 = vmatpush1.xpose.msra.mxu0 0.0
        %1629 = vmatprep.subr.mxu0 0.0
        %1630 = vmatpush1.xpose.msra.mxu0 0.0
        %1631 = vmatprep.subr.mxu0 0.0
        %1632 = vmatpush1.xpose.msra.mxu0 0.0
        %1633 = vmatprep.subr.mxu0 0.0
        %1634 = vmatpush1.xpose.msra.mxu0 0.0
        %1635 = vmatprep.subr.mxu0 0.0
        %1636 = vmatpush1.xpose.msra.mxu0 0.0
        %1637 = vmatprep.subr.mxu0 0.0
        %1638 = vmatpush1.xpose.msra.mxu0 0.0
        %1639 = vmatprep.subr.mxu0 0.0
        %1640 = vmatpush1.xpose.msra.mxu0 0.0
        %1641 = vmatprep.subr.mxu0 0.0
        %1642 = vmatpush1.xpose.msra.mxu0 0.0
        %1643 = vmatprep.subr.mxu0 0.0
        %1644 = vmatpush1.xpose.msra.mxu0 0.0
        %1645 = vmatprep.subr.mxu0 0.0
        %1646 = vmatpush1.xpose.msra.mxu0 0.0
        %1647 = vmatprep.subr.mxu0 0.0
        %1648 = vmatpush1.xpose.msra.mxu0 0.0
        %1649 = vmatprep.subr.mxu0 0.0
        %1650 = vmatpush1.xpose.msra.mxu0 0.0
        %1651 = vmatprep.subr.mxu0 0.0
        %1652 = vmatpush1.xpose.msra.mxu0 0.0
        %1653 = vmatprep.subr.mxu0 0.0
        %1654 = vmatpush1.xpose.msra.mxu0 0.0
        %1655 = vmatprep.subr.mxu0 0.0
        %1656 = vmatpush1.xpose.msra.mxu0 0.0
        %1657 = vmatprep.subr.mxu0 0.0
        %1658 = vmatpush1.xpose.msra.mxu0 0.0
        %1659 = vmatprep.subr.mxu0 0.0
        %1660 = vmatpush1.xpose.msra.mxu0 0.0
        %1661 = vmatprep.subr.mxu0 0.0
        %1662 = vmatpush1.xpose.msra.mxu0 0.0
        %1663 = vmatprep.subr.mxu0 0.0
        %1664 = vmatpush1.xpose.msra.mxu0 0.0
        %1665 = vmatprep.mubr.f32.mxu0 0.0
        %1666 = vmatmul.mubr.f32.gmra.mrb[0].mxu0 %v1569
        %v1667 = vpop.f32.mrb[0].mxu0
        %v1668 = vadd.f32 %v1529, %v1667
        %v1669 = vpop.f32.mrb[0].mxu0
        %1670 = vmatprep.mubr.f32.mxu0 0.0
        %1671 = vmatmul.mubr.f32.gmra.mrb[0].mxu0 %v1571
        %v1672 = vpop.f32.mrb[0].mxu0
        %v1673 = vadd.f32 %v1530, %v1672
        %v1674 = vpop.f32.mrb[0].mxu0
        %1675 = vmatprep.mubr.f32.mxu0 0.0
        %1676 = vmatmul.mubr.f32.gmra.mrb[0].mxu0 %v1573
        %v1677 = vpop.f32.mrb[0].mxu0
        %v1678 = vadd.f32 %v1531, %v1677
        %v1679 = vpop.f32.mrb[0].mxu0
        %1680 = vmatprep.mubr.f32.mxu0 0.0
        %1681 = vmatmul.mubr.f32.gmra.mrb[0].mxu0 %v1575
        %v1682 = vpop.f32.mrb[0].mxu0
        %v1683 = vadd.f32 %v1532, %v1682
        %v1684 = vpop.f32.mrb[0].mxu0
        %1685 = vmatprep.mubr.f32.mxu0 0.0
        %1686 = vmatmul.mubr.f32.gmra.mrb[0].mxu0 %v1577
        %v1687 = vpop.f32.mrb[0].mxu0
        %v1688 = vadd.f32 %v1533, %v1687
        %v1689 = vpop.f32.mrb[0].mxu0
        %1690 = vmatprep.mubr.f32.mxu0 0.0
        %1691 = vmatmul.mubr.f32.gmra.mrb[0].mxu0 %v1579
        %v1692 = vpop.f32.mrb[0].mxu0
        %v1693 = vadd.f32 %v1534, %v1692
        %v1694 = vpop.f32.mrb[0].mxu0
        %1695 = vmatprep.mubr.f32.mxu0 0.0
        %1696 = vmatmul.mubr.f32.gmra.mrb[0].mxu0 %v1581
        %v1697 = vpop.f32.mrb[0].mxu0
        %v1698 = vadd.f32 %v1535, %v1697
        %v1699 = vpop.f32.mrb[0].mxu0
        %1700 = vmatprep.mubr.f32.mxu0 0.0
        %1701 = vmatmul.mubr.f32.gmra.mrb[0].mxu0 %v1583
        %v1702 = vpop.f32.mrb[0].mxu0
        %v1703 = vadd.f32 %v1536, %v1702
        %v1704 = vpop.f32.mrb[0].mxu0
        %1705 = vdwg.mxu0
        %v1706 = vsel %vm818, %v1668, -inf
        %1707 = vmax.xlane.f32.xlu0 %v1706
        %v1708 = vpop.xlane.xlu0 %1707
        %v1709 = vsel %vm818, %v1673, -inf
        %1710 = vmax.xlane.f32.xlu0 %v1709
        %v1711 = vpop.xlane.xlu0 %1710
        %v1712 = vsel %vm818, %v1678, -inf
        %1713 = vmax.xlane.f32.xlu0 %v1712
        %v1714 = vpop.xlane.xlu0 %1713
        %v1715 = vsel %vm818, %v1683, -inf
        %1716 = vmax.xlane.f32.xlu0 %v1715
        %v1717 = vpop.xlane.xlu0 %1716
        %v1718 = vsel %vm818, %v1688, -inf
        %1719 = vmax.xlane.f32.xlu0 %v1718
        %v1720 = vpop.xlane.xlu0 %1719
        %v1721 = vsel %vm818, %v1693, -inf
        %1722 = vmax.xlane.f32.xlu0 %v1721
        %v1723 = vpop.xlane.xlu0 %1722
        %v1724 = vsel %vm818, %v1698, -inf
        %1725 = vmax.xlane.f32.xlu0 %v1724
        %v1726 = vpop.xlane.xlu0 %1725
        %v1727 = vsel %vm818, %v1703, -inf
        %1728 = vmax.xlane.f32.xlu0 %v1727
        %v1729 = vpop.xlane.xlu0 %1728
        %v1730 = vsub.f32 %v1668, %v1708
        %v1731 = vsub.f32 %v1673, %v1711
        %v1732 = vsub.f32 %v1678, %v1714
        %v1733 = vsub.f32 %v1683, %v1717
        %v1734 = vsub.f32 %v1688, %v1720
        %v1735 = vsub.f32 %v1693, %v1723
        %v1736 = vsub.f32 %v1698, %v1726
        %v1737 = vsub.f32 %v1703, %v1729
        %v1738 = vmul.f32 %v1730, 1.442695
        %v1739 = vpow.pop %v1738
        %v1740 = vmul.f32 %v1731, 1.442695
        %v1741 = vpow.pop %v1740
        %v1742 = vmul.f32 %v1732, 1.442695
        %v1743 = vpow.pop %v1742
        %v1744 = vmul.f32 %v1733, 1.442695
        %v1745 = vpow.pop %v1744
        %v1746 = vmul.f32 %v1734, 1.442695
        %v1747 = vpow.pop %v1746
        %v1748 = vmul.f32 %v1735, 1.442695
        %v1749 = vpow.pop %v1748
        %v1750 = vmul.f32 %v1736, 1.442695
        %v1751 = vpow.pop %v1750
        %v1752 = vmul.f32 %v1737, 1.442695
        %v1753 = vpow.pop %v1752
        %v1754 = vsel %vm818, %v1739, 0.0
        %1755 = vadd.xlane.f32.xlu0 %v1754
        %v1756 = vpop.xlane.xlu0 %1755
        %v1757 = vsel %vm818, %v1741, 0.0
        %1758 = vadd.xlane.f32.xlu0 %v1757
        %v1759 = vpop.xlane.xlu0 %1758
        %v1760 = vsel %vm818, %v1743, 0.0
        %1761 = vadd.xlane.f32.xlu0 %v1760
        %v1762 = vpop.xlane.xlu0 %1761
        %v1763 = vsel %vm818, %v1745, 0.0
        %1764 = vadd.xlane.f32.xlu0 %v1763
        %v1765 = vpop.xlane.xlu0 %1764
        %v1766 = vsel %vm818, %v1747, 0.0
        %1767 = vadd.xlane.f32.xlu0 %v1766
        %v1768 = vpop.xlane.xlu0 %1767
        %v1769 = vsel %vm818, %v1749, 0.0
        %1770 = vadd.xlane.f32.xlu0 %v1769
        %v1771 = vpop.xlane.xlu0 %1770
        %v1772 = vsel %vm818, %v1751, 0.0
        %1773 = vadd.xlane.f32.xlu0 %v1772
        %v1774 = vpop.xlane.xlu0 %1773
        %v1775 = vsel %vm818, %v1753, 0.0
        %1776 = vadd.xlane.f32.xlu0 %v1775
        %v1777 = vpop.xlane.xlu0 %1776
        %1778 = vrot.lane.b32.xlu0 %v594, 48
        %v1779 = vpop.permute.xlu0 %1778
        %1780 = vrot.lane.b32.xlu0 %v599, 48
        %v1781 = vpop.permute.xlu0 %1780
        %1782 = vrot.lane.b32.xlu0 %v604, 48
        %v1783 = vpop.permute.xlu0 %1782
        %1784 = vrot.lane.b32.xlu0 %v609, 48
        %v1785 = vpop.permute.xlu0 %1784
        %1786 = vrot.lane.b32.xlu0 %v614, 48
        %v1787 = vpop.permute.xlu0 %1786
        %1788 = vrot.lane.b32.xlu0 %v619, 48
        %v1789 = vpop.permute.xlu0 %1788
        %1790 = vrot.lane.b32.xlu0 %v624, 48
        %v1791 = vpop.permute.xlu0 %1790
        %1792 = vrot.lane.b32.xlu0 %v629, 48
        %v1793 = vpop.permute.xlu0 %1792
        %v1803 = vsel %vm818, %v1739, 0
        %v1806 = vsel %vm818, %v1741, 0
        %v1809 = vsel %vm818, %v1743, 0
        %v1812 = vsel %vm818, %v1745, 0
        %v1815 = vsel %vm818, %v1747, 0
        %v1818 = vsel %vm818, %v1749, 0
        %v1821 = vsel %vm818, %v1751, 0
        %v1824 = vsel %vm818, %v1753, 0
        %1826 = vmatprep.subr.mxu0 0.0
        %1827 = vmatpush1.msra.mxu0 %v1779
        %1828 = vmatprep.subr.mxu0 0.0
        %1829 = vmatpush1.msra.mxu0 %v1781
        %1830 = vmatprep.subr.mxu0 0.0
        %1831 = vmatpush1.msra.mxu0 %v1783
        %1832 = vmatprep.subr.mxu0 0.0
        %1833 = vmatpush1.msra.mxu0 %v1785
        %1834 = vmatprep.subr.mxu0 0.0
        %1835 = vmatpush1.msra.mxu0 %v1787
        %1836 = vmatprep.subr.mxu0 0.0
        %1837 = vmatpush1.msra.mxu0 %v1789
        %1838 = vmatprep.subr.mxu0 0.0
        %1839 = vmatpush1.msra.mxu0 %v1791
        %1840 = vmatprep.subr.mxu0 0.0
        %1841 = vmatpush1.msra.mxu0 %v1793
        %1842 = vmatprep.subr.mxu0 0.0
        %1843 = vmatpush1.msra.mxu0 0.0
        %1844 = vmatprep.subr.mxu0 0.0
        %1845 = vmatpush1.msra.mxu0 0.0
        %1846 = vmatprep.subr.mxu0 0.0
        %1847 = vmatpush1.msra.mxu0 0.0
        %1848 = vmatprep.subr.mxu0 0.0
        %1849 = vmatpush1.msra.mxu0 0.0
        %1850 = vmatprep.subr.mxu0 0.0
        %1851 = vmatpush1.msra.mxu0 0.0
        %1852 = vmatprep.subr.mxu0 0.0
        %1853 = vmatpush1.msra.mxu0 0.0
        %1854 = vmatprep.subr.mxu0 0.0
        %1855 = vmatpush1.msra.mxu0 0.0
        %1856 = vmatprep.subr.mxu0 0.0
        %1857 = vmatpush1.msra.mxu0 0.0
        %1858 = vmatprep.subr.mxu0 0.0
        %1859 = vmatpush1.msra.mxu0 0.0
        %1860 = vmatprep.subr.mxu0 0.0
        %1861 = vmatpush1.msra.mxu0 0.0
        %1862 = vmatprep.subr.mxu0 0.0
        %1863 = vmatpush1.msra.mxu0 0.0
        %1864 = vmatprep.subr.mxu0 0.0
        %1865 = vmatpush1.msra.mxu0 0.0
        %1866 = vmatprep.subr.mxu0 0.0
        %1867 = vmatpush1.msra.mxu0 0.0
        %1868 = vmatprep.subr.mxu0 0.0
        %1869 = vmatpush1.msra.mxu0 0.0
        %1870 = vmatprep.subr.mxu0 0.0
        %1871 = vmatpush1.msra.mxu0 0.0
        %1872 = vmatprep.subr.mxu0 0.0
        %1873 = vmatpush1.msra.mxu0 0.0
        %1874 = vmatprep.subr.mxu0 0.0
        %1875 = vmatpush1.msra.mxu0 0.0
        %1876 = vmatprep.subr.mxu0 0.0
        %1877 = vmatpush1.msra.mxu0 0.0
        %1878 = vmatprep.subr.mxu0 0.0
        %1879 = vmatpush1.msra.mxu0 0.0
        %1880 = vmatprep.subr.mxu0 0.0
        %1881 = vmatpush1.msra.mxu0 0.0
        %1882 = vmatprep.subr.mxu0 0.0
        %1883 = vmatpush1.msra.mxu0 0.0
        %1884 = vmatprep.subr.mxu0 0.0
        %1885 = vmatpush1.msra.mxu0 0.0
        %1886 = vmatprep.subr.mxu0 0.0
        %1887 = vmatpush1.msra.mxu0 0.0
        %1888 = vmatprep.subr.mxu0 0.0
        %1889 = vmatpush1.msra.mxu0 0.0
        %1890 = vmatprep.mubr.f32.mxu0 0.0
        %1891 = vmatmul.mubr.f32.gmra.mrb[0].mxu0 %v1803
        %v1892 = vpop.f32.mrb[0].mxu0
        %v1893 = vadd.f32 0.0, %v1892
        %v1894 = vpop.f32.mrb[0].mxu0
        %1895 = vmatprep.mubr.f32.mxu0 0.0
        %1896 = vmatmul.mubr.f32.gmra.mrb[0].mxu0 %v1806
        %v1897 = vpop.f32.mrb[0].mxu0
        %v1898 = vadd.f32 0.0, %v1897
        %v1899 = vpop.f32.mrb[0].mxu0
        %1900 = vmatprep.mubr.f32.mxu0 0.0
        %1901 = vmatmul.mubr.f32.gmra.mrb[0].mxu0 %v1809
        %v1902 = vpop.f32.mrb[0].mxu0
        %v1903 = vadd.f32 0.0, %v1902
        %v1904 = vpop.f32.mrb[0].mxu0
        %1905 = vmatprep.mubr.f32.mxu0 0.0
        %1906 = vmatmul.mubr.f32.gmra.mrb[0].mxu0 %v1812
        %v1907 = vpop.f32.mrb[0].mxu0
        %v1908 = vadd.f32 0.0, %v1907
        %v1909 = vpop.f32.mrb[0].mxu0
        %1910 = vmatprep.mubr.f32.mxu0 0.0
        %1911 = vmatmul.mubr.f32.gmra.mrb[0].mxu0 %v1815
        %v1912 = vpop.f32.mrb[0].mxu0
        %v1913 = vadd.f32 0.0, %v1912
        %v1914 = vpop.f32.mrb[0].mxu0
        %1915 = vmatprep.mubr.f32.mxu0 0.0
        %1916 = vmatmul.mubr.f32.gmra.mrb[0].mxu0 %v1818
        %v1917 = vpop.f32.mrb[0].mxu0
        %v1918 = vadd.f32 0.0, %v1917
        %v1919 = vpop.f32.mrb[0].mxu0
        %1920 = vmatprep.mubr.f32.mxu0 0.0
        %1921 = vmatmul.mubr.f32.gmra.mrb[0].mxu0 %v1821
        %v1922 = vpop.f32.mrb[0].mxu0
        %v1923 = vadd.f32 0.0, %v1922
        %v1924 = vpop.f32.mrb[0].mxu0
        %1925 = vmatprep.mubr.f32.mxu0 0.0
        %1926 = vmatmul.mubr.f32.gmra.mrb[0].mxu0 %v1824
        %v1927 = vpop.f32.mrb[0].mxu0
        %v1928 = vadd.f32 0.0, %v1927
        %v1929 = vpop.f32.mrb[0].mxu0
        %1930 = vdwg.mxu0
        %v1931 = vrcp.pop %v1756
        %v1932 = vrcp.pop %v1759
        %v1933 = vrcp.pop %v1762
        %v1934 = vrcp.pop %v1765
        %v1935 = vrcp.pop %v1768
        %v1936 = vrcp.pop %v1771
        %v1937 = vrcp.pop %v1774
        %v1938 = vrcp.pop %v1777
        %v1939 = vmul.f32 %v1893, %v1931
        %v1940 = vmul.f32 %v1898, %v1932
        %v1941 = vmul.f32 %v1903, %v1933
        %v1942 = vmul.f32 %v1908, %v1934
        %v1943 = vmul.f32 %v1913, %v1935
        %v1944 = vmul.f32 %v1918, %v1936
        %v1945 = vmul.f32 %v1923, %v1937
        %v1946 = vmul.f32 %v1928, %v1938
        %1955 = vrot.lane.b32.xlu0 %v1939, 16
        %v1956 = vpop.permute.xlu0 %1955
        %1957 = vrot.lane.b32.xlu0 %v1940, 16
        %v1958 = vpop.permute.xlu0 %1957
        %1959 = vrot.lane.b32.xlu0 %v1941, 16
        %v1960 = vpop.permute.xlu0 %1959
        %1961 = vrot.lane.b32.xlu0 %v1942, 16
        %v1962 = vpop.permute.xlu0 %1961
        %1963 = vrot.lane.b32.xlu0 %v1943, 16
        %v1964 = vpop.permute.xlu0 %1963
        %1965 = vrot.lane.b32.xlu0 %v1944, 16
        %v1966 = vpop.permute.xlu0 %1965
        %1967 = vrot.lane.b32.xlu0 %v1945, 16
        %v1968 = vpop.permute.xlu0 %1967
        %1969 = vrot.lane.b32.xlu0 %v1946, 16
        %v1970 = vpop.permute.xlu0 %1969
        %vm1979 = vcmask 195712
        %1980 = vst.msk [vmem:[#allocation2] sm:$0xff] %vm1979, %v1956
        %1981 = vst.msk [vmem:[#allocation2 + $0x8] sm:$0xff] %vm1979, %v1958
        %1982 = vst.msk [vmem:[#allocation2 + $0x10] sm:$0xff] %vm1979, %v1960
        %1983 = vst.msk [vmem:[#allocation2 + $0x18] sm:$0xff] %vm1979, %v1962
        %1984 = vst.msk [vmem:[#allocation2 + $0x20] sm:$0xff] %vm1979, %v1964
        %1985 = vst.msk [vmem:[#allocation2 + $0x28] sm:$0xff] %vm1979, %v1966
        %1986 = vst.msk [vmem:[#allocation2 + $0x30] sm:$0xff] %vm1979, %v1968
        %1987 = vst.msk [vmem:[#allocation2 + $0x38] sm:$0xff] %vm1979, %v1970
        %s1988 = scalar_lea.vmem [#allocation3], 192
        %v1989 = vld [vmem:[%s1988] sm:$0xff]
        %v1990 = vld [vmem:[%s1988 + $0x8] sm:$0xff]
        %v1991 = vld [vmem:[%s1988 + $0x10] sm:$0xff]
        %v1992 = vld [vmem:[%s1988 + $0x18] sm:$0xff]
        %v1993 = vld [vmem:[%s1988 + $0x20] sm:$0xff]
        %v1994 = vld [vmem:[%s1988 + $0x28] sm:$0xff]
        %v1995 = vld [vmem:[%s1988 + $0x30] sm:$0xff]
        %v1996 = vld [vmem:[%s1988 + $0x38] sm:$0xff]
        %1997 = vrot.lane.b32.xlu0 %v632, 104
        %v1998 = vpop.permute.xlu0 %1997
        %1999 = vrot.lane.b32.xlu0 %v633, 104
        %v2000 = vpop.permute.xlu0 %1999
        %2001 = vrot.lane.b32.xlu0 %v634, 104
        %v2002 = vpop.permute.xlu0 %2001
        %2003 = vrot.lane.b32.xlu0 %v635, 104
        %v2004 = vpop.permute.xlu0 %2003
        %2005 = vrot.lane.b32.xlu0 %v636, 104
        %v2006 = vpop.permute.xlu0 %2005
        %2007 = vrot.lane.b32.xlu0 %v637, 104
        %v2008 = vpop.permute.xlu0 %2007
        %2009 = vrot.lane.b32.xlu0 %v638, 104
        %v2010 = vpop.permute.xlu0 %2009
        %2011 = vrot.lane.b32.xlu0 %v639, 104
        %v2012 = vpop.permute.xlu0 %2011
        %2013 = vrot.lane.b32.xlu0 %v594, 72
        %v2014 = vpop.permute.xlu0 %2013
        %2015 = vrot.lane.b32.xlu0 %v599, 72
        %v2016 = vpop.permute.xlu0 %2015
        %2017 = vrot.lane.b32.xlu0 %v604, 72
        %v2018 = vpop.permute.xlu0 %2017
        %2019 = vrot.lane.b32.xlu0 %v609, 72
        %v2020 = vpop.permute.xlu0 %2019
        %2021 = vrot.lane.b32.xlu0 %v614, 72
        %v2022 = vpop.permute.xlu0 %2021
        %2023 = vrot.lane.b32.xlu0 %v619, 72
        %v2024 = vpop.permute.xlu0 %2023
        %2025 = vrot.lane.b32.xlu0 %v624, 72
        %v2026 = vpop.permute.xlu0 %2025
        %2027 = vrot.lane.b32.xlu0 %v629, 72
        %v2028 = vpop.permute.xlu0 %2027
        %v2029 = vsel %vm672, %v1998, 0
        %v2031 = vsel %vm672, %v2000, 0
        %v2033 = vsel %vm672, %v2002, 0
        %v2035 = vsel %vm672, %v2004, 0
        %v2037 = vsel %vm672, %v2006, 0
        %v2039 = vsel %vm672, %v2008, 0
        %v2041 = vsel %vm672, %v2010, 0
        %v2043 = vsel %vm672, %v2012, 0
        %v2045 = vsel %vm672, %v2014, 0
        %v2047 = vsel %vm672, %v2016, 0
        %v2049 = vsel %vm672, %v2018, 0
        %v2051 = vsel %vm672, %v2020, 0
        %v2053 = vsel %vm672, %v2022, 0
        %v2055 = vsel %vm672, %v2024, 0
        %v2057 = vsel %vm672, %v2026, 0
        %v2059 = vsel %vm672, %v2028, 0
        %2061 = vmatprep.subr.mxu0 0.0
        %2062 = vmatpush1.xpose.msra.mxu0 %v2045
        %2063 = vmatprep.subr.mxu0 0.0
        %2064 = vmatpush1.xpose.msra.mxu0 %v2047
        %2065 = vmatprep.subr.mxu0 0.0
        %2066 = vmatpush1.xpose.msra.mxu0 %v2049
        %2067 = vmatprep.subr.mxu0 0.0
        %2068 = vmatpush1.xpose.msra.mxu0 %v2051
        %2069 = vmatprep.subr.mxu0 0.0
        %2070 = vmatpush1.xpose.msra.mxu0 %v2053
        %2071 = vmatprep.subr.mxu0 0.0
        %2072 = vmatpush1.xpose.msra.mxu0 %v2055
        %2073 = vmatprep.subr.mxu0 0.0
        %2074 = vmatpush1.xpose.msra.mxu0 %v2057
        %2075 = vmatprep.subr.mxu0 0.0
        %2076 = vmatpush1.xpose.msra.mxu0 %v2059
        %2077 = vmatprep.subr.mxu0 0.0
        %2078 = vmatpush1.xpose.msra.mxu0 0.0
        %2079 = vmatprep.subr.mxu0 0.0
        %2080 = vmatpush1.xpose.msra.mxu0 0.0
        %2081 = vmatprep.subr.mxu0 0.0
        %2082 = vmatpush1.xpose.msra.mxu0 0.0
        %2083 = vmatprep.subr.mxu0 0.0
        %2084 = vmatpush1.xpose.msra.mxu0 0.0
        %2085 = vmatprep.subr.mxu0 0.0
        %2086 = vmatpush1.xpose.msra.mxu0 0.0
        %2087 = vmatprep.subr.mxu0 0.0
        %2088 = vmatpush1.xpose.msra.mxu0 0.0
        %2089 = vmatprep.subr.mxu0 0.0
        %2090 = vmatpush1.xpose.msra.mxu0 0.0
        %2091 = vmatprep.subr.mxu0 0.0
        %2092 = vmatpush1.xpose.msra.mxu0 0.0
        %2093 = vmatprep.subr.mxu0 0.0
        %2094 = vmatpush1.xpose.msra.mxu0 0.0
        %2095 = vmatprep.subr.mxu0 0.0
        %2096 = vmatpush1.xpose.msra.mxu0 0.0
        %2097 = vmatprep.subr.mxu0 0.0
        %2098 = vmatpush1.xpose.msra.mxu0 0.0
        %2099 = vmatprep.subr.mxu0 0.0
        %2100 = vmatpush1.xpose.msra.mxu0 0.0
        %2101 = vmatprep.subr.mxu0 0.0
        %2102 = vmatpush1.xpose.msra.mxu0 0.0
        %2103 = vmatprep.subr.mxu0 0.0
        %2104 = vmatpush1.xpose.msra.mxu0 0.0
        %2105 = vmatprep.subr.mxu0 0.0
        %2106 = vmatpush1.xpose.msra.mxu0 0.0
        %2107 = vmatprep.subr.mxu0 0.0
        %2108 = vmatpush1.xpose.msra.mxu0 0.0
        %2109 = vmatprep.subr.mxu0 0.0
        %2110 = vmatpush1.xpose.msra.mxu0 0.0
        %2111 = vmatprep.subr.mxu0 0.0
        %2112 = vmatpush1.xpose.msra.mxu0 0.0
        %2113 = vmatprep.subr.mxu0 0.0
        %2114 = vmatpush1.xpose.msra.mxu0 0.0
        %2115 = vmatprep.subr.mxu0 0.0
        %2116 = vmatpush1.xpose.msra.mxu0 0.0
        %2117 = vmatprep.subr.mxu0 0.0
        %2118 = vmatpush1.xpose.msra.mxu0 0.0
        %2119 = vmatprep.subr.mxu0 0.0
        %2120 = vmatpush1.xpose.msra.mxu0 0.0
        %2121 = vmatprep.subr.mxu0 0.0
        %2122 = vmatpush1.xpose.msra.mxu0 0.0
        %2123 = vmatprep.subr.mxu0 0.0
        %2124 = vmatpush1.xpose.msra.mxu0 0.0
        %2125 = vmatprep.mubr.f32.mxu0 0.0
        %2126 = vmatmul.mubr.f32.gmra.mrb[0].mxu0 %v2029
        %v2127 = vpop.f32.mrb[0].mxu0
        %v2128 = vadd.f32 %v1989, %v2127
        %v2129 = vpop.f32.mrb[0].mxu0
        %2130 = vmatprep.mubr.f32.mxu0 0.0
        %2131 = vmatmul.mubr.f32.gmra.mrb[0].mxu0 %v2031
        %v2132 = vpop.f32.mrb[0].mxu0
        %v2133 = vadd.f32 %v1990, %v2132
        %v2134 = vpop.f32.mrb[0].mxu0
        %2135 = vmatprep.mubr.f32.mxu0 0.0
        %2136 = vmatmul.mubr.f32.gmra.mrb[0].mxu0 %v2033
        %v2137 = vpop.f32.mrb[0].mxu0
        %v2138 = vadd.f32 %v1991, %v2137
        %v2139 = vpop.f32.mrb[0].mxu0
        %2140 = vmatprep.mubr.f32.mxu0 0.0
        %2141 = vmatmul.mubr.f32.gmra.mrb[0].mxu0 %v2035
        %v2142 = vpop.f32.mrb[0].mxu0
        %v2143 = vadd.f32 %v1992, %v2142
        %v2144 = vpop.f32.mrb[0].mxu0
        %2145 = vmatprep.mubr.f32.mxu0 0.0
        %2146 = vmatmul.mubr.f32.gmra.mrb[0].mxu0 %v2037
        %v2147 = vpop.f32.mrb[0].mxu0
        %v2148 = vadd.f32 %v1993, %v2147
        %v2149 = vpop.f32.mrb[0].mxu0
        %2150 = vmatprep.mubr.f32.mxu0 0.0
        %2151 = vmatmul.mubr.f32.gmra.mrb[0].mxu0 %v2039
        %v2152 = vpop.f32.mrb[0].mxu0
        %v2153 = vadd.f32 %v1994, %v2152
        %v2154 = vpop.f32.mrb[0].mxu0
        %2155 = vmatprep.mubr.f32.mxu0 0.0
        %2156 = vmatmul.mubr.f32.gmra.mrb[0].mxu0 %v2041
        %v2157 = vpop.f32.mrb[0].mxu0
        %v2158 = vadd.f32 %v1995, %v2157
        %v2159 = vpop.f32.mrb[0].mxu0
        %2160 = vmatprep.mubr.f32.mxu0 0.0
        %2161 = vmatmul.mubr.f32.gmra.mrb[0].mxu0 %v2043
        %v2162 = vpop.f32.mrb[0].mxu0
        %v2163 = vadd.f32 %v1996, %v2162
        %v2164 = vpop.f32.mrb[0].mxu0
        %2165 = vdwg.mxu0
        %v2166 = vsel %vm818, %v2128, -inf
        %2167 = vmax.xlane.f32.xlu0 %v2166
        %v2168 = vpop.xlane.xlu0 %2167
        %v2169 = vsel %vm818, %v2133, -inf
        %2170 = vmax.xlane.f32.xlu0 %v2169
        %v2171 = vpop.xlane.xlu0 %2170
        %v2172 = vsel %vm818, %v2138, -inf
        %2173 = vmax.xlane.f32.xlu0 %v2172
        %v2174 = vpop.xlane.xlu0 %2173
        %v2175 = vsel %vm818, %v2143, -inf
        %2176 = vmax.xlane.f32.xlu0 %v2175
        %v2177 = vpop.xlane.xlu0 %2176
        %v2178 = vsel %vm818, %v2148, -inf
        %2179 = vmax.xlane.f32.xlu0 %v2178
        %v2180 = vpop.xlane.xlu0 %2179
        %v2181 = vsel %vm818, %v2153, -inf
        %2182 = vmax.xlane.f32.xlu0 %v2181
        %v2183 = vpop.xlane.xlu0 %2182
        %v2184 = vsel %vm818, %v2158, -inf
        %2185 = vmax.xlane.f32.xlu0 %v2184
        %v2186 = vpop.xlane.xlu0 %2185
        %v2187 = vsel %vm818, %v2163, -inf
        %2188 = vmax.xlane.f32.xlu0 %v2187
        %v2189 = vpop.xlane.xlu0 %2188
        %v2190 = vsub.f32 %v2128, %v2168
        %v2191 = vsub.f32 %v2133, %v2171
        %v2192 = vsub.f32 %v2138, %v2174
        %v2193 = vsub.f32 %v2143, %v2177
        %v2194 = vsub.f32 %v2148, %v2180
        %v2195 = vsub.f32 %v2153, %v2183
        %v2196 = vsub.f32 %v2158, %v2186
        %v2197 = vsub.f32 %v2163, %v2189
        %v2198 = vmul.f32 %v2190, 1.442695
        %v2199 = vpow.pop %v2198
        %v2200 = vmul.f32 %v2191, 1.442695
        %v2201 = vpow.pop %v2200
        %v2202 = vmul.f32 %v2192, 1.442695
        %v2203 = vpow.pop %v2202
        %v2204 = vmul.f32 %v2193, 1.442695
        %v2205 = vpow.pop %v2204
        %v2206 = vmul.f32 %v2194, 1.442695
        %v2207 = vpow.pop %v2206
        %v2208 = vmul.f32 %v2195, 1.442695
        %v2209 = vpow.pop %v2208
        %v2210 = vmul.f32 %v2196, 1.442695
        %v2211 = vpow.pop %v2210
        %v2212 = vmul.f32 %v2197, 1.442695
        %v2213 = vpow.pop %v2212
        %v2214 = vsel %vm818, %v2199, 0.0
        %2215 = vadd.xlane.f32.xlu0 %v2214
        %v2216 = vpop.xlane.xlu0 %2215
        %v2217 = vsel %vm818, %v2201, 0.0
        %2218 = vadd.xlane.f32.xlu0 %v2217
        %v2219 = vpop.xlane.xlu0 %2218
        %v2220 = vsel %vm818, %v2203, 0.0
        %2221 = vadd.xlane.f32.xlu0 %v2220
        %v2222 = vpop.xlane.xlu0 %2221
        %v2223 = vsel %vm818, %v2205, 0.0
        %2224 = vadd.xlane.f32.xlu0 %v2223
        %v2225 = vpop.xlane.xlu0 %2224
        %v2226 = vsel %vm818, %v2207, 0.0
        %2227 = vadd.xlane.f32.xlu0 %v2226
        %v2228 = vpop.xlane.xlu0 %2227
        %v2229 = vsel %vm818, %v2209, 0.0
        %2230 = vadd.xlane.f32.xlu0 %v2229
        %v2231 = vpop.xlane.xlu0 %2230
        %v2232 = vsel %vm818, %v2211, 0.0
        %2233 = vadd.xlane.f32.xlu0 %v2232
        %v2234 = vpop.xlane.xlu0 %2233
        %v2235 = vsel %vm818, %v2213, 0.0
        %2236 = vadd.xlane.f32.xlu0 %v2235
        %v2237 = vpop.xlane.xlu0 %2236
        %2238 = vrot.lane.b32.xlu0 %v594, 40
        %v2239 = vpop.permute.xlu0 %2238
        %2240 = vrot.lane.b32.xlu0 %v599, 40
        %v2241 = vpop.permute.xlu0 %2240
        %2242 = vrot.lane.b32.xlu0 %v604, 40
        %v2243 = vpop.permute.xlu0 %2242
        %2244 = vrot.lane.b32.xlu0 %v609, 40
        %v2245 = vpop.permute.xlu0 %2244
        %2246 = vrot.lane.b32.xlu0 %v614, 40
        %v2247 = vpop.permute.xlu0 %2246
        %2248 = vrot.lane.b32.xlu0 %v619, 40
        %v2249 = vpop.permute.xlu0 %2248
        %2250 = vrot.lane.b32.xlu0 %v624, 40
        %v2251 = vpop.permute.xlu0 %2250
        %2252 = vrot.lane.b32.xlu0 %v629, 40
        %v2253 = vpop.permute.xlu0 %2252
        %v2263 = vsel %vm818, %v2199, 0
        %v2266 = vsel %vm818, %v2201, 0
        %v2269 = vsel %vm818, %v2203, 0
        %v2272 = vsel %vm818, %v2205, 0
        %v2275 = vsel %vm818, %v2207, 0
        %v2278 = vsel %vm818, %v2209, 0
        %v2281 = vsel %vm818, %v2211, 0
        %v2284 = vsel %vm818, %v2213, 0
        %2286 = vmatprep.subr.mxu0 0.0
        %2287 = vmatpush1.msra.mxu0 %v2239
        %2288 = vmatprep.subr.mxu0 0.0
        %2289 = vmatpush1.msra.mxu0 %v2241
        %2290 = vmatprep.subr.mxu0 0.0
        %2291 = vmatpush1.msra.mxu0 %v2243
        %2292 = vmatprep.subr.mxu0 0.0
        %2293 = vmatpush1.msra.mxu0 %v2245
        %2294 = vmatprep.subr.mxu0 0.0
        %2295 = vmatpush1.msra.mxu0 %v2247
        %2296 = vmatprep.subr.mxu0 0.0
        %2297 = vmatpush1.msra.mxu0 %v2249
        %2298 = vmatprep.subr.mxu0 0.0
        %2299 = vmatpush1.msra.mxu0 %v2251
        %2300 = vmatprep.subr.mxu0 0.0
        %2301 = vmatpush1.msra.mxu0 %v2253
        %2302 = vmatprep.subr.mxu0 0.0
        %2303 = vmatpush1.msra.mxu0 0.0
        %2304 = vmatprep.subr.mxu0 0.0
        %2305 = vmatpush1.msra.mxu0 0.0
        %2306 = vmatprep.subr.mxu0 0.0
        %2307 = vmatpush1.msra.mxu0 0.0
        %2308 = vmatprep.subr.mxu0 0.0
        %2309 = vmatpush1.msra.mxu0 0.0
        %2310 = vmatprep.subr.mxu0 0.0
        %2311 = vmatpush1.msra.mxu0 0.0
        %2312 = vmatprep.subr.mxu0 0.0
        %2313 = vmatpush1.msra.mxu0 0.0
        %2314 = vmatprep.subr.mxu0 0.0
        %2315 = vmatpush1.msra.mxu0 0.0
        %2316 = vmatprep.subr.mxu0 0.0
        %2317 = vmatpush1.msra.mxu0 0.0
        %2318 = vmatprep.subr.mxu0 0.0
        %2319 = vmatpush1.msra.mxu0 0.0
        %2320 = vmatprep.subr.mxu0 0.0
        %2321 = vmatpush1.msra.mxu0 0.0
        %2322 = vmatprep.subr.mxu0 0.0
        %2323 = vmatpush1.msra.mxu0 0.0
        %2324 = vmatprep.subr.mxu0 0.0
        %2325 = vmatpush1.msra.mxu0 0.0
        %2326 = vmatprep.subr.mxu0 0.0
        %2327 = vmatpush1.msra.mxu0 0.0
        %2328 = vmatprep.subr.mxu0 0.0
        %2329 = vmatpush1.msra.mxu0 0.0
        %2330 = vmatprep.subr.mxu0 0.0
        %2331 = vmatpush1.msra.mxu0 0.0
        %2332 = vmatprep.subr.mxu0 0.0
        %2333 = vmatpush1.msra.mxu0 0.0
        %2334 = vmatprep.subr.mxu0 0.0
        %2335 = vmatpush1.msra.mxu0 0.0
        %2336 = vmatprep.subr.mxu0 0.0
        %2337 = vmatpush1.msra.mxu0 0.0
        %2338 = vmatprep.subr.mxu0 0.0
        %2339 = vmatpush1.msra.mxu0 0.0
        %2340 = vmatprep.subr.mxu0 0.0
        %2341 = vmatpush1.msra.mxu0 0.0
        %2342 = vmatprep.subr.mxu0 0.0
        %2343 = vmatpush1.msra.mxu0 0.0
        %2344 = vmatprep.subr.mxu0 0.0
        %2345 = vmatpush1.msra.mxu0 0.0
        %2346 = vmatprep.subr.mxu0 0.0
        %2347 = vmatpush1.msra.mxu0 0.0
        %2348 = vmatprep.subr.mxu0 0.0
        %2349 = vmatpush1.msra.mxu0 0.0
        %2350 = vmatprep.mubr.f32.mxu0 0.0
        %2351 = vmatmul.mubr.f32.gmra.mrb[0].mxu0 %v2263
        %v2352 = vpop.f32.mrb[0].mxu0
        %v2353 = vadd.f32 0.0, %v2352
        %v2354 = vpop.f32.mrb[0].mxu0
        %2355 = vmatprep.mubr.f32.mxu0 0.0
        %2356 = vmatmul.mubr.f32.gmra.mrb[0].mxu0 %v2266
        %v2357 = vpop.f32.mrb[0].mxu0
        %v2358 = vadd.f32 0.0, %v2357
        %v2359 = vpop.f32.mrb[0].mxu0
        %2360 = vmatprep.mubr.f32.mxu0 0.0
        %2361 = vmatmul.mubr.f32.gmra.mrb[0].mxu0 %v2269
        %v2362 = vpop.f32.mrb[0].mxu0
        %v2363 = vadd.f32 0.0, %v2362
        %v2364 = vpop.f32.mrb[0].mxu0
        %2365 = vmatprep.mubr.f32.mxu0 0.0
        %2366 = vmatmul.mubr.f32.gmra.mrb[0].mxu0 %v2272
        %v2367 = vpop.f32.mrb[0].mxu0
        %v2368 = vadd.f32 0.0, %v2367
        %v2369 = vpop.f32.mrb[0].mxu0
        %2370 = vmatprep.mubr.f32.mxu0 0.0
        %2371 = vmatmul.mubr.f32.gmra.mrb[0].mxu0 %v2275
        %v2372 = vpop.f32.mrb[0].mxu0
        %v2373 = vadd.f32 0.0, %v2372
        %v2374 = vpop.f32.mrb[0].mxu0
        %2375 = vmatprep.mubr.f32.mxu0 0.0
        %2376 = vmatmul.mubr.f32.gmra.mrb[0].mxu0 %v2278
        %v2377 = vpop.f32.mrb[0].mxu0
        %v2378 = vadd.f32 0.0, %v2377
        %v2379 = vpop.f32.mrb[0].mxu0
        %2380 = vmatprep.mubr.f32.mxu0 0.0
        %2381 = vmatmul.mubr.f32.gmra.mrb[0].mxu0 %v2281
        %v2382 = vpop.f32.mrb[0].mxu0
        %v2383 = vadd.f32 0.0, %v2382
        %v2384 = vpop.f32.mrb[0].mxu0
        %2385 = vmatprep.mubr.f32.mxu0 0.0
        %2386 = vmatmul.mubr.f32.gmra.mrb[0].mxu0 %v2284
        %v2387 = vpop.f32.mrb[0].mxu0
        %v2388 = vadd.f32 0.0, %v2387
        %v2389 = vpop.f32.mrb[0].mxu0
        %2390 = vdwg.mxu0
        %v2391 = vrcp.pop %v2216
        %v2392 = vrcp.pop %v2219
        %v2393 = vrcp.pop %v2222
        %v2394 = vrcp.pop %v2225
        %v2395 = vrcp.pop %v2228
        %v2396 = vrcp.pop %v2231
        %v2397 = vrcp.pop %v2234
        %v2398 = vrcp.pop %v2237
        %v2399 = vmul.f32 %v2353, %v2391
        %v2400 = vmul.f32 %v2358, %v2392
        %v2401 = vmul.f32 %v2363, %v2393
        %v2402 = vmul.f32 %v2368, %v2394
        %v2403 = vmul.f32 %v2373, %v2395
        %v2404 = vmul.f32 %v2378, %v2396
        %v2405 = vmul.f32 %v2383, %v2397
        %v2406 = vmul.f32 %v2388, %v2398
        %2415 = vrot.lane.b32.xlu0 %v2399, 24
        %v2416 = vpop.permute.xlu0 %2415
        %2417 = vrot.lane.b32.xlu0 %v2400, 24
        %v2418 = vpop.permute.xlu0 %2417
        %2419 = vrot.lane.b32.xlu0 %v2401, 24
        %v2420 = vpop.permute.xlu0 %2419
        %2421 = vrot.lane.b32.xlu0 %v2402, 24
        %v2422 = vpop.permute.xlu0 %2421
        %2423 = vrot.lane.b32.xlu0 %v2403, 24
        %v2424 = vpop.permute.xlu0 %2423
        %2425 = vrot.lane.b32.xlu0 %v2404, 24
        %v2426 = vpop.permute.xlu0 %2425
        %2427 = vrot.lane.b32.xlu0 %v2405, 24
        %v2428 = vpop.permute.xlu0 %2427
        %2429 = vrot.lane.b32.xlu0 %v2406, 24
        %v2430 = vpop.permute.xlu0 %2429
        %vm2439 = vcmask 261312
        %2440 = vst.msk [vmem:[#allocation2] sm:$0xff] %vm2439, %v2416
        %2441 = vst.msk [vmem:[#allocation2 + $0x8] sm:$0xff] %vm2439, %v2418
        %2442 = vst.msk [vmem:[#allocation2 + $0x10] sm:$0xff] %vm2439, %v2420
        %2443 = vst.msk [vmem:[#allocation2 + $0x18] sm:$0xff] %vm2439, %v2422
        %2444 = vst.msk [vmem:[#allocation2 + $0x20] sm:$0xff] %vm2439, %v2424
        %2445 = vst.msk [vmem:[#allocation2 + $0x28] sm:$0xff] %vm2439, %v2426
        %2446 = vst.msk [vmem:[#allocation2 + $0x30] sm:$0xff] %vm2439, %v2428
        %2447 = vst.msk [vmem:[#allocation2 + $0x38] sm:$0xff] %vm2439, %v2430
        %v2448 = vld [vmem:[#allocation2] sm:$0xff]
        %v2449 = vld [vmem:[#allocation2 + $0x8] sm:$0xff]
        %v2450 = vld [vmem:[#allocation2 + $0x10] sm:$0xff]
        %v2451 = vld [vmem:[#allocation2 + $0x18] sm:$0xff]
        %v2452 = vld [vmem:[#allocation2 + $0x20] sm:$0xff]
        %v2453 = vld [vmem:[#allocation2 + $0x28] sm:$0xff]
        %v2454 = vld [vmem:[#allocation2 + $0x30] sm:$0xff]
        %v2455 = vld [vmem:[#allocation2 + $0x38] sm:$0xff]
        %v2456 = vld [vmem:[%s4] sm:$0xff]
        %v2457 = vld [vmem:[%s4 + $0x8] sm:$0xff]
        %v2458 = vld [vmem:[%s4 + $0x10] sm:$0xff]
        %v2459 = vld [vmem:[%s4 + $0x18] sm:$0xff]
        %v2460 = vld [vmem:[%s5] sm:$0x1]
        %v2462 = vlaneseq
        %v2463 = vshrl.u32 %v2462, 7
        %v2464 = vsub.s32 0, %v2463
        %v2465 = vrot.slane %v2460, %v2464
        %v2468 = vsel %vm502, %v2448, 0
        %v2471 = vsel %vm502, %v2449, 0
        %v2474 = vsel %vm502, %v2450, 0
        %v2477 = vsel %vm502, %v2451, 0
        %v2480 = vsel %vm502, %v2452, 0
        %v2483 = vsel %vm502, %v2453, 0
        %v2486 = vsel %vm502, %v2454, 0
        %v2489 = vsel %vm502, %v2455, 0
        %2491 = vmatprep.subr.mxu0 0.0
        %2492 = vmatpush1.msra.mxu0 %v2456
        %2493 = vmatprep.subr.mxu0 0.0
        %2494 = vmatpush1.msra.mxu0 %v2457
        %2495 = vmatprep.subr.mxu0 0.0
        %2496 = vmatpush1.msra.mxu0 %v2458
        %2497 = vmatprep.subr.mxu0 0.0
        %2498 = vmatpush1.msra.mxu0 %v2459
        %2499 = vmatprep.subr.mxu0 0.0
        %2500 = vmatpush1.msra.mxu0 0.0
        %2501 = vmatprep.subr.mxu0 0.0
        %2502 = vmatpush1.msra.mxu0 0.0
        %2503 = vmatprep.subr.mxu0 0.0
        %2504 = vmatpush1.msra.mxu0 0.0
        %2505 = vmatprep.subr.mxu0 0.0
        %2506 = vmatpush1.msra.mxu0 0.0
        %2507 = vmatprep.subr.mxu0 0.0
        %2508 = vmatpush1.msra.mxu0 0.0
        %2509 = vmatprep.subr.mxu0 0.0
        %2510 = vmatpush1.msra.mxu0 0.0
        %2511 = vmatprep.subr.mxu0 0.0
        %2512 = vmatpush1.msra.mxu0 0.0
        %2513 = vmatprep.subr.mxu0 0.0
        %2514 = vmatpush1.msra.mxu0 0.0
        %2515 = vmatprep.subr.mxu0 0.0
        %2516 = vmatpush1.msra.mxu0 0.0
        %2517 = vmatprep.subr.mxu0 0.0
        %2518 = vmatpush1.msra.mxu0 0.0
        %2519 = vmatprep.subr.mxu0 0.0
        %2520 = vmatpush1.msra.mxu0 0.0
        %2521 = vmatprep.subr.mxu0 0.0
        %2522 = vmatpush1.msra.mxu0 0.0
        %2523 = vmatprep.subr.mxu0 0.0
        %2524 = vmatpush1.msra.mxu0 0.0
        %2525 = vmatprep.subr.mxu0 0.0
        %2526 = vmatpush1.msra.mxu0 0.0
        %2527 = vmatprep.subr.mxu0 0.0
        %2528 = vmatpush1.msra.mxu0 0.0
        %2529 = vmatprep.subr.mxu0 0.0
        %2530 = vmatpush1.msra.mxu0 0.0
        %2531 = vmatprep.subr.mxu0 0.0
        %2532 = vmatpush1.msra.mxu0 0.0
        %2533 = vmatprep.subr.mxu0 0.0
        %2534 = vmatpush1.msra.mxu0 0.0
        %2535 = vmatprep.subr.mxu0 0.0
        %2536 = vmatpush1.msra.mxu0 0.0
        %2537 = vmatprep.subr.mxu0 0.0
        %2538 = vmatpush1.msra.mxu0 0.0
        %2539 = vmatprep.subr.mxu0 0.0
        %2540 = vmatpush1.msra.mxu0 0.0
        %2541 = vmatprep.subr.mxu0 0.0
        %2542 = vmatpush1.msra.mxu0 0.0
        %2543 = vmatprep.subr.mxu0 0.0
        %2544 = vmatpush1.msra.mxu0 0.0
        %2545 = vmatprep.subr.mxu0 0.0
        %2546 = vmatpush1.msra.mxu0 0.0
        %2547 = vmatprep.subr.mxu0 0.0
        %2548 = vmatpush1.msra.mxu0 0.0
        %2549 = vmatprep.subr.mxu0 0.0
        %2550 = vmatpush1.msra.mxu0 0.0
        %2551 = vmatprep.subr.mxu0 0.0
        %2552 = vmatpush1.msra.mxu0 0.0
        %2553 = vmatprep.subr.mxu0 0.0
        %2554 = vmatpush1.msra.mxu0 0.0
        %2555 = vmatprep.mubr.f32.mxu0 0.0
        %2556 = vmatmul.mubr.f32.gmra.mrb[0].mxu0 %v2468
        %v2557 = vpop.f32.mrb[0].mxu0
        %v2558 = vadd.f32 %v2465, %v2557
        %v2559 = vpop.f32.mrb[0].mxu0
        %2560 = vmatprep.mubr.f32.mxu0 0.0
        %2561 = vmatmul.mubr.f32.gmra.mrb[0].mxu0 %v2471
        %v2562 = vpop.f32.mrb[0].mxu0
        %v2563 = vadd.f32 %v2465, %v2562
        %v2564 = vpop.f32.mrb[0].mxu0
        %2565 = vmatprep.mubr.f32.mxu0 0.0
        %2566 = vmatmul.mubr.f32.gmra.mrb[0].mxu0 %v2474
        %v2567 = vpop.f32.mrb[0].mxu0
        %v2568 = vadd.f32 %v2465, %v2567
        %v2569 = vpop.f32.mrb[0].mxu0
        %2570 = vmatprep.mubr.f32.mxu0 0.0
        %2571 = vmatmul.mubr.f32.gmra.mrb[0].mxu0 %v2477
        %v2572 = vpop.f32.mrb[0].mxu0
        %v2573 = vadd.f32 %v2465, %v2572
        %v2574 = vpop.f32.mrb[0].mxu0
        %2575 = vmatprep.mubr.f32.mxu0 0.0
        %2576 = vmatmul.mubr.f32.gmra.mrb[0].mxu0 %v2480
        %v2577 = vpop.f32.mrb[0].mxu0
        %v2578 = vadd.f32 %v2465, %v2577
        %v2579 = vpop.f32.mrb[0].mxu0
        %2580 = vmatprep.mubr.f32.mxu0 0.0
        %2581 = vmatmul.mubr.f32.gmra.mrb[0].mxu0 %v2483
        %v2582 = vpop.f32.mrb[0].mxu0
        %v2583 = vadd.f32 %v2465, %v2582
        %v2584 = vpop.f32.mrb[0].mxu0
        %2585 = vmatprep.mubr.f32.mxu0 0.0
        %2586 = vmatmul.mubr.f32.gmra.mrb[0].mxu0 %v2486
        %v2587 = vpop.f32.mrb[0].mxu0
        %v2588 = vadd.f32 %v2465, %v2587
        %v2589 = vpop.f32.mrb[0].mxu0
        %2590 = vmatprep.mubr.f32.mxu0 0.0
        %2591 = vmatmul.mubr.f32.gmra.mrb[0].mxu0 %v2489
        %v2592 = vpop.f32.mrb[0].mxu0
        %v2593 = vadd.f32 %v2465, %v2592
        %v2594 = vpop.f32.mrb[0].mxu0
        %2595 = vdwg.mxu0
        %v2596 = vsel %vm502, %v2558, 0.0
        %2597 = vadd.xlane.f32.xlu0 %v2596
        %v2598 = vpop.xlane.xlu0 %2597
        %v2599 = vsel %vm502, %v2563, 0.0
        %2600 = vadd.xlane.f32.xlu0 %v2599
        %v2601 = vpop.xlane.xlu0 %2600
        %v2602 = vsel %vm502, %v2568, 0.0
        %2603 = vadd.xlane.f32.xlu0 %v2602
        %v2604 = vpop.xlane.xlu0 %2603
        %v2605 = vsel %vm502, %v2573, 0.0
        %2606 = vadd.xlane.f32.xlu0 %v2605
        %v2607 = vpop.xlane.xlu0 %2606
        %v2608 = vsel %vm502, %v2578, 0.0
        %2609 = vadd.xlane.f32.xlu0 %v2608
        %v2610 = vpop.xlane.xlu0 %2609
        %v2611 = vsel %vm502, %v2583, 0.0
        %2612 = vadd.xlane.f32.xlu0 %v2611
        %v2613 = vpop.xlane.xlu0 %2612
        %v2614 = vsel %vm502, %v2588, 0.0
        %2615 = vadd.xlane.f32.xlu0 %v2614
        %v2616 = vpop.xlane.xlu0 %2615
        %v2617 = vsel %vm502, %v2593, 0.0
        %2618 = vadd.xlane.f32.xlu0 %v2617
        %v2619 = vpop.xlane.xlu0 %2618
        %v2620 = vrcp.pop 32.0
        %v2621 = vmul.f32 %v2598, %v2620
        %v2622 = vmul.f32 %v2601, %v2620
        %v2623 = vmul.f32 %v2604, %v2620
        %v2624 = vmul.f32 %v2607, %v2620
        %v2625 = vmul.f32 %v2610, %v2620
        %v2626 = vmul.f32 %v2613, %v2620
        %v2627 = vmul.f32 %v2616, %v2620
        %v2628 = vmul.f32 %v2619, %v2620
        %v2629 = vsub.f32 %v2558, %v2621
        %v2630 = vsub.f32 %v2563, %v2622
        %v2631 = vsub.f32 %v2568, %v2623
        %v2632 = vsub.f32 %v2573, %v2624
        %v2633 = vsub.f32 %v2578, %v2625
        %v2634 = vsub.f32 %v2583, %v2626
        %v2635 = vsub.f32 %v2588, %v2627
        %v2636 = vsub.f32 %v2593, %v2628
        %v2637 = vmul.f32 %v2629, %v2629
        %v2638 = vmul.f32 %v2630, %v2630
        %v2639 = vmul.f32 %v2631, %v2631
        %v2640 = vmul.f32 %v2632, %v2632
        %v2641 = vmul.f32 %v2633, %v2633
        %v2642 = vmul.f32 %v2634, %v2634
        %v2643 = vmul.f32 %v2635, %v2635
        %v2644 = vmul.f32 %v2636, %v2636
        %v2645 = vsel %vm502, %v2637, 0.0
        %2646 = vadd.xlane.f32.xlu0 %v2645
        %v2647 = vpop.xlane.xlu0 %2646
        %v2648 = vsel %vm502, %v2638, 0.0
        %2649 = vadd.xlane.f32.xlu0 %v2648
        %v2650 = vpop.xlane.xlu0 %2649
        %v2651 = vsel %vm502, %v2639, 0.0
        %2652 = vadd.xlane.f32.xlu0 %v2651
        %v2653 = vpop.xlane.xlu0 %2652
        %v2654 = vsel %vm502, %v2640, 0.0
        %2655 = vadd.xlane.f32.xlu0 %v2654
        %v2656 = vpop.xlane.xlu0 %2655
        %v2657 = vsel %vm502, %v2641, 0.0
        %2658 = vadd.xlane.f32.xlu0 %v2657
        %v2659 = vpop.xlane.xlu0 %2658
        %v2660 = vsel %vm502, %v2642, 0.0
        %2661 = vadd.xlane.f32.xlu0 %v2660
        %v2662 = vpop.xlane.xlu0 %2661
        %v2663 = vsel %vm502, %v2643, 0.0
        %2664 = vadd.xlane.f32.xlu0 %v2663
        %v2665 = vpop.xlane.xlu0 %2664
        %v2666 = vsel %vm502, %v2644, 0.0
        %2667 = vadd.xlane.f32.xlu0 %v2666
        %v2668 = vpop.xlane.xlu0 %2667
        %v2669 = vmul.f32 %v2647, %v2620
        %v2670 = vmul.f32 %v2650, %v2620
        %v2671 = vmul.f32 %v2653, %v2620
        %v2672 = vmul.f32 %v2656, %v2620
        %v2673 = vmul.f32 %v2659, %v2620
        %v2674 = vmul.f32 %v2662, %v2620
        %v2675 = vmul.f32 %v2665, %v2620
        %v2676 = vmul.f32 %v2668, %v2620
        %v2677 = vadd.f32 %v2669, 1e-05
        %v2678 = vadd.f32 %v2670, 1e-05
        %v2679 = vadd.f32 %v2671, 1e-05
        %v2680 = vadd.f32 %v2672, 1e-05
        %v2681 = vadd.f32 %v2673, 1e-05
        %v2682 = vadd.f32 %v2674, 1e-05
        %v2683 = vadd.f32 %v2675, 1e-05
        %v2684 = vadd.f32 %v2676, 1e-05
        %v2685 = vrsqrt.pop %v2677
        %v2686 = vrsqrt.pop %v2678
        %v2687 = vrsqrt.pop %v2679
        %v2688 = vrsqrt.pop %v2680
        %v2689 = vrsqrt.pop %v2681
        %v2690 = vrsqrt.pop %v2682
        %v2691 = vrsqrt.pop %v2683
        %v2692 = vrsqrt.pop %v2684
        %v2693 = vmul.f32 %v2629, %v2685
        %v2694 = vmul.f32 %v2630, %v2686
        %v2695 = vmul.f32 %v2631, %v2687
        %v2696 = vmul.f32 %v2632, %v2688
        %v2697 = vmul.f32 %v2633, %v2689
        %v2698 = vmul.f32 %v2634, %v2690
        %v2699 = vmul.f32 %v2635, %v2691
        %v2700 = vmul.f32 %v2636, %v2692
        %v2701 = vld [vmem:[%s6] sm:$0x1]
        %v2703 = vlaneseq
        %v2704 = vshrl.u32 %v2703, 7
        %v2705 = vsub.s32 0, %v2704
        %v2706 = vrot.slane %v2701, %v2705
        %v2708 = vmul.f32 %v2693, %v2706
        %v2709 = vmul.f32 %v2694, %v2706
        %v2710 = vmul.f32 %v2695, %v2706
        %v2711 = vmul.f32 %v2696, %v2706
        %v2712 = vmul.f32 %v2697, %v2706
        %v2713 = vmul.f32 %v2698, %v2706
        %v2714 = vmul.f32 %v2699, %v2706
        %v2715 = vmul.f32 %v2700, %v2706
        %v2716 = vld [vmem:[%s7] sm:$0x1]
        %v2718 = vlaneseq
        %v2719 = vshrl.u32 %v2718, 7
        %v2720 = vsub.s32 0, %v2719
        %v2721 = vrot.slane %v2716, %v2720
        %v2723 = vadd.f32 %v2708, %v2721
        %v2724 = vadd.f32 %v2709, %v2721
        %v2725 = vadd.f32 %v2710, %v2721
        %v2726 = vadd.f32 %v2711, %v2721
        %v2727 = vadd.f32 %v2712, %v2721
        %v2728 = vadd.f32 %v2713, %v2721
        %v2729 = vadd.f32 %v2714, %v2721
        %v2730 = vadd.f32 %v2715, %v2721
        %v2731 = vadd.f32 %v483, %v2723
        %v2732 = vadd.f32 %v484, %v2724
        %v2733 = vadd.f32 %v485, %v2725
        %v2734 = vadd.f32 %v486, %v2726
        %v2735 = vadd.f32 %v487, %v2727
        %v2736 = vadd.f32 %v488, %v2728
        %v2737 = vadd.f32 %v489, %v2729
        %v2738 = vadd.f32 %v490, %v2730
        %v2739 = vld [vmem:[%s8] sm:$0xff]
        %v2740 = vld [vmem:[%s8 + $0x8] sm:$0xff]
        %v2741 = vld [vmem:[%s8 + $0x10] sm:$0xff]
        %v2742 = vld [vmem:[%s8 + $0x18] sm:$0xff]
        %v2743 = vld [vmem:[%s9] sm:$0x1]
        %v2745 = vlaneseq
        %v2746 = vshrl.u32 %v2745, 7
        %v2747 = vsub.s32 0, %v2746
        %v2748 = vrot.slane %v2743, %v2747
        %v2751 = vsel %vm502, %v2731, 0
        %v2754 = vsel %vm502, %v2732, 0
        %v2757 = vsel %vm502, %v2733, 0
        %v2760 = vsel %vm502, %v2734, 0
        %v2763 = vsel %vm502, %v2735, 0
        %v2766 = vsel %vm502, %v2736, 0
        %v2769 = vsel %vm502, %v2737, 0
        %v2772 = vsel %vm502, %v2738, 0
        %2774 = vmatprep.subr.mxu0 0.0
        %2775 = vmatpush1.msra.mxu0 %v2739
        %2776 = vmatprep.subr.mxu0 0.0
        %2777 = vmatpush1.msra.mxu0 %v2740
        %2778 = vmatprep.subr.mxu0 0.0
        %2779 = vmatpush1.msra.mxu0 %v2741
        %2780 = vmatprep.subr.mxu0 0.0
        %2781 = vmatpush1.msra.mxu0 %v2742
        %2782 = vmatprep.subr.mxu0 0.0
        %2783 = vmatpush1.msra.mxu0 0.0
        %2784 = vmatprep.subr.mxu0 0.0
        %2785 = vmatpush1.msra.mxu0 0.0
        %2786 = vmatprep.subr.mxu0 0.0
        %2787 = vmatpush1.msra.mxu0 0.0
        %2788 = vmatprep.subr.mxu0 0.0
        %2789 = vmatpush1.msra.mxu0 0.0
        %2790 = vmatprep.subr.mxu0 0.0
        %2791 = vmatpush1.msra.mxu0 0.0
        %2792 = vmatprep.subr.mxu0 0.0
        %2793 = vmatpush1.msra.mxu0 0.0
        %2794 = vmatprep.subr.mxu0 0.0
        %2795 = vmatpush1.msra.mxu0 0.0
        %2796 = vmatprep.subr.mxu0 0.0
        %2797 = vmatpush1.msra.mxu0 0.0
        %2798 = vmatprep.subr.mxu0 0.0
        %2799 = vmatpush1.msra.mxu0 0.0
        %2800 = vmatprep.subr.mxu0 0.0
        %2801 = vmatpush1.msra.mxu0 0.0
        %2802 = vmatprep.subr.mxu0 0.0
        %2803 = vmatpush1.msra.mxu0 0.0
        %2804 = vmatprep.subr.mxu0 0.0
        %2805 = vmatpush1.msra.mxu0 0.0
        %2806 = vmatprep.subr.mxu0 0.0
        %2807 = vmatpush1.msra.mxu0 0.0
        %2808 = vmatprep.subr.mxu0 0.0
        %2809 = vmatpush1.msra.mxu0 0.0
        %2810 = vmatprep.subr.mxu0 0.0
        %2811 = vmatpush1.msra.mxu0 0.0
        %2812 = vmatprep.subr.mxu0 0.0
        %2813 = vmatpush1.msra.mxu0 0.0
        %2814 = vmatprep.subr.mxu0 0.0
        %2815 = vmatpush1.msra.mxu0 0.0
        %2816 = vmatprep.subr.mxu0 0.0
        %2817 = vmatpush1.msra.mxu0 0.0
        %2818 = vmatprep.subr.mxu0 0.0
        %2819 = vmatpush1.msra.mxu0 0.0
        %2820 = vmatprep.subr.mxu0 0.0
        %2821 = vmatpush1.msra.mxu0 0.0
        %2822 = vmatprep.subr.mxu0 0.0
        %2823 = vmatpush1.msra.mxu0 0.0
        %2824 = vmatprep.subr.mxu0 0.0
        %2825 = vmatpush1.msra.mxu0 0.0
        %2826 = vmatprep.subr.mxu0 0.0
        %2827 = vmatpush1.msra.mxu0 0.0
        %2828 = vmatprep.subr.mxu0 0.0
        %2829 = vmatpush1.msra.mxu0 0.0
        %2830 = vmatprep.subr.mxu0 0.0
        %2831 = vmatpush1.msra.mxu0 0.0
        %2832 = vmatprep.subr.mxu0 0.0
        %2833 = vmatpush1.msra.mxu0 0.0
        %2834 = vmatprep.subr.mxu0 0.0
        %2835 = vmatpush1.msra.mxu0 0.0
        %2836 = vmatprep.subr.mxu0 0.0
        %2837 = vmatpush1.msra.mxu0 0.0
        %2838 = vmatprep.mubr.f32.mxu0 0.0
        %2839 = vmatmul.mubr.f32.gmra.mrb[0].mxu0 %v2751
        %v2840 = vpop.f32.mrb[0].mxu0
        %v2841 = vadd.f32 %v2748, %v2840
        %v2842 = vpop.f32.mrb[0].mxu0
        %2843 = vmatprep.mubr.f32.mxu0 0.0
        %2844 = vmatmul.mubr.f32.gmra.mrb[0].mxu0 %v2754
        %v2845 = vpop.f32.mrb[0].mxu0
        %v2846 = vadd.f32 %v2748, %v2845
        %v2847 = vpop.f32.mrb[0].mxu0
        %2848 = vmatprep.mubr.f32.mxu0 0.0
        %2849 = vmatmul.mubr.f32.gmra.mrb[0].mxu0 %v2757
        %v2850 = vpop.f32.mrb[0].mxu0
        %v2851 = vadd.f32 %v2748, %v2850
        %v2852 = vpop.f32.mrb[0].mxu0
        %2853 = vmatprep.mubr.f32.mxu0 0.0
        %2854 = vmatmul.mubr.f32.gmra.mrb[0].mxu0 %v2760
        %v2855 = vpop.f32.mrb[0].mxu0
        %v2856 = vadd.f32 %v2748, %v2855
        %v2857 = vpop.f32.mrb[0].mxu0
        %2858 = vmatprep.mubr.f32.mxu0 0.0
        %2859 = vmatmul.mubr.f32.gmra.mrb[0].mxu0 %v2763
        %v2860 = vpop.f32.mrb[0].mxu0
        %v2861 = vadd.f32 %v2748, %v2860
        %v2862 = vpop.f32.mrb[0].mxu0
        %2863 = vmatprep.mubr.f32.mxu0 0.0
        %2864 = vmatmul.mubr.f32.gmra.mrb[0].mxu0 %v2766
        %v2865 = vpop.f32.mrb[0].mxu0
        %v2866 = vadd.f32 %v2748, %v2865
        %v2867 = vpop.f32.mrb[0].mxu0
        %2868 = vmatprep.mubr.f32.mxu0 0.0
        %2869 = vmatmul.mubr.f32.gmra.mrb[0].mxu0 %v2769
        %v2870 = vpop.f32.mrb[0].mxu0
        %v2871 = vadd.f32 %v2748, %v2870
        %v2872 = vpop.f32.mrb[0].mxu0
        %2873 = vmatprep.mubr.f32.mxu0 0.0
        %2874 = vmatmul.mubr.f32.gmra.mrb[0].mxu0 %v2772
        %v2875 = vpop.f32.mrb[0].mxu0
        %v2876 = vadd.f32 %v2748, %v2875
        %v2877 = vpop.f32.mrb[0].mxu0
        %2878 = vdwg.mxu0
        %v2879 = vmul.f32 %v2841, 0.5
        %v2880 = vmul.f32 %v2846, 0.5
        %v2881 = vmul.f32 %v2851, 0.5
        %v2882 = vmul.f32 %v2856, 0.5
        %v2883 = vmul.f32 %v2861, 0.5
        %v2884 = vmul.f32 %v2866, 0.5
        %v2885 = vmul.f32 %v2871, 0.5
        %v2886 = vmul.f32 %v2876, 0.5
        %v2887 = vmul.f32 %v2841, 0.70710677
        %v2888 = vmul.f32 %v2846, 0.70710677
        %v2889 = vmul.f32 %v2851, 0.70710677
        %v2890 = vmul.f32 %v2856, 0.70710677
        %v2891 = vmul.f32 %v2861, 0.70710677
        %v2892 = vmul.f32 %v2866, 0.70710677
        %v2893 = vmul.f32 %v2871, 0.70710677
        %v2894 = vmul.f32 %v2876, 0.70710677
        %v2895 = verf.f32.pop %v2887
        %v2896 = verf.f32.pop %v2888
        %v2897 = verf.f32.pop %v2889
        %v2898 = verf.f32.pop %v2890
        %v2899 = verf.f32.pop %v2891
        %v2900 = verf.f32.pop %v2892
        %v2901 = verf.f32.pop %v2893
        %v2902 = verf.f32.pop %v2894
        %v2903 = vadd.f32 %v2895, 1.0
        %v2904 = vadd.f32 %v2896, 1.0
        %v2905 = vadd.f32 %v2897, 1.0
        %v2906 = vadd.f32 %v2898, 1.0
        %v2907 = vadd.f32 %v2899, 1.0
        %v2908 = vadd.f32 %v2900, 1.0
        %v2909 = vadd.f32 %v2901, 1.0
        %v2910 = vadd.f32 %v2902, 1.0
        %v2911 = vmul.f32 %v2879, %v2903
        %v2912 = vmul.f32 %v2880, %v2904
        %v2913 = vmul.f32 %v2881, %v2905
        %v2914 = vmul.f32 %v2882, %v2906
        %v2915 = vmul.f32 %v2883, %v2907
        %v2916 = vmul.f32 %v2884, %v2908
        %v2917 = vmul.f32 %v2885, %v2909
        %v2918 = vmul.f32 %v2886, %v2910
        %v2919 = vld [vmem:[%s10] sm:$0xff]
        %v2920 = vld [vmem:[%s10 + $0x8] sm:$0xff]
        %v2921 = vld [vmem:[%s10 + $0x10] sm:$0xff]
        %v2922 = vld [vmem:[%s10 + $0x18] sm:$0xff]
        %v2923 = vld [vmem:[%s10 + $0x20] sm:$0xff]
        %v2924 = vld [vmem:[%s10 + $0x28] sm:$0xff]
        %v2925 = vld [vmem:[%s10 + $0x30] sm:$0xff]
        %v2926 = vld [vmem:[%s10 + $0x38] sm:$0xff]
        %v2927 = vld [vmem:[%s10 + $0x40] sm:$0xff]
        %v2928 = vld [vmem:[%s10 + $0x48] sm:$0xff]
        %v2929 = vld [vmem:[%s10 + $0x50] sm:$0xff]
        %v2930 = vld [vmem:[%s10 + $0x58] sm:$0xff]
        %v2931 = vld [vmem:[%s10 + $0x60] sm:$0xff]
        %v2932 = vld [vmem:[%s10 + $0x68] sm:$0xff]
        %v2933 = vld [vmem:[%s10 + $0x70] sm:$0xff]
        %v2934 = vld [vmem:[%s10 + $0x78] sm:$0xff]
        %v2935 = vld [vmem:[%s11] sm:$0x1]
        %v2937 = vlaneseq
        %v2938 = vshrl.u32 %v2937, 7
        %v2939 = vsub.s32 0, %v2938
        %v2940 = vrot.slane %v2935, %v2939
        %2942 = vmatprep.subr.mxu0 0.0
        %2943 = vmatpush1.msra.mxu0 %v2919
        %2944 = vmatprep.subr.mxu0 0.0
        %2945 = vmatpush1.msra.mxu0 %v2920
        %2946 = vmatprep.subr.mxu0 0.0
        %2947 = vmatpush1.msra.mxu0 %v2921
        %2948 = vmatprep.subr.mxu0 0.0
        %2949 = vmatpush1.msra.mxu0 %v2922
        %2950 = vmatprep.subr.mxu0 0.0
        %2951 = vmatpush1.msra.mxu0 %v2923
        %2952 = vmatprep.subr.mxu0 0.0
        %2953 = vmatpush1.msra.mxu0 %v2924
        %2954 = vmatprep.subr.mxu0 0.0
        %2955 = vmatpush1.msra.mxu0 %v2925
        %2956 = vmatprep.subr.mxu0 0.0
        %2957 = vmatpush1.msra.mxu0 %v2926
        %2958 = vmatprep.subr.mxu0 0.0
        %2959 = vmatpush1.msra.mxu0 %v2927
        %2960 = vmatprep.subr.mxu0 0.0
        %2961 = vmatpush1.msra.mxu0 %v2928
        %2962 = vmatprep.subr.mxu0 0.0
        %2963 = vmatpush1.msra.mxu0 %v2929
        %2964 = vmatprep.subr.mxu0 0.0
        %2965 = vmatpush1.msra.mxu0 %v2930
        %2966 = vmatprep.subr.mxu0 0.0
        %2967 = vmatpush1.msra.mxu0 %v2931
        %2968 = vmatprep.subr.mxu0 0.0
        %2969 = vmatpush1.msra.mxu0 %v2932
        %2970 = vmatprep.subr.mxu0 0.0
        %2971 = vmatpush1.msra.mxu0 %v2933
        %2972 = vmatprep.subr.mxu0 0.0
        %2973 = vmatpush1.msra.mxu0 %v2934
        %2974 = vmatprep.subr.mxu0 0.0
        %2975 = vmatpush1.msra.mxu0 0.0
        %2976 = vmatprep.subr.mxu0 0.0
        %2977 = vmatpush1.msra.mxu0 0.0
        %2978 = vmatprep.subr.mxu0 0.0
        %2979 = vmatpush1.msra.mxu0 0.0
        %2980 = vmatprep.subr.mxu0 0.0
        %2981 = vmatpush1.msra.mxu0 0.0
        %2982 = vmatprep.subr.mxu0 0.0
        %2983 = vmatpush1.msra.mxu0 0.0
        %2984 = vmatprep.subr.mxu0 0.0
        %2985 = vmatpush1.msra.mxu0 0.0
        %2986 = vmatprep.subr.mxu0 0.0
        %2987 = vmatpush1.msra.mxu0 0.0
        %2988 = vmatprep.subr.mxu0 0.0
        %2989 = vmatpush1.msra.mxu0 0.0
        %2990 = vmatprep.subr.mxu0 0.0
        %2991 = vmatpush1.msra.mxu0 0.0
        %2992 = vmatprep.subr.mxu0 0.0
        %2993 = vmatpush1.msra.mxu0 0.0
        %2994 = vmatprep.subr.mxu0 0.0
        %2995 = vmatpush1.msra.mxu0 0.0
        %2996 = vmatprep.subr.mxu0 0.0
        %2997 = vmatpush1.msra.mxu0 0.0
        %2998 = vmatprep.subr.mxu0 0.0
        %2999 = vmatpush1.msra.mxu0 0.0
        %3000 = vmatprep.subr.mxu0 0.0
        %3001 = vmatpush1.msra.mxu0 0.0
        %3002 = vmatprep.subr.mxu0 0.0
        %3003 = vmatpush1.msra.mxu0 0.0
        %3004 = vmatprep.subr.mxu0 0.0
        %3005 = vmatpush1.msra.mxu0 0.0
        %3006 = vmatprep.mubr.f32.mxu0 0.0
        %3007 = vmatmul.mubr.f32.gmra.mrb[0].mxu0 %v2911
        %v3008 = vpop.f32.mrb[0].mxu0
        %v3009 = vadd.f32 %v2940, %v3008
        %v3010 = vpop.f32.mrb[0].mxu0
        %3011 = vmatprep.mubr.f32.mxu0 0.0
        %3012 = vmatmul.mubr.f32.gmra.mrb[0].mxu0 %v2912
        %v3013 = vpop.f32.mrb[0].mxu0
        %v3014 = vadd.f32 %v2940, %v3013
        %v3015 = vpop.f32.mrb[0].mxu0
        %3016 = vmatprep.mubr.f32.mxu0 0.0
        %3017 = vmatmul.mubr.f32.gmra.mrb[0].mxu0 %v2913
        %v3018 = vpop.f32.mrb[0].mxu0
        %v3019 = vadd.f32 %v2940, %v3018
        %v3020 = vpop.f32.mrb[0].mxu0
        %3021 = vmatprep.mubr.f32.mxu0 0.0
        %3022 = vmatmul.mubr.f32.gmra.mrb[0].mxu0 %v2914
        %v3023 = vpop.f32.mrb[0].mxu0
        %v3024 = vadd.f32 %v2940, %v3023
        %v3025 = vpop.f32.mrb[0].mxu0
        %3026 = vmatprep.mubr.f32.mxu0 0.0
        %3027 = vmatmul.mubr.f32.gmra.mrb[0].mxu0 %v2915
        %v3028 = vpop.f32.mrb[0].mxu0
        %v3029 = vadd.f32 %v2940, %v3028
        %v3030 = vpop.f32.mrb[0].mxu0
        %3031 = vmatprep.mubr.f32.mxu0 0.0
        %3032 = vmatmul.mubr.f32.gmra.mrb[0].mxu0 %v2916
        %v3033 = vpop.f32.mrb[0].mxu0
        %v3034 = vadd.f32 %v2940, %v3033
        %v3035 = vpop.f32.mrb[0].mxu0
        %3036 = vmatprep.mubr.f32.mxu0 0.0
        %3037 = vmatmul.mubr.f32.gmra.mrb[0].mxu0 %v2917
        %v3038 = vpop.f32.mrb[0].mxu0
        %v3039 = vadd.f32 %v2940, %v3038
        %v3040 = vpop.f32.mrb[0].mxu0
        %3041 = vmatprep.mubr.f32.mxu0 0.0
        %3042 = vmatmul.mubr.f32.gmra.mrb[0].mxu0 %v2918
        %v3043 = vpop.f32.mrb[0].mxu0
        %v3044 = vadd.f32 %v2940, %v3043
        %v3045 = vpop.f32.mrb[0].mxu0
        %3046 = vdwg.mxu0
        %v3047 = vsel %vm502, %v3009, 0.0
        %3048 = vadd.xlane.f32.xlu0 %v3047
        %v3049 = vpop.xlane.xlu0 %3048
        %v3050 = vsel %vm502, %v3014, 0.0
        %3051 = vadd.xlane.f32.xlu0 %v3050
        %v3052 = vpop.xlane.xlu0 %3051
        %v3053 = vsel %vm502, %v3019, 0.0
        %3054 = vadd.xlane.f32.xlu0 %v3053
        %v3055 = vpop.xlane.xlu0 %3054
        %v3056 = vsel %vm502, %v3024, 0.0
        %3057 = vadd.xlane.f32.xlu0 %v3056
        %v3058 = vpop.xlane.xlu0 %3057
        %v3059 = vsel %vm502, %v3029, 0.0
        %3060 = vadd.xlane.f32.xlu0 %v3059
        %v3061 = vpop.xlane.xlu0 %3060
        %v3062 = vsel %vm502, %v3034, 0.0
        %3063 = vadd.xlane.f32.xlu0 %v3062
        %v3064 = vpop.xlane.xlu0 %3063
        %v3065 = vsel %vm502, %v3039, 0.0
        %3066 = vadd.xlane.f32.xlu0 %v3065
        %v3067 = vpop.xlane.xlu0 %3066
        %v3068 = vsel %vm502, %v3044, 0.0
        %3069 = vadd.xlane.f32.xlu0 %v3068
        %v3070 = vpop.xlane.xlu0 %3069
        %v3071 = vmul.f32 %v3049, %v2620
        %v3072 = vmul.f32 %v3052, %v2620
        %v3073 = vmul.f32 %v3055, %v2620
        %v3074 = vmul.f32 %v3058, %v2620
        %v3075 = vmul.f32 %v3061, %v2620
        %v3076 = vmul.f32 %v3064, %v2620
        %v3077 = vmul.f32 %v3067, %v2620
        %v3078 = vmul.f32 %v3070, %v2620
        %v3079 = vsub.f32 %v3009, %v3071
        %v3080 = vsub.f32 %v3014, %v3072
        %v3081 = vsub.f32 %v3019, %v3073
        %v3082 = vsub.f32 %v3024, %v3074
        %v3083 = vsub.f32 %v3029, %v3075
        %v3084 = vsub.f32 %v3034, %v3076
        %v3085 = vsub.f32 %v3039, %v3077
        %v3086 = vsub.f32 %v3044, %v3078
        %v3087 = vmul.f32 %v3079, %v3079
        %v3088 = vmul.f32 %v3080, %v3080
        %v3089 = vmul.f32 %v3081, %v3081
        %v3090 = vmul.f32 %v3082, %v3082
        %v3091 = vmul.f32 %v3083, %v3083
        %v3092 = vmul.f32 %v3084, %v3084
        %v3093 = vmul.f32 %v3085, %v3085
        %v3094 = vmul.f32 %v3086, %v3086
        %v3095 = vsel %vm502, %v3087, 0.0
        %3096 = vadd.xlane.f32.xlu0 %v3095
        %v3097 = vpop.xlane.xlu0 %3096
        %v3098 = vsel %vm502, %v3088, 0.0
        %3099 = vadd.xlane.f32.xlu0 %v3098
        %v3100 = vpop.xlane.xlu0 %3099
        %v3101 = vsel %vm502, %v3089, 0.0
        %3102 = vadd.xlane.f32.xlu0 %v3101
        %v3103 = vpop.xlane.xlu0 %3102
        %v3104 = vsel %vm502, %v3090, 0.0
        %3105 = vadd.xlane.f32.xlu0 %v3104
        %v3106 = vpop.xlane.xlu0 %3105
        %v3107 = vsel %vm502, %v3091, 0.0
        %3108 = vadd.xlane.f32.xlu0 %v3107
        %v3109 = vpop.xlane.xlu0 %3108
        %v3110 = vsel %vm502, %v3092, 0.0
        %3111 = vadd.xlane.f32.xlu0 %v3110
        %v3112 = vpop.xlane.xlu0 %3111
        %v3113 = vsel %vm502, %v3093, 0.0
        %3114 = vadd.xlane.f32.xlu0 %v3113
        %v3115 = vpop.xlane.xlu0 %3114
        %v3116 = vsel %vm502, %v3094, 0.0
        %3117 = vadd.xlane.f32.xlu0 %v3116
        %v3118 = vpop.xlane.xlu0 %3117
        %v3119 = vmul.f32 %v3097, %v2620
        %v3120 = vmul.f32 %v3100, %v2620
        %v3121 = vmul.f32 %v3103, %v2620
        %v3122 = vmul.f32 %v3106, %v2620
        %v3123 = vmul.f32 %v3109, %v2620
        %v3124 = vmul.f32 %v3112, %v2620
        %v3125 = vmul.f32 %v3115, %v2620
        %v3126 = vmul.f32 %v3118, %v2620
        %v3127 = vadd.f32 %v3119, 1e-05
        %v3128 = vadd.f32 %v3120, 1e-05
        %v3129 = vadd.f32 %v3121, 1e-05
        %v3130 = vadd.f32 %v3122, 1e-05
        %v3131 = vadd.f32 %v3123, 1e-05
        %v3132 = vadd.f32 %v3124, 1e-05
        %v3133 = vadd.f32 %v3125, 1e-05
        %v3134 = vadd.f32 %v3126, 1e-05
        %v3135 = vrsqrt.pop %v3127
        %v3136 = vrsqrt.pop %v3128
        %v3137 = vrsqrt.pop %v3129
        %v3138 = vrsqrt.pop %v3130
        %v3139 = vrsqrt.pop %v3131
        %v3140 = vrsqrt.pop %v3132
        %v3141 = vrsqrt.pop %v3133
        %v3142 = vrsqrt.pop %v3134
        %v3143 = vmul.f32 %v3079, %v3135
        %v3144 = vmul.f32 %v3080, %v3136
        %v3145 = vmul.f32 %v3081, %v3137
        %v3146 = vmul.f32 %v3082, %v3138
        %v3147 = vmul.f32 %v3083, %v3139
        %v3148 = vmul.f32 %v3084, %v3140
        %v3149 = vmul.f32 %v3085, %v3141
        %v3150 = vmul.f32 %v3086, %v3142
        %v3151 = vld [vmem:[%s12] sm:$0x1]
        %v3153 = vlaneseq
        %v3154 = vshrl.u32 %v3153, 7
        %v3155 = vsub.s32 0, %v3154
        %v3156 = vrot.slane %v3151, %v3155
        %v3158 = vmul.f32 %v3143, %v3156
        %v3159 = vmul.f32 %v3144, %v3156
        %v3160 = vmul.f32 %v3145, %v3156
        %v3161 = vmul.f32 %v3146, %v3156
        %v3162 = vmul.f32 %v3147, %v3156
        %v3163 = vmul.f32 %v3148, %v3156
        %v3164 = vmul.f32 %v3149, %v3156
        %v3165 = vmul.f32 %v3150, %v3156
        %v3166 = vld [vmem:[%s13] sm:$0x1]
        %v3168 = vlaneseq
        %v3169 = vshrl.u32 %v3168, 7
        %v3170 = vsub.s32 0, %v3169
        %v3171 = vrot.slane %v3166, %v3170
        %v3173 = vadd.f32 %v3158, %v3171
        %v3174 = vadd.f32 %v3159, %v3171
        %v3175 = vadd.f32 %v3160, %v3171
        %v3176 = vadd.f32 %v3161, %v3171
        %v3177 = vadd.f32 %v3162, %v3171
        %v3178 = vadd.f32 %v3163, %v3171
        %v3179 = vadd.f32 %v3164, %v3171
        %v3180 = vadd.f32 %v3165, %v3171
        %v3181 = vadd.f32 %v2731, %v3173
        %v3182 = vadd.f32 %v2732, %v3174
        %v3183 = vadd.f32 %v2733, %v3175
        %v3184 = vadd.f32 %v2734, %v3176
        %v3185 = vadd.f32 %v2735, %v3177
        %v3186 = vadd.f32 %v2736, %v3178
        %v3187 = vadd.f32 %v2737, %v3179
        %v3188 = vadd.f32 %v2738, %v3180
        %3189 = vst.msk [vmem:[%s482] sm:$0xff] %vm502, %v3181
        %3190 = vst.msk [vmem:[%s482 + $0x8] sm:$0xff] %vm502, %v3182
        %3191 = vst.msk [vmem:[%s482 + $0x10] sm:$0xff] %vm502, %v3183
        %3192 = vst.msk [vmem:[%s482 + $0x18] sm:$0xff] %vm502, %v3184
        %3193 = vst.msk [vmem:[%s482 + $0x20] sm:$0xff] %vm502, %v3185
        %3194 = vst.msk [vmem:[%s482 + $0x28] sm:$0xff] %vm502, %v3186
        %3195 = vst.msk [vmem:[%s482 + $0x30] sm:$0xff] %vm502, %v3187
        %3196 = vst.msk [vmem:[%s482 + $0x38] sm:$0xff] %vm502, %v3188
        %p3197 = scmp.lt.s32.totalorder %s26, 1
        %s3198 = scalar_select %p3197, %s26, 1
        %s3199 = smul.addr %s3198, 8
        %s3200 = smul.addr %s3199, 8
        %s3201 = scalar_lea.vmem %s14, %s3200
        // Predicated region
        $region81: #{_lambda_.1} parent=75 // pred_check
          %p3202 = pneg %p343
        $region82: #{_lambda_.1} parent=75 // pred_check_branch
          %3204 = sbr.rel (%p3202) target = $region84
        $region83: #{_lambda_.1} parent=75 // pred_region
          _
        $region84: #{_lambda_.1} parent=75 // pred_fallthru
          _
      $region76: #{_lambda_.1} parent=5 // pred_fallthru
        _
      %p3205 = scmp.le.s32.totalorder 2, %s21
      // Predicated region
      $region85: #{_lambda_.1} parent=5 // pred_check
        %p3206 = pneg %p3205
      $region86: #{_lambda_.1} parent=5 // pred_check_branch
        %3208 = sbr.rel (%p3206) target = $region88
      $region87: #{_lambda_.1} parent=5 // pred_region
        %s3209 = ssub.s32 %s21, 2
        // Predicated region
        $region89: #{_lambda_.1} parent=87 // pred_check
          %p3210 = pneg %p349
        $region90: #{_lambda_.1} parent=87 // pred_check_branch
          %3212 = sbr.rel (%p3210) target = $region92
        $region91: #{_lambda_.1} parent=87 // pred_region
          %p3213 = scmp.lt.s32.totalorder %s27, 1
          %s3214 = scalar_select %p3213, %s27, 1
          %s3215 = smul.addr %s3214, 8
          %s3216 = smul.addr %s3215, 8
          %s3217 = scalar_lea.vmem %s14, %s3216
        $region92: #{_lambda_.1} parent=87 // pred_fallthru
          _
      $region88: #{_lambda_.1} parent=5 // pred_fallthru
        _
    $region6: #{_lambda_.1} parent=1 // loop_footer
      %s25 = sadd.s32 1, %s21
    $region7: #{_lambda_.1} parent=1 // loop_footer_branch
      %20 = sbr.rel target = $region3
    $region8: #{_lambda_.1} parent=1 // loop_exit
      _
    %3218 = vsyncpa [#allocation4], 1
    %s3219 = scalar_lea.sflag [#allocation4], 1
    %3220 = vsyncpa %s3219, 1

</llo_original>
